<compile_context>
chip_gen: v7x
topology: tpu7x:2x2x1
jax: 0.10.0
libtpu: 0.0.40
codegen_flags: <defaults>
</compile_context>

<pallas_src>
import functools

import jax
import jax.numpy as jnp
from jax.experimental import pallas as pl
from jax.experimental.pallas import tpu as pltpu

EPS = 1e-5
VMEM_LIMIT = 48 * 1024 * 1024  # safe on v5e/v6e (128 MiB) and v7x (64 MiB) parts


# ----------------------------- helpers ------------------------------------- #

def _row_mask(vals, row_blk, rows_total, blk_idx):
    """Zero rows past `rows_total` (partial last block). Static no-op if divisible."""
    if rows_total % row_blk == 0:
        return vals
    rid = blk_idx * row_blk + jax.lax.broadcasted_iota(jnp.int32, (row_blk, 1), 0)
    return jnp.where(rid < rows_total, vals, 0.0)


# ----------------------------- kernel bodies ------------------------------- #

def _conv3x3_folded_kernel(p_ref, w_ref, y1_ref, s1_ref, *, row_blk, rows_total):
    """Pass 1 (small-C fast path): y1 = relu(panel) @ W3 for one row tile.

    p_ref : (ROW_BLK, 128) bf16 im2col panel (9*C real lanes, zero-padded)
    w_ref : (128, Cp)      bf16 folded 3x3 weights (resident)
    y1_ref: (ROW_BLK, Cp)  bf16 conv output (pre-BN)
    s1_ref: (2, Cp)        f32 per-block partial [sum; sum_sq]
    """
    xr = jnp.maximum(p_ref[...], 0.0)                      # ReLU once (bf16, VPU)
    acc = jnp.dot(xr, w_ref[...], preferred_element_type=jnp.float32)
    y1_ref[...] = acc.astype(y1_ref.dtype)                 # bf16 lane-dense store
    a = _row_mask(acc, row_blk, rows_total, pl.program_id(0))
    s1_ref[0:1, :] = jnp.sum(a, axis=0, keepdims=True)     # stats from f32 acc
    s1_ref[1:2, :] = jnp.sum(a * a, axis=0, keepdims=True)


def _conv3x3_halo_kernel(x_ref, w3_ref, y1_ref, s1_ref, *, H, W, Cp):
    """Pass 1 (general path, 9*C > 128): 9 shifted matmuls over a halo'd image.

    x_ref : (H+2, W+2, Cp) bf16 zero-halo'd, channel-padded image
    w3_ref: (9, Cp, Cp)    bf16 [tap, cin, cout] (resident)
    y1_ref: (H*W, Cp)      bf16
    s1_ref: (2, Cp)        f32 per-image partial stats
    """
    xr = jnp.maximum(x_ref[...], 0.0)                      # ReLU hoisted, already bf16
    acc = jnp.zeros((H * W, Cp), jnp.float32)
    for dy in range(3):
        for dx in range(3):
            patch = xr[dy:dy + H, dx:dx + W, :].reshape(H * W, Cp)
            acc = acc + jnp.dot(patch, w3_ref[dy * 3 + dx],
                                preferred_element_type=jnp.float32)
    y1_ref[...] = acc.astype(y1_ref.dtype)
    s1_ref[0:1, :] = jnp.sum(acc, axis=0, keepdims=True)
    s1_ref[1:2, :] = jnp.sum(acc * acc, axis=0, keepdims=True)


def _bn_conv1x1_stats_kernel(y1_ref, s1_ref, w1_ref, s3_ref, *, m_total, row_blk):
    """Pass 2: stats of y3 = relu(BN(y1)) @ W1. No y3 write (recomputed in pass 3)."""
    inv_m = 1.0 / float(m_total)
    s1 = s1_ref[...]
    mean = s1[0:1, :] * inv_m
    var = jnp.maximum(s1[1:2, :] * inv_m - mean * mean, 0.0)
    out1 = (y1_ref[...].astype(jnp.float32) - mean) * jax.lax.rsqrt(var + EPS)
    x1 = jnp.maximum(out1, 0.0).astype(jnp.bfloat16)
    y3 = jnp.dot(x1, w1_ref[...], preferred_element_type=jnp.float32)
    y3 = _row_mask(y3, row_blk, m_total, pl.program_id(0))
    s3_ref[0:1, :] = jnp.sum(y3, axis=0, keepdims=True)
    s3_ref[1:2, :] = jnp.sum(y3 * y3, axis=0, keepdims=True)


def _finalize_kernel(y1_ref, s1_ref, s3_ref, w1_ref, o_ref, *, m_total):
    """Pass 3: out = BN(y1) + BN(relu(BN(y1)) @ W1). Fully parallel per tile."""
    inv_m = 1.0 / float(m_total)

    def bn_params(s):
        mean = s[0:1, :] * inv_m
        var = jnp.maximum(s[1:2, :] * inv_m - mean * mean, 0.0)
        return mean, jax.lax.rsqrt(var + EPS)

    m1, r1 = bn_params(s1_ref[...])
    m3, r3 = bn_params(s3_ref[...])
    out1 = (y1_ref[...].astype(jnp.float32) - m1) * r1
    x1 = jnp.maximum(out1, 0.0).astype(jnp.bfloat16)
    y3 = jnp.dot(x1, w1_ref[...], preferred_element_type=jnp.float32)  # recompute, no HBM y3
    o_ref[...] = out1 + (y3 - m3) * r3


# ------------------------------ wrapper ------------------------------------ #

def cell_fcdag_forward(x_nchw, w3x3, w1x1):
    """x: [N, C, H, W] f32; w3x3: [C, C, 3, 3]; w1x1: [C, C, 1, 1]. Returns NCHW f32."""
    N, C, H, W = x_nchw.shape
    Cp = max(128, -(-C // 128) * 128)          # lane-dense channel padding
    HW = H * W
    M = N * HW                                 # BN population size / row count
    ROW_BLK = 1024 if M >= 1024 else -(-M // 8) * 8
    NRB = pl.cdiv(M, ROW_BLK)

    x_nhwc = jnp.transpose(x_nchw, (0, 2, 3, 1)).astype(jnp.float32)

    # 1x1 weight, resident MXU operand [cin, cout] padded to (Cp, Cp).
    w1 = jnp.pad(jnp.transpose(w1x1[:, :, 0, 0], (1, 0)),
                 ((0, Cp - C), (0, Cp - C))).astype(jnp.bfloat16)

    # op_0 = skip_connect (Identity): its output is discarded by the reference
    # forward, so it is elided (pure, no side effects).

    if 9 * C <= 128:
        # ---- pass 1 fast path: fold the 9 taps into one K=128 contraction ----
        Kp = 128
        xb = jnp.pad(x_nhwc.astype(jnp.bfloat16), ((0, 0), (1, 1), (1, 1), (0, 0)))
        panel = jnp.concatenate(
            [xb[:, dy:dy + H, dx:dx + W, :] for dy in range(3) for dx in range(3)],
            axis=-1).reshape(M, 9 * C)
        panel = jnp.pad(panel, ((0, 0), (0, Kp - 9 * C)))            # (M, 128) bf16
        w3 = jnp.transpose(w3x3, (2, 3, 1, 0)).reshape(9 * C, C)     # [(dy,dx,cin), cout]
        w3 = jnp.pad(w3, ((0, Kp - 9 * C), (0, Cp - C))).astype(jnp.bfloat16)

        y1, s1p = pl.pallas_call(
            functools.partial(_conv3x3_folded_kernel, row_blk=ROW_BLK, rows_total=M),
            out_shape=(jax.ShapeDtypeStruct((M, Cp), jnp.bfloat16),
                       jax.ShapeDtypeStruct((NRB, 2, Cp), jnp.float32)),
            grid=(NRB,),
            in_specs=[pl.BlockSpec((ROW_BLK, Kp), lambda r: (r, 0)),
                      pl.BlockSpec((Kp, Cp), lambda r: (0, 0))],        # resident weights
            out_specs=(pl.BlockSpec((ROW_BLK, Cp), lambda r: (r, 0)),
                       pl.BlockSpec((None, 2, Cp), lambda r: (r, 0, 0))),
            compiler_params=pltpu.CompilerParams(
                dimension_semantics=("parallel",), vmem_limit_bytes=VMEM_LIMIT),
            cost_estimate=pl.CostEstimate(
                flops=2 * M * Kp * Cp, transcendentals=0,
                bytes_accessed=M * Kp * 2 + Kp * Cp * 2 + M * Cp * 2 + NRB * 2 * Cp * 4),
        )(panel, w3)
    else:
        # ---- pass 1 general path: per-image halo'd shifted matmuls ----
        # TODO(synk): row-band + 2-row-halo tiling for very large H*W (v7x 64 MiB VMEM).
        xp = jnp.pad(x_nhwc, ((0, 0), (1, 1), (1, 1), (0, Cp - C))).astype(jnp.bfloat16)
        w3 = jnp.transpose(w3x3, (2, 3, 1, 0)).reshape(9, C, C)
        w3 = jnp.pad(w3, ((0, 0), (0, Cp - C), (0, Cp - C))).astype(jnp.bfloat16)

        y1, s1p = pl.pallas_call(
            functools.partial(_conv3x3_halo_kernel, H=H, W=W, Cp=Cp),
            out_shape=(jax.ShapeDtypeStruct((N, HW, Cp), jnp.bfloat16),
                       jax.ShapeDtypeStruct((N, 2, Cp), jnp.float32)),
            grid=(N,),
            in_specs=[pl.BlockSpec((None, H + 2, W + 2, Cp), lambda n: (n, 0, 0, 0)),
                      pl.BlockSpec((9, Cp, Cp), lambda n: (0, 0, 0))],  # resident weights
            out_specs=(pl.BlockSpec((None, HW, Cp), lambda n: (n, 0, 0)),
                       pl.BlockSpec((None, 2, Cp), lambda n: (n, 0, 0))),
            compiler_params=pltpu.CompilerParams(
                dimension_semantics=("parallel",), vmem_limit_bytes=VMEM_LIMIT),
            cost_estimate=pl.CostEstimate(
                flops=2 * M * Cp * Cp * 9, transcendentals=0,
                bytes_accessed=xp.size * 2 + w3.size * 2 + M * Cp * 2 + N * 2 * Cp * 4),
        )(xp, w3)
        y1 = y1.reshape(M, Cp)                 # free contiguous reshape

    s1 = jnp.sum(s1p, axis=0)                  # tiny (2, Cp) wrapper reduction

    # ---- pass 2: stats of y3 = relu(BN(y1)) @ W1 (no y3 HBM write) ----
    s3p = pl.pallas_call(
        functools.partial(_bn_conv1x1_stats_kernel, m_total=M, row_blk=ROW_BLK),
        out_shape=jax.ShapeDtypeStruct((NRB, 2, Cp), jnp.float32),
        grid=(NRB,),
        in_specs=[pl.BlockSpec((ROW_BLK, Cp), lambda r: (r, 0)),
                  pl.BlockSpec((2, Cp), lambda r: (0, 0)),
                  pl.BlockSpec((Cp, Cp), lambda r: (0, 0))],            # resident weights
        out_specs=pl.BlockSpec((None, 2, Cp), lambda r: (r, 0, 0)),
        compiler_params=pltpu.CompilerParams(
            dimension_semantics=("parallel",), vmem_limit_bytes=VMEM_LIMIT),
        cost_estimate=pl.CostEstimate(
            flops=2 * M * Cp * Cp + 8 * M * Cp, transcendentals=Cp,
            bytes_accessed=M * Cp * 2 + Cp * Cp * 2 + (NRB + 1) * 2 * Cp * 4),
    )(y1, s1, w1)
    s3 = jnp.sum(s3p, axis=0)

    # ---- pass 3: recompute y3 per tile, BN both branches, residual add ----
    out = pl.pallas_call(
        functools.partial(_finalize_kernel, m_total=M),
        out_shape=jax.ShapeDtypeStruct((M, Cp), jnp.float32),
        grid=(NRB,),
        in_specs=[pl.BlockSpec((ROW_BLK, Cp), lambda r: (r, 0)),
                  pl.BlockSpec((2, Cp), lambda r: (0, 0)),
                  pl.BlockSpec((2, Cp), lambda r: (0, 0)),
                  pl.BlockSpec((Cp, Cp), lambda r: (0, 0))],
        out_specs=pl.BlockSpec((ROW_BLK, Cp), lambda r: (r, 0)),
        compiler_params=pltpu.CompilerParams(
            dimension_semantics=("parallel",), vmem_limit_bytes=VMEM_LIMIT),
        cost_estimate=pl.CostEstimate(
            flops=2 * M * Cp * Cp + 12 * M * Cp, transcendentals=2 * Cp,
            bytes_accessed=M * Cp * 2 + M * Cp * 4 + Cp * Cp * 2 + 4 * Cp * 4),
    )(y1, s1, s3, w1)

    out = out[:, :C].reshape(N, H, W, C)
    return jnp.transpose(out, (0, 3, 1, 2))


# ------------------------------ reference ---------------------------------- #
# Pure-JAX mirror of the PyTorch ReLU-Conv-BN semantics with the kernel's
# numerics modeled: bf16 MXU operands, bf16 HBM storage of the y1 intermediate
# (BN stats from the unrounded f32 conv result), everything else f32.
# Exact-f32 PyTorch output differs from this by bounded bf16 rounding only.

def _ref_relu_conv_bf16(x_nhwc, w_torch, k):
    N, H, W, C = x_nhwc.shape
    xr = jnp.maximum(x_nhwc, 0.0)
    if k == 3:
        xr = jnp.pad(xr, ((0, 0), (1, 1), (1, 1), (0, 0)))
    cols = [xr[:, dy:dy + H, dx:dx + W, :] for dy in range(k) for dx in range(k)]
    p = jnp.concatenate(cols, axis=-1).reshape(N * H * W, k * k * C)
    wmat = jnp.transpose(w_torch, (2, 3, 1, 0)).reshape(k * k * C, -1)
    return jnp.dot(p.astype(jnp.bfloat16), wmat.astype(jnp.bfloat16),
                   preferred_element_type=jnp.float32)


def _ref_forward(x_nchw, w3x3, w1x1):
    N, C, H, W = x_nchw.shape
    x_nhwc = jnp.transpose(x_nchw, (0, 2, 3, 1))

    y1 = _ref_relu_conv_bf16(x_nhwc, w3x3, 3)                     # (M, C) f32
    m1 = jnp.mean(y1, axis=0, keepdims=True)
    v1 = jnp.mean((y1 - m1) ** 2, axis=0, keepdims=True)
    y1s = y1.astype(jnp.bfloat16).astype(jnp.float32)             # bf16 storage of y1
    out1 = (y1s - m1) * jax.lax.rsqrt(v1 + EPS)

    x1 = jnp.maximum(out1, 0.0).astype(jnp.bfloat16)
    w1m = jnp.transpose(w1x1[:, :, 0, 0], (1, 0)).astype(jnp.bfloat16)
    y3 = jnp.dot(x1, w1m, preferred_element_type=jnp.float32)
    m3 = jnp.mean(y3, axis=0, keepdims=True)
    v3 = jnp.mean((y3 - m3) ** 2, axis=0, keepdims=True)
    out3 = (y3 - m3) * jax.lax.rsqrt(v3 + EPS)

    out = (out1 + out3).reshape(N, H, W, C)
    return jnp.transpose(out, (0, 3, 1, 2))


# --------------------------------- main ------------------------------------ #

if __name__ == "__main__":
    N, C, H, W = 2, 4, 16, 16
    key = jax.random.PRNGKey(0)
    kx, kw3, kw1 = jax.random.split(key, 3)

    x = jax.random.normal(kx, (N, C, H, W), dtype=jnp.float32)

    # Deterministic conv weights in PyTorch layout (Cout, Cin, kh, kw).
    b3 = 1.0 / ((C * 9) ** 0.5)
    w3x3 = jax.random.uniform(kw3, (C, C, 3, 3), minval=-b3, maxval=b3,
                              dtype=jnp.float32)
    b1 = 1.0 / (C ** 0.5)
    w1x1 = jax.random.uniform(kw1, (C, C, 1, 1), minval=-b1, maxval=b1,
                              dtype=jnp.float32)

    fwd = jax.jit(cell_fcdag_forward)
    out = jax.block_until_ready(fwd(x, w3x3, w1x1))

    ref = jax.block_until_ready(_ref_forward(x, w3x3, w1x1))
    assert out.shape == (N, C, H, W)
    max_err = float(jnp.max(jnp.abs(out - ref)))
    # Residual vs the numerics-matched reference is accumulation-order only;
    # 1e-2 catches any structural / layout / stats bug.
    assert max_err < 1e-2, f"mismatch vs JAX reference: max abs err {max_err}"

    print("KERNEL_OK")
</pallas_src>

<mosaic_0001>
module attributes {stable_mosaic.version = 11 : i64} {
  func.func @_conv3x3_folded_kernel(%arg0: i32, %arg1: memref<512x128xbf16, #tpu.memory_space<vmem>>, %arg2: memref<128x128xbf16, #tpu.memory_space<vmem>>, %arg3: memref<512x128xbf16, #tpu.memory_space<vmem>>, %arg4: memref<1x2x128xf32, #tpu.memory_space<vmem>>) attributes {dimension_semantics = [#tpu.dimension_semantics<parallel>], iteration_bounds = array<i64: 1>, scalar_prefetch = 0 : i64, scratch_operands = 0 : i64, tpu.core_type = #tpu.core_type<tc>, window_params = [{transform_indices = @transform_0, window_bounds = array<i64: 512, 128>}, {pipeline_mode = #tpu.pipeline_mode<synchronous>, transform_indices = @transform_1, window_bounds = array<i64: 128, 128>}, {transform_indices = @transform_2, window_bounds = array<i64: 512, 128>}, {transform_indices = @transform_3, window_bounds = array<i64: 1, 2, 128>}]} {
    %c0 = arith.constant 0 : index
    %c0_0 = arith.constant 0 : index
    %0 = vector.load %arg1[%c0, %c0_0] : memref<512x128xbf16, #tpu.memory_space<vmem>>, vector<512x128xbf16>
    %cst = arith.constant 0.000000e+00 : bf16
    %1 = vector.broadcast %cst : bf16 to vector<512x128xbf16>
    %2 = arith.maximumf %0, %1 : vector<512x128xbf16>
    %c0_1 = arith.constant 0 : index
    %c0_2 = arith.constant 0 : index
    %3 = vector.load %arg2[%c0_1, %c0_2] : memref<128x128xbf16, #tpu.memory_space<vmem>>, vector<128x128xbf16>
    %cst_3 = arith.constant dense<0.000000e+00> : vector<512x128xf32>
    %4 = tpu.matmul %2, %3, %cst_3 {dimension_numbers = #tpu.dot_dimension_numbers<[1], [0], [0], [1], [0, 0, 1, 1], [], []>} : vector<512x128xbf16>, vector<128x128xbf16>, vector<512x128xf32> -> vector<512x128xf32>
    %5 = arith.truncf %4 : vector<512x128xf32> to vector<512x128xbf16>
    %c0_4 = arith.constant 0 : index
    %c0_5 = arith.constant 0 : index
    %6 = vector.load %arg3[%c0_4, %c0_5] : memref<512x128xbf16, #tpu.memory_space<vmem>>, vector<512x128xbf16>
    tpu.vector_store %arg3[%c0_4, %c0_5], %5 {strides = array<i32>} : memref<512x128xbf16, #tpu.memory_space<vmem>>, vector<512x128xbf16>,
    %cst_6 = arith.constant dense<0.000000e+00> : vector<128xf32>
    %7 = vector.multi_reduction <add>, %4, %cst_6 [0] : vector<512x128xf32> to vector<128xf32>
    %8 = vector.shape_cast %7 : vector<128xf32> to vector<1x128xf32>
    %c0_7 = arith.constant 0 : index
    %c0_8 = arith.constant 0 : index
    %c0_9 = arith.constant 0 : index
    %9 = vector.load %arg4[%c0_7, %c0_8, %c0_9] : memref<1x2x128xf32, #tpu.memory_space<vmem>>, vector<1x1x128xf32>
    %10 = vector.shape_cast %9 : vector<1x1x128xf32> to vector<1x128xf32>
    %11 = vector.shape_cast %8 : vector<1x128xf32> to vector<1x1x128xf32>
    tpu.vector_store %arg4[%c0_7, %c0_8, %c0_9], %11 {strides = array<i32>} : memref<1x2x128xf32, #tpu.memory_space<vmem>>, vector<1x1x128xf32>,
    %12 = arith.mulf %4, %4 : vector<512x128xf32>
    %cst_10 = arith.constant dense<0.000000e+00> : vector<128xf32>
    %13 = vector.multi_reduction <add>, %12, %cst_10 [0] : vector<512x128xf32> to vector<128xf32>
    %14 = vector.shape_cast %13 : vector<128xf32> to vector<1x128xf32>
    %c0_11 = arith.constant 0 : index
    %c1 = arith.constant 1 : index
    %c0_12 = arith.constant 0 : index
    %15 = vector.load %arg4[%c0_11, %c1, %c0_12] : memref<1x2x128xf32, #tpu.memory_space<vmem>>, vector<1x1x128xf32>
    %16 = vector.shape_cast %15 : vector<1x1x128xf32> to vector<1x128xf32>
    %17 = vector.shape_cast %14 : vector<1x128xf32> to vector<1x1x128xf32>
    tpu.vector_store %arg4[%c0_11, %c1, %c0_12], %17 {strides = array<i32>} : memref<1x2x128xf32, #tpu.memory_space<vmem>>, vector<1x1x128xf32>,
    return
  }
  func.func @transform_0(%arg0: i32) -> (i32, i32) {
    %c0_i32 = arith.constant 0 : i32
    %c0_i32_0 = arith.constant 0 : i32
    return %arg0, %c0_i32 : i32, i32
  }
  func.func @transform_1(%arg0: i32) -> (i32, i32) {
    %c0_i32 = arith.constant 0 : i32
    %c0_i32_0 = arith.constant 0 : i32
    %c0_i32_1 = arith.constant 0 : i32
    return %c0_i32, %c0_i32_0 : i32, i32
  }
  func.func @transform_2(%arg0: i32) -> (i32, i32) {
    %c0_i32 = arith.constant 0 : i32
    %c0_i32_0 = arith.constant 0 : i32
    return %arg0, %c0_i32 : i32, i32
  }
  func.func @transform_3(%arg0: i32) -> (i32, i32, i32) {
    %c0_i32 = arith.constant 0 : i32
    %c0_i32_0 = arith.constant 0 : i32
    %c0_i32_1 = arith.constant 0 : i32
    return %arg0, %c0_i32, %c0_i32_0 : i32, i32, i32
  }
}

module attributes {stable_mosaic.version = 11 : i64} {
  func.func @_bn_conv1x1_stats_kernel(%arg0: i32, %arg1: memref<512x128xbf16, #tpu.memory_space<vmem>>, %arg2: memref<2x128xf32, #tpu.memory_space<vmem>>, %arg3: memref<128x128xbf16, #tpu.memory_space<vmem>>, %arg4: memref<1x2x128xf32, #tpu.memory_space<vmem>>) attributes {dimension_semantics = [#tpu.dimension_semantics<parallel>], iteration_bounds = array<i64: 1>, scalar_prefetch = 0 : i64, scratch_operands = 0 : i64, tpu.core_type = #tpu.core_type<tc>, window_params = [{transform_indices = @transform_0, window_bounds = array<i64: 512, 128>}, {pipeline_mode = #tpu.pipeline_mode<synchronous>, transform_indices = @transform_1, window_bounds = array<i64: 2, 128>}, {pipeline_mode = #tpu.pipeline_mode<synchronous>, transform_indices = @transform_2, window_bounds = array<i64: 128, 128>}, {transform_indices = @transform_3, window_bounds = array<i64: 1, 2, 128>}]} {
    %c0 = arith.constant 0 : index
    %c0_0 = arith.constant 0 : index
    %0 = vector.load %arg2[%c0, %c0_0] : memref<2x128xf32, #tpu.memory_space<vmem>>, vector<2x128xf32>
    %1 = vector.extract_strided_slice %0 {offsets = [0, 0], sizes = [1, 128], strides = [1, 1]} : vector<2x128xf32> to vector<1x128xf32>
    %cst = arith.constant 0.001953125 : f32
    %2 = vector.broadcast %cst : f32 to vector<1x128xf32>
    %3 = arith.mulf %1, %2 : vector<1x128xf32>
    %4 = vector.extract_strided_slice %0 {offsets = [1, 0], sizes = [1, 128], strides = [1, 1]} : vector<2x128xf32> to vector<1x128xf32>
    %cst_1 = arith.constant 0.001953125 : f32
    %5 = vector.broadcast %cst_1 : f32 to vector<1x128xf32>
    %6 = arith.mulf %4, %5 : vector<1x128xf32>
    %7 = arith.mulf %3, %3 : vector<1x128xf32>
    %8 = arith.subf %6, %7 : vector<1x128xf32>
    %cst_2 = arith.constant 0.000000e+00 : f32
    %9 = vector.broadcast %cst_2 : f32 to vector<1x128xf32>
    %10 = arith.maximumf %8, %9 : vector<1x128xf32>
    %c0_3 = arith.constant 0 : index
    %c0_4 = arith.constant 0 : index
    %11 = vector.load %arg1[%c0_3, %c0_4] : memref<512x128xbf16, #tpu.memory_space<vmem>>, vector<512x128xbf16>
    %12 = arith.extf %11 : vector<512x128xbf16> to vector<512x128xf32>
    %13 = vector.broadcast %3 : vector<1x128xf32> to vector<512x128xf32>
    %14 = arith.subf %12, %13 : vector<512x128xf32>
    %cst_5 = arith.constant 9.99999974E-6 : f32
    %15 = vector.broadcast %cst_5 : f32 to vector<1x128xf32>
    %16 = arith.addf %10, %15 : vector<1x128xf32>
    %17 = math.rsqrt %16 : vector<1x128xf32>
    %18 = vector.broadcast %17 : vector<1x128xf32> to vector<512x128xf32>
    %19 = arith.mulf %14, %18 : vector<512x128xf32>
    %cst_6 = arith.constant 0.000000e+00 : f32
    %20 = vector.broadcast %cst_6 : f32 to vector<512x128xf32>
    %21 = arith.maximumf %19, %20 : vector<512x128xf32>
    %22 = arith.truncf %21 : vector<512x128xf32> to vector<512x128xbf16>
    %c0_7 = arith.constant 0 : index
    %c0_8 = arith.constant 0 : index
    %23 = vector.load %arg3[%c0_7, %c0_8] : memref<128x128xbf16, #tpu.memory_space<vmem>>, vector<128x128xbf16>
    %cst_9 = arith.constant dense<0.000000e+00> : vector<512x128xf32>
    %24 = tpu.matmul %22, %23, %cst_9 {dimension_numbers = #tpu.dot_dimension_numbers<[1], [0], [0], [1], [0, 0, 1, 1], [], []>} : vector<512x128xbf16>, vector<128x128xbf16>, vector<512x128xf32> -> vector<512x128xf32>
    %cst_10 = arith.constant dense<0.000000e+00> : vector<128xf32>
    %25 = vector.multi_reduction <add>, %24, %cst_10 [0] : vector<512x128xf32> to vector<128xf32>
    %26 = vector.shape_cast %25 : vector<128xf32> to vector<1x128xf32>
    %c0_11 = arith.constant 0 : index
    %c0_12 = arith.constant 0 : index
    %c0_13 = arith.constant 0 : index
    %27 = vector.load %arg4[%c0_11, %c0_12, %c0_13] : memref<1x2x128xf32, #tpu.memory_space<vmem>>, vector<1x1x128xf32>
    %28 = vector.shape_cast %27 : vector<1x1x128xf32> to vector<1x128xf32>
    %29 = vector.shape_cast %26 : vector<1x128xf32> to vector<1x1x128xf32>
    tpu.vector_store %arg4[%c0_11, %c0_12, %c0_13], %29 {strides = array<i32>} : memref<1x2x128xf32, #tpu.memory_space<vmem>>, vector<1x1x128xf32>,
    %30 = arith.mulf %24, %24 : vector<512x128xf32>
    %cst_14 = arith.constant dense<0.000000e+00> : vector<128xf32>
    %31 = vector.multi_reduction <add>, %30, %cst_14 [0] : vector<512x128xf32> to vector<128xf32>
    %32 = vector.shape_cast %31 : vector<128xf32> to vector<1x128xf32>
    %c0_15 = arith.constant 0 : index
    %c1 = arith.constant 1 : index
    %c0_16 = arith.constant 0 : index
    %33 = vector.load %arg4[%c0_15, %c1, %c0_16] : memref<1x2x128xf32, #tpu.memory_space<vmem>>, vector<1x1x128xf32>
    %34 = vector.shape_cast %33 : vector<1x1x128xf32> to vector<1x128xf32>
    %35 = vector.shape_cast %32 : vector<1x128xf32> to vector<1x1x128xf32>
    tpu.vector_store %arg4[%c0_15, %c1, %c0_16], %35 {strides = array<i32>} : memref<1x2x128xf32, #tpu.memory_space<vmem>>, vector<1x1x128xf32>,
    return
  }
  func.func @transform_0(%arg0: i32) -> (i32, i32) {
    %c0_i32 = arith.constant 0 : i32
    %c0_i32_0 = arith.constant 0 : i32
    return %arg0, %c0_i32 : i32, i32
  }
  func.func @transform_1(%arg0: i32) -> (i32, i32) {
    %c0_i32 = arith.constant 0 : i32
    %c0_i32_0 = arith.constant 0 : i32
    %c0_i32_1 = arith.constant 0 : i32
    return %c0_i32, %c0_i32_0 : i32, i32
  }
  func.func @transform_2(%arg0: i32) -> (i32, i32) {
    %c0_i32 = arith.constant 0 : i32
    %c0_i32_0 = arith.constant 0 : i32
    %c0_i32_1 = arith.constant 0 : i32
    return %c0_i32, %c0_i32_0 : i32, i32
  }
  func.func @transform_3(%arg0: i32) -> (i32, i32, i32) {
    %c0_i32 = arith.constant 0 : i32
    %c0_i32_0 = arith.constant 0 : i32
    %c0_i32_1 = arith.constant 0 : i32
    return %arg0, %c0_i32, %c0_i32_0 : i32, i32, i32
  }
}

module attributes {stable_mosaic.version = 11 : i64} {
  func.func @_finalize_kernel(%arg0: i32, %arg1: memref<512x128xbf16, #tpu.memory_space<vmem>>, %arg2: memref<2x128xf32, #tpu.memory_space<vmem>>, %arg3: memref<2x128xf32, #tpu.memory_space<vmem>>, %arg4: memref<128x128xbf16, #tpu.memory_space<vmem>>, %arg5: memref<512x128xf32, #tpu.memory_space<vmem>>) attributes {dimension_semantics = [#tpu.dimension_semantics<parallel>], iteration_bounds = array<i64: 1>, scalar_prefetch = 0 : i64, scratch_operands = 0 : i64, tpu.core_type = #tpu.core_type<tc>, window_params = [{transform_indices = @transform_0, window_bounds = array<i64: 512, 128>}, {pipeline_mode = #tpu.pipeline_mode<synchronous>, transform_indices = @transform_1, window_bounds = array<i64: 2, 128>}, {pipeline_mode = #tpu.pipeline_mode<synchronous>, transform_indices = @transform_2, window_bounds = array<i64: 2, 128>}, {pipeline_mode = #tpu.pipeline_mode<synchronous>, transform_indices = @transform_3, window_bounds = array<i64: 128, 128>}, {transform_indices = @transform_4, window_bounds = array<i64: 512, 128>}]} {
    %c0 = arith.constant 0 : index
    %c0_0 = arith.constant 0 : index
    %0 = vector.load %arg2[%c0, %c0_0] : memref<2x128xf32, #tpu.memory_space<vmem>>, vector<2x128xf32>
    %1 = vector.extract_strided_slice %0 {offsets = [0, 0], sizes = [1, 128], strides = [1, 1]} : vector<2x128xf32> to vector<1x128xf32>
    %cst = arith.constant 0.001953125 : f32
    %2 = vector.broadcast %cst : f32 to vector<1x128xf32>
    %3 = arith.mulf %1, %2 : vector<1x128xf32>
    %4 = vector.extract_strided_slice %0 {offsets = [1, 0], sizes = [1, 128], strides = [1, 1]} : vector<2x128xf32> to vector<1x128xf32>
    %cst_1 = arith.constant 0.001953125 : f32
    %5 = vector.broadcast %cst_1 : f32 to vector<1x128xf32>
    %6 = arith.mulf %4, %5 : vector<1x128xf32>
    %7 = arith.mulf %3, %3 : vector<1x128xf32>
    %8 = arith.subf %6, %7 : vector<1x128xf32>
    %cst_2 = arith.constant 0.000000e+00 : f32
    %9 = vector.broadcast %cst_2 : f32 to vector<1x128xf32>
    %10 = arith.maximumf %8, %9 : vector<1x128xf32>
    %cst_3 = arith.constant 9.99999974E-6 : f32
    %11 = vector.broadcast %cst_3 : f32 to vector<1x128xf32>
    %12 = arith.addf %10, %11 : vector<1x128xf32>
    %13 = math.rsqrt %12 : vector<1x128xf32>
    %c0_4 = arith.constant 0 : index
    %c0_5 = arith.constant 0 : index
    %14 = vector.load %arg3[%c0_4, %c0_5] : memref<2x128xf32, #tpu.memory_space<vmem>>, vector<2x128xf32>
    %15 = vector.extract_strided_slice %14 {offsets = [0, 0], sizes = [1, 128], strides = [1, 1]} : vector<2x128xf32> to vector<1x128xf32>
    %cst_6 = arith.constant 0.001953125 : f32
    %16 = vector.broadcast %cst_6 : f32 to vector<1x128xf32>
    %17 = arith.mulf %15, %16 : vector<1x128xf32>
    %18 = vector.extract_strided_slice %14 {offsets = [1, 0], sizes = [1, 128], strides = [1, 1]} : vector<2x128xf32> to vector<1x128xf32>
    %cst_7 = arith.constant 0.001953125 : f32
    %19 = vector.broadcast %cst_7 : f32 to vector<1x128xf32>
    %20 = arith.mulf %18, %19 : vector<1x128xf32>
    %21 = arith.mulf %17, %17 : vector<1x128xf32>
    %22 = arith.subf %20, %21 : vector<1x128xf32>
    %cst_8 = arith.constant 0.000000e+00 : f32
    %23 = vector.broadcast %cst_8 : f32 to vector<1x128xf32>
    %24 = arith.maximumf %22, %23 : vector<1x128xf32>
    %cst_9 = arith.constant 9.99999974E-6 : f32
    %25 = vector.broadcast %cst_9 : f32 to vector<1x128xf32>
    %26 = arith.addf %24, %25 : vector<1x128xf32>
    %27 = math.rsqrt %26 : vector<1x128xf32>
    %c0_10 = arith.constant 0 : index
    %c0_11 = arith.constant 0 : index
    %28 = vector.load %arg1[%c0_10, %c0_11] : memref<512x128xbf16, #tpu.memory_space<vmem>>, vector<512x128xbf16>
    %29 = arith.extf %28 : vector<512x128xbf16> to vector<512x128xf32>
    %30 = vector.broadcast %3 : vector<1x128xf32> to vector<512x128xf32>
    %31 = arith.subf %29, %30 : vector<512x128xf32>
    %32 = vector.broadcast %13 : vector<1x128xf32> to vector<512x128xf32>
    %33 = arith.mulf %31, %32 : vector<512x128xf32>
    %cst_12 = arith.constant 0.000000e+00 : f32
    %34 = vector.broadcast %cst_12 : f32 to vector<512x128xf32>
    %35 = arith.maximumf %33, %34 : vector<512x128xf32>
    %36 = arith.truncf %35 : vector<512x128xf32> to vector<512x128xbf16>
    %c0_13 = arith.constant 0 : index
    %c0_14 = arith.constant 0 : index
    %37 = vector.load %arg4[%c0_13, %c0_14] : memref<128x128xbf16, #tpu.memory_space<vmem>>, vector<128x128xbf16>
    %cst_15 = arith.constant dense<0.000000e+00> : vector<512x128xf32>
    %38 = tpu.matmul %36, %37, %cst_15 {dimension_numbers = #tpu.dot_dimension_numbers<[1], [0], [0], [1], [0, 0, 1, 1], [], []>} : vector<512x128xbf16>, vector<128x128xbf16>, vector<512x128xf32> -> vector<512x128xf32>
    %39 = vector.broadcast %17 : vector<1x128xf32> to vector<512x128xf32>
    %40 = arith.subf %38, %39 : vector<512x128xf32>
    %41 = vector.broadcast %27 : vector<1x128xf32> to vector<512x128xf32>
    %42 = arith.mulf %40, %41 : vector<512x128xf32>
    %43 = arith.addf %33, %42 : vector<512x128xf32>
    %c0_16 = arith.constant 0 : index
    %c0_17 = arith.constant 0 : index
    %44 = vector.load %arg5[%c0_16, %c0_17] : memref<512x128xf32, #tpu.memory_space<vmem>>, vector<512x128xf32>
    tpu.vector_store %arg5[%c0_16, %c0_17], %43 {strides = array<i32>} : memref<512x128xf32, #tpu.memory_space<vmem>>, vector<512x128xf32>,
    return
  }
  func.func @transform_0(%arg0: i32) -> (i32, i32) {
    %c0_i32 = arith.constant 0 : i32
    %c0_i32_0 = arith.constant 0 : i32
    return %arg0, %c0_i32 : i32, i32
  }
  func.func @transform_1(%arg0: i32) -> (i32, i32) {
    %c0_i32 = arith.constant 0 : i32
    %c0_i32_0 = arith.constant 0 : i32
    %c0_i32_1 = arith.constant 0 : i32
    return %c0_i32, %c0_i32_0 : i32, i32
  }
  func.func @transform_2(%arg0: i32) -> (i32, i32) {
    %c0_i32 = arith.constant 0 : i32
    %c0_i32_0 = arith.constant 0 : i32
    %c0_i32_1 = arith.constant 0 : i32
    return %c0_i32, %c0_i32_0 : i32, i32
  }
  func.func @transform_3(%arg0: i32) -> (i32, i32) {
    %c0_i32 = arith.constant 0 : i32
    %c0_i32_0 = arith.constant 0 : i32
    %c0_i32_1 = arith.constant 0 : i32
    return %c0_i32, %c0_i32_0 : i32, i32
  }
  func.func @transform_4(%arg0: i32) -> (i32, i32) {
    %c0_i32 = arith.constant 0 : i32
    %c0_i32_0 = arith.constant 0 : i32
    return %arg0, %c0_i32 : i32, i32
  }
}

</mosaic_0001>

<llo_original>
// kernel: cell_fcdag_forward.4
$region0: #{cell_fcdag_forward.4}
  #allocation0 [shape = 'u32[]', space=smem, size = 0x4, offset = 0x4, fixed_abs, tag = 'smem constant byte address 0x4 - core index']
  #allocation1 [shape = 'u32[144,128]{1,0:T(1,128)}', space=vmem, size = 0x12000, scoped, tag = 'internal scratch']
  %s0 = inlined_call_operand.vmem [shape: bf16[512,128], index: 0, kind: input, shape index: {}]
  %s1 = inlined_call_operand.vmem [shape: f32[2,128], index: 1, kind: input, shape index: {}]
  %s2 = inlined_call_operand.vmem [shape: bf16[128,128], index: 2, kind: input, shape index: {}]
  %s3 = inlined_call_operand.vmem [shape: f32[1,2,128], index: 3, kind: output, shape index: {}]
  %s4 = sld [smem:[#allocation0]]
  $region22: #{cell_fcdag_forward.4} parent=0
    _
  %s6 = ssub.s32 1, %s4
  %s7 = scalar_select 0, %s6, %s4
  // Predicated region
  $region2: #{cell_fcdag_forward.4} parent=0 // pred_check
    _
  $region3: #{cell_fcdag_forward.4} parent=0 // pred_check_branch
    %9 = sbr.rel (0) target = $region5
  $region4: #{cell_fcdag_forward.4} parent=0 // pred_region
    _
  $region5: #{cell_fcdag_forward.4} parent=0 // pred_fallthru
    _
  // Predicated region
  $region6: #{cell_fcdag_forward.4} parent=0 // pred_check
    _
  $region7: #{cell_fcdag_forward.4} parent=0 // pred_check_branch
    %11 = sbr.rel (0) target = $region9
  $region8: #{cell_fcdag_forward.4} parent=0 // pred_region
    _
  $region9: #{cell_fcdag_forward.4} parent=0 // pred_fallthru
    _
  // Predicated region
  $region10: #{cell_fcdag_forward.4} parent=0 // pred_check
    _
  $region11: #{cell_fcdag_forward.4} parent=0 // pred_check_branch
    %13 = sbr.rel (0) target = $region13
  $region12: #{cell_fcdag_forward.4} parent=0 // pred_region
    _
  $region13: #{cell_fcdag_forward.4} parent=0 // pred_fallthru
    _
  %v15 = vld [vmem:[%s1] sm:$0x3]
  %v16 = vmul.f32 %v15, 0.001953125
  %v17 = vmul.f32 %v16, %v16
  %v19 = vrot.slane %v17, 7
  %v21 = vsub.f32 %v16, %v19
  %v22 = vmax.f32 %v21, 0.0
  %v23 = vld [vmem:[%s0] sm:$0xf]
  %v24 = vld [vmem:[%s0 + $0x4] sm:$0xf]
  %v25 = vld [vmem:[%s0 + $0x8] sm:$0xf]
  %v26 = vld [vmem:[%s0 + $0xc] sm:$0xf]
  %v27 = vld [vmem:[%s0 + $0x10] sm:$0xf]
  %v28 = vld [vmem:[%s0 + $0x14] sm:$0xf]
  %v29 = vld [vmem:[%s0 + $0x18] sm:$0xf]
  %v30 = vld [vmem:[%s0 + $0x1c] sm:$0xf]
  %v31 = vld [vmem:[%s0 + $0x20] sm:$0xf]
  %v32 = vld [vmem:[%s0 + $0x24] sm:$0xf]
  %v33 = vld [vmem:[%s0 + $0x28] sm:$0xf]
  %v34 = vld [vmem:[%s0 + $0x2c] sm:$0xf]
  %v35 = vld [vmem:[%s0 + $0x30] sm:$0xf]
  %v36 = vld [vmem:[%s0 + $0x34] sm:$0xf]
  %v37 = vld [vmem:[%s0 + $0x38] sm:$0xf]
  %v38 = vld [vmem:[%s0 + $0x3c] sm:$0xf]
  %v39 = vld [vmem:[%s0 + $0x40] sm:$0xf]
  %v40 = vld [vmem:[%s0 + $0x44] sm:$0xf]
  %v41 = vld [vmem:[%s0 + $0x48] sm:$0xf]
  %v42 = vld [vmem:[%s0 + $0x4c] sm:$0xf]
  %v43 = vld [vmem:[%s0 + $0x50] sm:$0xf]
  %v44 = vld [vmem:[%s0 + $0x54] sm:$0xf]
  %v45 = vld [vmem:[%s0 + $0x58] sm:$0xf]
  %v46 = vld [vmem:[%s0 + $0x5c] sm:$0xf]
  %v47 = vld [vmem:[%s0 + $0x60] sm:$0xf]
  %v48 = vld [vmem:[%s0 + $0x64] sm:$0xf]
  %v49 = vld [vmem:[%s0 + $0x68] sm:$0xf]
  %v50 = vld [vmem:[%s0 + $0x6c] sm:$0xf]
  %v51 = vld [vmem:[%s0 + $0x70] sm:$0xf]
  %v52 = vld [vmem:[%s0 + $0x74] sm:$0xf]
  %v53 = vld [vmem:[%s0 + $0x78] sm:$0xf]
  %v54 = vld [vmem:[%s0 + $0x7c] sm:$0xf]
  %v55 = vld [vmem:[%s0 + $0x80] sm:$0xf]
  %v56 = vld [vmem:[%s0 + $0x84] sm:$0xf]
  %v57 = vld [vmem:[%s0 + $0x88] sm:$0xf]
  %v58 = vld [vmem:[%s0 + $0x8c] sm:$0xf]
  %v59 = vld [vmem:[%s0 + $0x90] sm:$0xf]
  %v60 = vld [vmem:[%s0 + $0x94] sm:$0xf]
  %v61 = vld [vmem:[%s0 + $0x98] sm:$0xf]
  %v62 = vld [vmem:[%s0 + $0x9c] sm:$0xf]
  %v63 = vld [vmem:[%s0 + $0xa0] sm:$0xf]
  %v64 = vld [vmem:[%s0 + $0xa4] sm:$0xf]
  %v65 = vld [vmem:[%s0 + $0xa8] sm:$0xf]
  %v66 = vld [vmem:[%s0 + $0xac] sm:$0xf]
  %v67 = vld [vmem:[%s0 + $0xb0] sm:$0xf]
  %v68 = vld [vmem:[%s0 + $0xb4] sm:$0xf]
  %v69 = vld [vmem:[%s0 + $0xb8] sm:$0xf]
  %v70 = vld [vmem:[%s0 + $0xbc] sm:$0xf]
  %v71 = vld [vmem:[%s0 + $0xc0] sm:$0xf]
  %v72 = vld [vmem:[%s0 + $0xc4] sm:$0xf]
  %v73 = vld [vmem:[%s0 + $0xc8] sm:$0xf]
  %v74 = vld [vmem:[%s0 + $0xcc] sm:$0xf]
  %v75 = vld [vmem:[%s0 + $0xd0] sm:$0xf]
  %v76 = vld [vmem:[%s0 + $0xd4] sm:$0xf]
  %v77 = vld [vmem:[%s0 + $0xd8] sm:$0xf]
  %v78 = vld [vmem:[%s0 + $0xdc] sm:$0xf]
  %v79 = vld [vmem:[%s0 + $0xe0] sm:$0xf]
  %v80 = vld [vmem:[%s0 + $0xe4] sm:$0xf]
  %v81 = vld [vmem:[%s0 + $0xe8] sm:$0xf]
  %v82 = vld [vmem:[%s0 + $0xec] sm:$0xf]
  %v83 = vld [vmem:[%s0 + $0xf0] sm:$0xf]
  %v84 = vld [vmem:[%s0 + $0xf4] sm:$0xf]
  %v85 = vld [vmem:[%s0 + $0xf8] sm:$0xf]
  %v86 = vld [vmem:[%s0 + $0xfc] sm:$0xf]
  %v87 = vunpack.c.l.bf16 %v23
  %v88 = vunpack.c.l.bf16 %v24
  %v89 = vunpack.c.l.bf16 %v25
  %v90 = vunpack.c.l.bf16 %v26
  %v91 = vunpack.c.l.bf16 %v27
  %v92 = vunpack.c.l.bf16 %v28
  %v93 = vunpack.c.l.bf16 %v29
  %v94 = vunpack.c.l.bf16 %v30
  %v95 = vunpack.c.l.bf16 %v31
  %v96 = vunpack.c.l.bf16 %v32
  %v97 = vunpack.c.l.bf16 %v33
  %v98 = vunpack.c.l.bf16 %v34
  %v99 = vunpack.c.l.bf16 %v35
  %v100 = vunpack.c.l.bf16 %v36
  %v101 = vunpack.c.l.bf16 %v37
  %v102 = vunpack.c.l.bf16 %v38
  %v103 = vunpack.c.l.bf16 %v39
  %v104 = vunpack.c.l.bf16 %v40
  %v105 = vunpack.c.l.bf16 %v41
  %v106 = vunpack.c.l.bf16 %v42
  %v107 = vunpack.c.l.bf16 %v43
  %v108 = vunpack.c.l.bf16 %v44
  %v109 = vunpack.c.l.bf16 %v45
  %v110 = vunpack.c.l.bf16 %v46
  %v111 = vunpack.c.l.bf16 %v47
  %v112 = vunpack.c.l.bf16 %v48
  %v113 = vunpack.c.l.bf16 %v49
  %v114 = vunpack.c.l.bf16 %v50
  %v115 = vunpack.c.l.bf16 %v51
  %v116 = vunpack.c.l.bf16 %v52
  %v117 = vunpack.c.l.bf16 %v53
  %v118 = vunpack.c.l.bf16 %v54
  %v119 = vunpack.c.l.bf16 %v55
  %v120 = vunpack.c.l.bf16 %v56
  %v121 = vunpack.c.l.bf16 %v57
  %v122 = vunpack.c.l.bf16 %v58
  %v123 = vunpack.c.l.bf16 %v59
  %v124 = vunpack.c.l.bf16 %v60
  %v125 = vunpack.c.l.bf16 %v61
  %v126 = vunpack.c.l.bf16 %v62
  %v127 = vunpack.c.l.bf16 %v63
  %v128 = vunpack.c.l.bf16 %v64
  %v129 = vunpack.c.l.bf16 %v65
  %v130 = vunpack.c.l.bf16 %v66
  %v131 = vunpack.c.l.bf16 %v67
  %v132 = vunpack.c.l.bf16 %v68
  %v133 = vunpack.c.l.bf16 %v69
  %v134 = vunpack.c.l.bf16 %v70
  %v135 = vunpack.c.l.bf16 %v71
  %v136 = vunpack.c.l.bf16 %v72
  %v137 = vunpack.c.l.bf16 %v73
  %v138 = vunpack.c.l.bf16 %v74
  %v139 = vunpack.c.l.bf16 %v75
  %v140 = vunpack.c.l.bf16 %v76
  %v141 = vunpack.c.l.bf16 %v77
  %v142 = vunpack.c.l.bf16 %v78
  %v143 = vunpack.c.l.bf16 %v79
  %v144 = vunpack.c.l.bf16 %v80
  %v145 = vunpack.c.l.bf16 %v81
  %v146 = vunpack.c.l.bf16 %v82
  %v147 = vunpack.c.l.bf16 %v83
  %v148 = vunpack.c.l.bf16 %v84
  %v149 = vunpack.c.l.bf16 %v85
  %v150 = vunpack.c.l.bf16 %v86
  %v151 = vlaneseq
  %v152 = vshrl.u32 %v151, 7
  %v153 = vsub.s32 0, %v152
  %v154 = vrot.slane %v16, %v153
  %v155 = vsub.f32 %v87, %v154
  %v156 = vsub.f32 %v88, %v154
  %v157 = vsub.f32 %v89, %v154
  %v158 = vsub.f32 %v90, %v154
  %v159 = vsub.f32 %v91, %v154
  %v160 = vsub.f32 %v92, %v154
  %v161 = vsub.f32 %v93, %v154
  %v162 = vsub.f32 %v94, %v154
  %v163 = vsub.f32 %v95, %v154
  %v164 = vsub.f32 %v96, %v154
  %v165 = vsub.f32 %v97, %v154
  %v166 = vsub.f32 %v98, %v154
  %v167 = vsub.f32 %v99, %v154
  %v168 = vsub.f32 %v100, %v154
  %v169 = vsub.f32 %v101, %v154
  %v170 = vsub.f32 %v102, %v154
  %v171 = vsub.f32 %v103, %v154
  %v172 = vsub.f32 %v104, %v154
  %v173 = vsub.f32 %v105, %v154
  %v174 = vsub.f32 %v106, %v154
  %v175 = vsub.f32 %v107, %v154
  %v176 = vsub.f32 %v108, %v154
  %v177 = vsub.f32 %v109, %v154
  %v178 = vsub.f32 %v110, %v154
  %v179 = vsub.f32 %v111, %v154
  %v180 = vsub.f32 %v112, %v154
  %v181 = vsub.f32 %v113, %v154
  %v182 = vsub.f32 %v114, %v154
  %v183 = vsub.f32 %v115, %v154
  %v184 = vsub.f32 %v116, %v154
  %v185 = vsub.f32 %v117, %v154
  %v186 = vsub.f32 %v118, %v154
  %v187 = vsub.f32 %v119, %v154
  %v188 = vsub.f32 %v120, %v154
  %v189 = vsub.f32 %v121, %v154
  %v190 = vsub.f32 %v122, %v154
  %v191 = vsub.f32 %v123, %v154
  %v192 = vsub.f32 %v124, %v154
  %v193 = vsub.f32 %v125, %v154
  %v194 = vsub.f32 %v126, %v154
  %v195 = vsub.f32 %v127, %v154
  %v196 = vsub.f32 %v128, %v154
  %v197 = vsub.f32 %v129, %v154
  %v198 = vsub.f32 %v130, %v154
  %v199 = vsub.f32 %v131, %v154
  %v200 = vsub.f32 %v132, %v154
  %v201 = vsub.f32 %v133, %v154
  %v202 = vsub.f32 %v134, %v154
  %v203 = vsub.f32 %v135, %v154
  %v204 = vsub.f32 %v136, %v154
  %v205 = vsub.f32 %v137, %v154
  %v206 = vsub.f32 %v138, %v154
  %v207 = vsub.f32 %v139, %v154
  %v208 = vsub.f32 %v140, %v154
  %v209 = vsub.f32 %v141, %v154
  %v210 = vsub.f32 %v142, %v154
  %v211 = vsub.f32 %v143, %v154
  %v212 = vsub.f32 %v144, %v154
  %v213 = vsub.f32 %v145, %v154
  %v214 = vsub.f32 %v146, %v154
  %v215 = vsub.f32 %v147, %v154
  %v216 = vsub.f32 %v148, %v154
  %v217 = vsub.f32 %v149, %v154
  %v218 = vsub.f32 %v150, %v154
  %v219 = vadd.f32 %v22, 1e-05
  %v220 = vrsqrt.pop %v219
  %v221 = vlaneseq
  %v222 = vshrl.u32 %v221, 7
  %v223 = vsub.s32 1, %v222
  %v224 = vrot.slane %v220, %v223
  %v225 = vmul.f32 %v155, %v224
  %v226 = vmul.f32 %v156, %v224
  %v227 = vmul.f32 %v157, %v224
  %v228 = vmul.f32 %v158, %v224
  %v229 = vmul.f32 %v159, %v224
  %v230 = vmul.f32 %v160, %v224
  %v231 = vmul.f32 %v161, %v224
  %v232 = vmul.f32 %v162, %v224
  %v233 = vmul.f32 %v163, %v224
  %v234 = vmul.f32 %v164, %v224
  %v235 = vmul.f32 %v165, %v224
  %v236 = vmul.f32 %v166, %v224
  %v237 = vmul.f32 %v167, %v224
  %v238 = vmul.f32 %v168, %v224
  %v239 = vmul.f32 %v169, %v224
  %v240 = vmul.f32 %v170, %v224
  %v241 = vmul.f32 %v171, %v224
  %v242 = vmul.f32 %v172, %v224
  %v243 = vmul.f32 %v173, %v224
  %v244 = vmul.f32 %v174, %v224
  %v245 = vmul.f32 %v175, %v224
  %v246 = vmul.f32 %v176, %v224
  %v247 = vmul.f32 %v177, %v224
  %v248 = vmul.f32 %v178, %v224
  %v249 = vmul.f32 %v179, %v224
  %v250 = vmul.f32 %v180, %v224
  %v251 = vmul.f32 %v181, %v224
  %v252 = vmul.f32 %v182, %v224
  %v253 = vmul.f32 %v183, %v224
  %v254 = vmul.f32 %v184, %v224
  %v255 = vmul.f32 %v185, %v224
  %v256 = vmul.f32 %v186, %v224
  %v257 = vmul.f32 %v187, %v224
  %v258 = vmul.f32 %v188, %v224
  %v259 = vmul.f32 %v189, %v224
  %v260 = vmul.f32 %v190, %v224
  %v261 = vmul.f32 %v191, %v224
  %v262 = vmul.f32 %v192, %v224
  %v263 = vmul.f32 %v193, %v224
  %v264 = vmul.f32 %v194, %v224
  %v265 = vmul.f32 %v195, %v224
  %v266 = vmul.f32 %v196, %v224
  %v267 = vmul.f32 %v197, %v224
  %v268 = vmul.f32 %v198, %v224
  %v269 = vmul.f32 %v199, %v224
  %v270 = vmul.f32 %v200, %v224
  %v271 = vmul.f32 %v201, %v224
  %v272 = vmul.f32 %v202, %v224
  %v273 = vmul.f32 %v203, %v224
  %v274 = vmul.f32 %v204, %v224
  %v275 = vmul.f32 %v205, %v224
  %v276 = vmul.f32 %v206, %v224
  %v277 = vmul.f32 %v207, %v224
  %v278 = vmul.f32 %v208, %v224
  %v279 = vmul.f32 %v209, %v224
  %v280 = vmul.f32 %v210, %v224
  %v281 = vmul.f32 %v211, %v224
  %v282 = vmul.f32 %v212, %v224
  %v283 = vmul.f32 %v213, %v224
  %v284 = vmul.f32 %v214, %v224
  %v285 = vmul.f32 %v215, %v224
  %v286 = vmul.f32 %v216, %v224
  %v287 = vmul.f32 %v217, %v224
  %v288 = vmul.f32 %v218, %v224
  %v289 = vmax.f32 %v225, 0.0
  %v290 = vmax.f32 %v226, 0.0
  %v291 = vmax.f32 %v227, 0.0
  %v292 = vmax.f32 %v228, 0.0
  %v293 = vmax.f32 %v229, 0.0
  %v294 = vmax.f32 %v230, 0.0
  %v295 = vmax.f32 %v231, 0.0
  %v296 = vmax.f32 %v232, 0.0
  %v297 = vmax.f32 %v233, 0.0
  %v298 = vmax.f32 %v234, 0.0
  %v299 = vmax.f32 %v235, 0.0
  %v300 = vmax.f32 %v236, 0.0
  %v301 = vmax.f32 %v237, 0.0
  %v302 = vmax.f32 %v238, 0.0
  %v303 = vmax.f32 %v239, 0.0
  %v304 = vmax.f32 %v240, 0.0
  %v305 = vmax.f32 %v241, 0.0
  %v306 = vmax.f32 %v242, 0.0
  %v307 = vmax.f32 %v243, 0.0
  %v308 = vmax.f32 %v244, 0.0
  %v309 = vmax.f32 %v245, 0.0
  %v310 = vmax.f32 %v246, 0.0
  %v311 = vmax.f32 %v247, 0.0
  %v312 = vmax.f32 %v248, 0.0
  %v313 = vmax.f32 %v249, 0.0
  %v314 = vmax.f32 %v250, 0.0
  %v315 = vmax.f32 %v251, 0.0
  %v316 = vmax.f32 %v252, 0.0
  %v317 = vmax.f32 %v253, 0.0
  %v318 = vmax.f32 %v254, 0.0
  %v319 = vmax.f32 %v255, 0.0
  %v320 = vmax.f32 %v256, 0.0
  %v321 = vmax.f32 %v257, 0.0
  %v322 = vmax.f32 %v258, 0.0
  %v323 = vmax.f32 %v259, 0.0
  %v324 = vmax.f32 %v260, 0.0
  %v325 = vmax.f32 %v261, 0.0
  %v326 = vmax.f32 %v262, 0.0
  %v327 = vmax.f32 %v263, 0.0
  %v328 = vmax.f32 %v264, 0.0
  %v329 = vmax.f32 %v265, 0.0
  %v330 = vmax.f32 %v266, 0.0
  %v331 = vmax.f32 %v267, 0.0
  %v332 = vmax.f32 %v268, 0.0
  %v333 = vmax.f32 %v269, 0.0
  %v334 = vmax.f32 %v270, 0.0
  %v335 = vmax.f32 %v271, 0.0
  %v336 = vmax.f32 %v272, 0.0
  %v337 = vmax.f32 %v273, 0.0
  %v338 = vmax.f32 %v274, 0.0
  %v339 = vmax.f32 %v275, 0.0
  %v340 = vmax.f32 %v276, 0.0
  %v341 = vmax.f32 %v277, 0.0
  %v342 = vmax.f32 %v278, 0.0
  %v343 = vmax.f32 %v279, 0.0
  %v344 = vmax.f32 %v280, 0.0
  %v345 = vmax.f32 %v281, 0.0
  %v346 = vmax.f32 %v282, 0.0
  %v347 = vmax.f32 %v283, 0.0
  %v348 = vmax.f32 %v284, 0.0
  %v349 = vmax.f32 %v285, 0.0
  %v350 = vmax.f32 %v286, 0.0
  %v351 = vmax.f32 %v287, 0.0
  %v352 = vmax.f32 %v288, 0.0
  %v353 = vpack.c.bf16 %v290, %v289
  %v354 = vpack.c.bf16 %v292, %v291
  %v355 = vpack.c.bf16 %v294, %v293
  %v356 = vpack.c.bf16 %v296, %v295
  %v357 = vpack.c.bf16 %v298, %v297
  %v358 = vpack.c.bf16 %v300, %v299
  %v359 = vpack.c.bf16 %v302, %v301
  %v360 = vpack.c.bf16 %v304, %v303
  %v361 = vpack.c.bf16 %v306, %v305
  %v362 = vpack.c.bf16 %v308, %v307
  %v363 = vpack.c.bf16 %v310, %v309
  %v364 = vpack.c.bf16 %v312, %v311
  %v365 = vpack.c.bf16 %v314, %v313
  %v366 = vpack.c.bf16 %v316, %v315
  %v367 = vpack.c.bf16 %v318, %v317
  %v368 = vpack.c.bf16 %v320, %v319
  %v369 = vpack.c.bf16 %v322, %v321
  %v370 = vpack.c.bf16 %v324, %v323
  %v371 = vpack.c.bf16 %v326, %v325
  %v372 = vpack.c.bf16 %v328, %v327
  %v373 = vpack.c.bf16 %v330, %v329
  %v374 = vpack.c.bf16 %v332, %v331
  %v375 = vpack.c.bf16 %v334, %v333
  %v376 = vpack.c.bf16 %v336, %v335
  %v377 = vpack.c.bf16 %v338, %v337
  %v378 = vpack.c.bf16 %v340, %v339
  %v379 = vpack.c.bf16 %v342, %v341
  %v380 = vpack.c.bf16 %v344, %v343
  %v381 = vpack.c.bf16 %v346, %v345
  %v382 = vpack.c.bf16 %v348, %v347
  %v383 = vpack.c.bf16 %v350, %v349
  %v384 = vpack.c.bf16 %v352, %v351
  %v385 = vld [vmem:[%s2] sm:$0xf]
  %v386 = vld [vmem:[%s2 + $0x4] sm:$0xf]
  %v387 = vld [vmem:[%s2 + $0x8] sm:$0xf]
  %v388 = vld [vmem:[%s2 + $0xc] sm:$0xf]
  %v389 = vld [vmem:[%s2 + $0x10] sm:$0xf]
  %v390 = vld [vmem:[%s2 + $0x14] sm:$0xf]
  %v391 = vld [vmem:[%s2 + $0x18] sm:$0xf]
  %v392 = vld [vmem:[%s2 + $0x1c] sm:$0xf]
  %v393 = vld [vmem:[%s2 + $0x20] sm:$0xf]
  %v394 = vld [vmem:[%s2 + $0x24] sm:$0xf]
  %v395 = vld [vmem:[%s2 + $0x28] sm:$0xf]
  %v396 = vld [vmem:[%s2 + $0x2c] sm:$0xf]
  %v397 = vld [vmem:[%s2 + $0x30] sm:$0xf]
  %v398 = vld [vmem:[%s2 + $0x34] sm:$0xf]
  %v399 = vld [vmem:[%s2 + $0x38] sm:$0xf]
  %v400 = vld [vmem:[%s2 + $0x3c] sm:$0xf]
  %v417 = vunpack.c.l.b16 %v385
  %v418 = vunpack.c.l.b16 %v386
  %v419 = vunpack.c.l.b16 %v387
  %v420 = vunpack.c.l.b16 %v388
  %v421 = vunpack.c.l.b16 %v389
  %v422 = vunpack.c.l.b16 %v390
  %v423 = vunpack.c.l.b16 %v391
  %v424 = vunpack.c.l.b16 %v392
  %v425 = vunpack.c.l.b16 %v393
  %v426 = vunpack.c.l.b16 %v394
  %v427 = vunpack.c.l.b16 %v395
  %v428 = vunpack.c.l.b16 %v396
  %v429 = vunpack.c.l.b16 %v397
  %v430 = vunpack.c.l.b16 %v398
  %v431 = vunpack.c.l.b16 %v399
  %v432 = vunpack.c.l.b16 %v400
  %v433 = vpack.c.b16 %v418, %v417
  %v434 = vpack.c.b16 %v420, %v419
  %v435 = vpack.c.b16 %v422, %v421
  %v436 = vpack.c.b16 %v424, %v423
  %v437 = vpack.c.b16 %v426, %v425
  %v438 = vpack.c.b16 %v428, %v427
  %v439 = vpack.c.b16 %v430, %v429
  %v440 = vpack.c.b16 %v432, %v431
  %449 = vmatprep.subr.bf16.mxu0 0
  %450 = vmatpush1.bf16.msra.mxu0 %v433
  %451 = vmatprep.subr.bf16.mxu0 0
  %452 = vmatpush1.bf16.msra.mxu0 %v434
  %453 = vmatprep.subr.bf16.mxu0 0
  %454 = vmatpush1.bf16.msra.mxu0 %v435
  %455 = vmatprep.subr.bf16.mxu0 0
  %456 = vmatpush1.bf16.msra.mxu0 %v436
  %457 = vmatprep.subr.bf16.mxu0 0
  %458 = vmatpush1.bf16.msra.mxu0 %v437
  %459 = vmatprep.subr.bf16.mxu0 0
  %460 = vmatpush1.bf16.msra.mxu0 %v438
  %461 = vmatprep.subr.bf16.mxu0 0
  %462 = vmatpush1.bf16.msra.mxu0 %v439
  %463 = vmatprep.subr.bf16.mxu0 0
  %464 = vmatpush1.bf16.msra.mxu0 %v440
  %465 = vmatprep.subr.bf16.mxu0 0
  %466 = vmatpush1.bf16.msra.mxu0 0
  %467 = vmatprep.subr.bf16.mxu0 0
  %468 = vmatpush1.bf16.msra.mxu0 0
  %469 = vmatprep.subr.bf16.mxu0 0
  %470 = vmatpush1.bf16.msra.mxu0 0
  %471 = vmatprep.subr.bf16.mxu0 0
  %472 = vmatpush1.bf16.msra.mxu0 0
  %473 = vmatprep.subr.bf16.mxu0 0
  %474 = vmatpush1.bf16.msra.mxu0 0
  %475 = vmatprep.subr.bf16.mxu0 0
  %476 = vmatpush1.bf16.msra.mxu0 0
  %477 = vmatprep.subr.bf16.mxu0 0
  %478 = vmatpush1.bf16.msra.mxu0 0
  %479 = vmatprep.subr.bf16.mxu0 0
  %480 = vmatpush1.bf16.msra.mxu0 0
  %481 = vmatprep.mubr.bf16.mxu0 0
  %482 = vmatmul.mubr.bf16.gmra.mrb[0].mxu0 %v353
  %v483 = vpop.f32.mrb[0].mxu0
  %v484 = vadd.f32 0.0, %v483
  %v485 = vpop.f32.mrb[0].mxu0
  %v486 = vpop.f32.mrb[0].mxu0
  %v487 = vadd.f32 0.0, %v486
  %v488 = vpop.f32.mrb[0].mxu0
  %489 = vmatprep.mubr.bf16.mxu0 0
  %490 = vmatmul.mubr.bf16.gmra.mrb[0].mxu0 %v354
  %v491 = vpop.f32.mrb[0].mxu0
  %v492 = vadd.f32 0.0, %v491
  %v493 = vpop.f32.mrb[0].mxu0
  %v494 = vpop.f32.mrb[0].mxu0
  %v495 = vadd.f32 0.0, %v494
  %v496 = vpop.f32.mrb[0].mxu0
  %497 = vmatprep.mubr.bf16.mxu0 0
  %498 = vmatmul.mubr.bf16.gmra.mrb[0].mxu0 %v355
  %v499 = vpop.f32.mrb[0].mxu0
  %v500 = vadd.f32 0.0, %v499
  %v501 = vpop.f32.mrb[0].mxu0
  %v502 = vpop.f32.mrb[0].mxu0
  %v503 = vadd.f32 0.0, %v502
  %v504 = vpop.f32.mrb[0].mxu0
  %505 = vmatprep.mubr.bf16.mxu0 0
  %506 = vmatmul.mubr.bf16.gmra.mrb[0].mxu0 %v356
  %v507 = vpop.f32.mrb[0].mxu0
  %v508 = vadd.f32 0.0, %v507
  %v509 = vpop.f32.mrb[0].mxu0
  %v510 = vpop.f32.mrb[0].mxu0
  %v511 = vadd.f32 0.0, %v510
  %v512 = vpop.f32.mrb[0].mxu0
  %513 = vmatprep.mubr.bf16.mxu0 0
  %514 = vmatmul.mubr.bf16.gmra.mrb[0].mxu0 %v357
  %v515 = vpop.f32.mrb[0].mxu0
  %v516 = vadd.f32 0.0, %v515
  %v517 = vpop.f32.mrb[0].mxu0
  %v518 = vpop.f32.mrb[0].mxu0
  %v519 = vadd.f32 0.0, %v518
  %v520 = vpop.f32.mrb[0].mxu0
  %521 = vmatprep.mubr.bf16.mxu0 0
  %522 = vmatmul.mubr.bf16.gmra.mrb[0].mxu0 %v358
  %v523 = vpop.f32.mrb[0].mxu0
  %v524 = vadd.f32 0.0, %v523
  %v525 = vpop.f32.mrb[0].mxu0
  %v526 = vpop.f32.mrb[0].mxu0
  %v527 = vadd.f32 0.0, %v526
  %v528 = vpop.f32.mrb[0].mxu0
  %529 = vmatprep.mubr.bf16.mxu0 0
  %530 = vmatmul.mubr.bf16.gmra.mrb[0].mxu0 %v359
  %v531 = vpop.f32.mrb[0].mxu0
  %v532 = vadd.f32 0.0, %v531
  %v533 = vpop.f32.mrb[0].mxu0
  %v534 = vpop.f32.mrb[0].mxu0
  %v535 = vadd.f32 0.0, %v534
  %v536 = vpop.f32.mrb[0].mxu0
  %537 = vmatprep.mubr.bf16.mxu0 0
  %538 = vmatmul.mubr.bf16.gmra.mrb[0].mxu0 %v360
  %v539 = vpop.f32.mrb[0].mxu0
  %v540 = vadd.f32 0.0, %v539
  %v541 = vpop.f32.mrb[0].mxu0
  %v542 = vpop.f32.mrb[0].mxu0
  %v543 = vadd.f32 0.0, %v542
  %v544 = vpop.f32.mrb[0].mxu0
  %545 = vmatprep.mubr.bf16.mxu0 0
  %546 = vmatmul.mubr.bf16.gmra.mrb[0].mxu0 %v361
  %v547 = vpop.f32.mrb[0].mxu0
  %v548 = vadd.f32 0.0, %v547
  %v549 = vpop.f32.mrb[0].mxu0
  %v550 = vpop.f32.mrb[0].mxu0
  %v551 = vadd.f32 0.0, %v550
  %v552 = vpop.f32.mrb[0].mxu0
  %553 = vmatprep.mubr.bf16.mxu0 0
  %554 = vmatmul.mubr.bf16.gmra.mrb[0].mxu0 %v362
  %v555 = vpop.f32.mrb[0].mxu0
  %v556 = vadd.f32 0.0, %v555
  %v557 = vpop.f32.mrb[0].mxu0
  %v558 = vpop.f32.mrb[0].mxu0
  %v559 = vadd.f32 0.0, %v558
  %v560 = vpop.f32.mrb[0].mxu0
  %561 = vmatprep.mubr.bf16.mxu0 0
  %562 = vmatmul.mubr.bf16.gmra.mrb[0].mxu0 %v363
  %v563 = vpop.f32.mrb[0].mxu0
  %v564 = vadd.f32 0.0, %v563
  %v565 = vpop.f32.mrb[0].mxu0
  %v566 = vpop.f32.mrb[0].mxu0
  %v567 = vadd.f32 0.0, %v566
  %v568 = vpop.f32.mrb[0].mxu0
  %569 = vmatprep.mubr.bf16.mxu0 0
  %570 = vmatmul.mubr.bf16.gmra.mrb[0].mxu0 %v364
  %v571 = vpop.f32.mrb[0].mxu0
  %v572 = vadd.f32 0.0, %v571
  %v573 = vpop.f32.mrb[0].mxu0
  %v574 = vpop.f32.mrb[0].mxu0
  %v575 = vadd.f32 0.0, %v574
  %v576 = vpop.f32.mrb[0].mxu0
  %577 = vmatprep.mubr.bf16.mxu0 0
  %578 = vmatmul.mubr.bf16.gmra.mrb[0].mxu0 %v365
  %v579 = vpop.f32.mrb[0].mxu0
  %v580 = vadd.f32 0.0, %v579
  %v581 = vpop.f32.mrb[0].mxu0
  %v582 = vpop.f32.mrb[0].mxu0
  %v583 = vadd.f32 0.0, %v582
  %v584 = vpop.f32.mrb[0].mxu0
  %585 = vmatprep.mubr.bf16.mxu0 0
  %586 = vmatmul.mubr.bf16.gmra.mrb[0].mxu0 %v366
  %v587 = vpop.f32.mrb[0].mxu0
  %v588 = vadd.f32 0.0, %v587
  %v589 = vpop.f32.mrb[0].mxu0
  %v590 = vpop.f32.mrb[0].mxu0
  %v591 = vadd.f32 0.0, %v590
  %v592 = vpop.f32.mrb[0].mxu0
  %593 = vmatprep.mubr.bf16.mxu0 0
  %594 = vmatmul.mubr.bf16.gmra.mrb[0].mxu0 %v367
  %v595 = vpop.f32.mrb[0].mxu0
  %v596 = vadd.f32 0.0, %v595
  %v597 = vpop.f32.mrb[0].mxu0
  %v598 = vpop.f32.mrb[0].mxu0
  %v599 = vadd.f32 0.0, %v598
  %v600 = vpop.f32.mrb[0].mxu0
  %601 = vmatprep.mubr.bf16.mxu0 0
  %602 = vmatmul.mubr.bf16.gmra.mrb[0].mxu0 %v368
  %v603 = vpop.f32.mrb[0].mxu0
  %v604 = vadd.f32 0.0, %v603
  %v605 = vpop.f32.mrb[0].mxu0
  %v606 = vpop.f32.mrb[0].mxu0
  %v607 = vadd.f32 0.0, %v606
  %v608 = vpop.f32.mrb[0].mxu0
  %609 = vmatprep.mubr.bf16.mxu0 0
  %610 = vmatmul.mubr.bf16.gmra.mrb[0].mxu0 %v369
  %v611 = vpop.f32.mrb[0].mxu0
  %v612 = vadd.f32 0.0, %v611
  %v613 = vpop.f32.mrb[0].mxu0
  %v614 = vpop.f32.mrb[0].mxu0
  %v615 = vadd.f32 0.0, %v614
  %v616 = vpop.f32.mrb[0].mxu0
  %617 = vmatprep.mubr.bf16.mxu0 0
  %618 = vmatmul.mubr.bf16.gmra.mrb[0].mxu0 %v370
  %v619 = vpop.f32.mrb[0].mxu0
  %v620 = vadd.f32 0.0, %v619
  %v621 = vpop.f32.mrb[0].mxu0
  %v622 = vpop.f32.mrb[0].mxu0
  %v623 = vadd.f32 0.0, %v622
  %v624 = vpop.f32.mrb[0].mxu0
  %625 = vmatprep.mubr.bf16.mxu0 0
  %626 = vmatmul.mubr.bf16.gmra.mrb[0].mxu0 %v371
  %v627 = vpop.f32.mrb[0].mxu0
  %v628 = vadd.f32 0.0, %v627
  %v629 = vpop.f32.mrb[0].mxu0
  %v630 = vpop.f32.mrb[0].mxu0
  %v631 = vadd.f32 0.0, %v630
  %v632 = vpop.f32.mrb[0].mxu0
  %633 = vmatprep.mubr.bf16.mxu0 0
  %634 = vmatmul.mubr.bf16.gmra.mrb[0].mxu0 %v372
  %v635 = vpop.f32.mrb[0].mxu0
  %v636 = vadd.f32 0.0, %v635
  %v637 = vpop.f32.mrb[0].mxu0
  %v638 = vpop.f32.mrb[0].mxu0
  %v639 = vadd.f32 0.0, %v638
  %v640 = vpop.f32.mrb[0].mxu0
  %641 = vmatprep.mubr.bf16.mxu0 0
  %642 = vmatmul.mubr.bf16.gmra.mrb[0].mxu0 %v373
  %v643 = vpop.f32.mrb[0].mxu0
  %v644 = vadd.f32 0.0, %v643
  %v645 = vpop.f32.mrb[0].mxu0
  %v646 = vpop.f32.mrb[0].mxu0
  %v647 = vadd.f32 0.0, %v646
  %v648 = vpop.f32.mrb[0].mxu0
  %649 = vmatprep.mubr.bf16.mxu0 0
  %650 = vmatmul.mubr.bf16.gmra.mrb[0].mxu0 %v374
  %v651 = vpop.f32.mrb[0].mxu0
  %v652 = vadd.f32 0.0, %v651
  %v653 = vpop.f32.mrb[0].mxu0
  %v654 = vpop.f32.mrb[0].mxu0
  %v655 = vadd.f32 0.0, %v654
  %v656 = vpop.f32.mrb[0].mxu0
  %657 = vmatprep.mubr.bf16.mxu0 0
  %658 = vmatmul.mubr.bf16.gmra.mrb[0].mxu0 %v375
  %v659 = vpop.f32.mrb[0].mxu0
  %v660 = vadd.f32 0.0, %v659
  %v661 = vpop.f32.mrb[0].mxu0
  %v662 = vpop.f32.mrb[0].mxu0
  %v663 = vadd.f32 0.0, %v662
  %v664 = vpop.f32.mrb[0].mxu0
  %665 = vmatprep.mubr.bf16.mxu0 0
  %666 = vmatmul.mubr.bf16.gmra.mrb[0].mxu0 %v376
  %v667 = vpop.f32.mrb[0].mxu0
  %v668 = vadd.f32 0.0, %v667
  %v669 = vpop.f32.mrb[0].mxu0
  %v670 = vpop.f32.mrb[0].mxu0
  %v671 = vadd.f32 0.0, %v670
  %v672 = vpop.f32.mrb[0].mxu0
  %673 = vmatprep.mubr.bf16.mxu0 0
  %674 = vmatmul.mubr.bf16.gmra.mrb[0].mxu0 %v377
  %v675 = vpop.f32.mrb[0].mxu0
  %v676 = vadd.f32 0.0, %v675
  %v677 = vpop.f32.mrb[0].mxu0
  %v678 = vpop.f32.mrb[0].mxu0
  %v679 = vadd.f32 0.0, %v678
  %v680 = vpop.f32.mrb[0].mxu0
  %681 = vmatprep.mubr.bf16.mxu0 0
  %682 = vmatmul.mubr.bf16.gmra.mrb[0].mxu0 %v378
  %v683 = vpop.f32.mrb[0].mxu0
  %v684 = vadd.f32 0.0, %v683
  %v685 = vpop.f32.mrb[0].mxu0
  %v686 = vpop.f32.mrb[0].mxu0
  %v687 = vadd.f32 0.0, %v686
  %v688 = vpop.f32.mrb[0].mxu0
  %689 = vmatprep.mubr.bf16.mxu0 0
  %690 = vmatmul.mubr.bf16.gmra.mrb[0].mxu0 %v379
  %v691 = vpop.f32.mrb[0].mxu0
  %v692 = vadd.f32 0.0, %v691
  %v693 = vpop.f32.mrb[0].mxu0
  %v694 = vpop.f32.mrb[0].mxu0
  %v695 = vadd.f32 0.0, %v694
  %v696 = vpop.f32.mrb[0].mxu0
  %697 = vmatprep.mubr.bf16.mxu0 0
  %698 = vmatmul.mubr.bf16.gmra.mrb[0].mxu0 %v380
  %v699 = vpop.f32.mrb[0].mxu0
  %v700 = vadd.f32 0.0, %v699
  %v701 = vpop.f32.mrb[0].mxu0
  %v702 = vpop.f32.mrb[0].mxu0
  %v703 = vadd.f32 0.0, %v702
  %v704 = vpop.f32.mrb[0].mxu0
  %705 = vmatprep.mubr.bf16.mxu0 0
  %706 = vmatmul.mubr.bf16.gmra.mrb[0].mxu0 %v381
  %v707 = vpop.f32.mrb[0].mxu0
  %v708 = vadd.f32 0.0, %v707
  %v709 = vpop.f32.mrb[0].mxu0
  %v710 = vpop.f32.mrb[0].mxu0
  %v711 = vadd.f32 0.0, %v710
  %v712 = vpop.f32.mrb[0].mxu0
  %713 = vmatprep.mubr.bf16.mxu0 0
  %714 = vmatmul.mubr.bf16.gmra.mrb[0].mxu0 %v382
  %v715 = vpop.f32.mrb[0].mxu0
  %v716 = vadd.f32 0.0, %v715
  %v717 = vpop.f32.mrb[0].mxu0
  %v718 = vpop.f32.mrb[0].mxu0
  %v719 = vadd.f32 0.0, %v718
  %v720 = vpop.f32.mrb[0].mxu0
  %721 = vmatprep.mubr.bf16.mxu0 0
  %722 = vmatmul.mubr.bf16.gmra.mrb[0].mxu0 %v383
  %v723 = vpop.f32.mrb[0].mxu0
  %v724 = vadd.f32 0.0, %v723
  %v725 = vpop.f32.mrb[0].mxu0
  %v726 = vpop.f32.mrb[0].mxu0
  %v727 = vadd.f32 0.0, %v726
  %v728 = vpop.f32.mrb[0].mxu0
  %729 = vmatprep.mubr.bf16.mxu0 0
  %730 = vmatmul.mubr.bf16.gmra.mrb[0].mxu0 %v384
  %v731 = vpop.f32.mrb[0].mxu0
  %v732 = vadd.f32 0.0, %v731
  %v733 = vpop.f32.mrb[0].mxu0
  %v734 = vpop.f32.mrb[0].mxu0
  %v735 = vadd.f32 0.0, %v734
  %v736 = vpop.f32.mrb[0].mxu0
  %737 = vdwg.mxu0
  %v738 = vadd.f32 %v484, %v487
  %v739 = vadd.f32 %v738, %v492
  %v740 = vadd.f32 %v739, %v495
  %v741 = vadd.f32 %v740, %v500
  %v742 = vadd.f32 %v741, %v503
  %v743 = vadd.f32 %v742, %v508
  %v744 = vadd.f32 %v743, %v511
  %v745 = vadd.f32 %v744, %v516
  %v746 = vadd.f32 %v745, %v519
  %v747 = vadd.f32 %v746, %v524
  %v748 = vadd.f32 %v747, %v527
  %v749 = vadd.f32 %v748, %v532
  %v750 = vadd.f32 %v749, %v535
  %v751 = vadd.f32 %v750, %v540
  %v752 = vadd.f32 %v751, %v543
  %v753 = vadd.f32 %v752, %v548
  %v754 = vadd.f32 %v753, %v551
  %v755 = vadd.f32 %v754, %v556
  %v756 = vadd.f32 %v755, %v559
  %v757 = vadd.f32 %v756, %v564
  %v758 = vadd.f32 %v757, %v567
  %v759 = vadd.f32 %v758, %v572
  %v760 = vadd.f32 %v759, %v575
  %v761 = vadd.f32 %v760, %v580
  %v762 = vadd.f32 %v761, %v583
  %v763 = vadd.f32 %v762, %v588
  %v764 = vadd.f32 %v763, %v591
  %v765 = vadd.f32 %v764, %v596
  %v766 = vadd.f32 %v765, %v599
  %v767 = vadd.f32 %v766, %v604
  %v768 = vadd.f32 %v767, %v607
  %v769 = vadd.f32 %v768, %v612
  %v770 = vadd.f32 %v769, %v615
  %v771 = vadd.f32 %v770, %v620
  %v772 = vadd.f32 %v771, %v623
  %v773 = vadd.f32 %v772, %v628
  %v774 = vadd.f32 %v773, %v631
  %v775 = vadd.f32 %v774, %v636
  %v776 = vadd.f32 %v775, %v639
  %v777 = vadd.f32 %v776, %v644
  %v778 = vadd.f32 %v777, %v647
  %v779 = vadd.f32 %v778, %v652
  %v780 = vadd.f32 %v779, %v655
  %v781 = vadd.f32 %v780, %v660
  %v782 = vadd.f32 %v781, %v663
  %v783 = vadd.f32 %v782, %v668
  %v784 = vadd.f32 %v783, %v671
  %v785 = vadd.f32 %v784, %v676
  %v786 = vadd.f32 %v785, %v679
  %v787 = vadd.f32 %v786, %v684
  %v788 = vadd.f32 %v787, %v687
  %v789 = vadd.f32 %v788, %v692
  %v790 = vadd.f32 %v789, %v695
  %v791 = vadd.f32 %v790, %v700
  %v792 = vadd.f32 %v791, %v703
  %v793 = vadd.f32 %v792, %v708
  %v794 = vadd.f32 %v793, %v711
  %v795 = vadd.f32 %v794, %v716
  %v796 = vadd.f32 %v795, %v719
  %v797 = vadd.f32 %v796, %v724
  %v798 = vadd.f32 %v797, %v727
  %v799 = vadd.f32 %v798, %v732
  %v800 = vadd.f32 %v799, %v735
  %v801 = vrot.slane %v800, 4
  %v802 = vadd.f32 %v800, %v801
  %v803 = vrot.slane %v802, 2
  %v804 = vadd.f32 %v802, %v803
  %v805 = vrot.slane %v804, 1
  %v806 = vadd.f32 %v804, %v805
  %807 = vst [vmem:[%s3] sm:$0x1] %v806
  %v808 = vmul.f32 %v484, %v484
  %v809 = vmul.f32 %v487, %v487
  %v810 = vmul.f32 %v492, %v492
  %v811 = vmul.f32 %v495, %v495
  %v812 = vmul.f32 %v500, %v500
  %v813 = vmul.f32 %v503, %v503
  %v814 = vmul.f32 %v508, %v508
  %v815 = vmul.f32 %v511, %v511
  %v816 = vmul.f32 %v516, %v516
  %v817 = vmul.f32 %v519, %v519
  %v818 = vmul.f32 %v524, %v524
  %v819 = vmul.f32 %v527, %v527
  %v820 = vmul.f32 %v532, %v532
  %v821 = vmul.f32 %v535, %v535
  %v822 = vmul.f32 %v540, %v540
  %v823 = vmul.f32 %v543, %v543
  %v824 = vmul.f32 %v548, %v548
  %v825 = vmul.f32 %v551, %v551
  %v826 = vmul.f32 %v556, %v556
  %v827 = vmul.f32 %v559, %v559
  %v828 = vmul.f32 %v564, %v564
  %v829 = vmul.f32 %v567, %v567
  %v830 = vmul.f32 %v572, %v572
  %v831 = vmul.f32 %v575, %v575
  %v832 = vmul.f32 %v580, %v580
  %v833 = vmul.f32 %v583, %v583
  %v834 = vmul.f32 %v588, %v588
  %v835 = vmul.f32 %v591, %v591
  %v836 = vmul.f32 %v596, %v596
  %v837 = vmul.f32 %v599, %v599
  %v838 = vmul.f32 %v604, %v604
  %v839 = vmul.f32 %v607, %v607
  %v840 = vmul.f32 %v612, %v612
  %v841 = vmul.f32 %v615, %v615
  %v842 = vmul.f32 %v620, %v620
  %v843 = vmul.f32 %v623, %v623
  %v844 = vmul.f32 %v628, %v628
  %v845 = vmul.f32 %v631, %v631
  %v846 = vmul.f32 %v636, %v636
  %v847 = vmul.f32 %v639, %v639
  %v848 = vmul.f32 %v644, %v644
  %v849 = vmul.f32 %v647, %v647
  %v850 = vmul.f32 %v652, %v652
  %v851 = vmul.f32 %v655, %v655
  %v852 = vmul.f32 %v660, %v660
  %v853 = vmul.f32 %v663, %v663
  %v854 = vmul.f32 %v668, %v668
  %v855 = vmul.f32 %v671, %v671
  %v856 = vmul.f32 %v676, %v676
  %v857 = vmul.f32 %v679, %v679
  %v858 = vmul.f32 %v684, %v684
  %v859 = vmul.f32 %v687, %v687
  %v860 = vmul.f32 %v692, %v692
  %v861 = vmul.f32 %v695, %v695
  %v862 = vmul.f32 %v700, %v700
  %v863 = vmul.f32 %v703, %v703
  %v864 = vmul.f32 %v708, %v708
  %v865 = vmul.f32 %v711, %v711
  %v866 = vmul.f32 %v716, %v716
  %v867 = vmul.f32 %v719, %v719
  %v868 = vmul.f32 %v724, %v724
  %v869 = vmul.f32 %v727, %v727
  %v870 = vmul.f32 %v732, %v732
  %v871 = vmul.f32 %v735, %v735
  %v872 = vadd.f32 %v808, %v809
  %v873 = vadd.f32 %v872, %v810
  %v874 = vadd.f32 %v873, %v811
  %v875 = vadd.f32 %v874, %v812
  %v876 = vadd.f32 %v875, %v813
  %v877 = vadd.f32 %v876, %v814
  %v878 = vadd.f32 %v877, %v815
  %v879 = vadd.f32 %v878, %v816
  %v880 = vadd.f32 %v879, %v817
  %v881 = vadd.f32 %v880, %v818
  %v882 = vadd.f32 %v881, %v819
  %v883 = vadd.f32 %v882, %v820
  %v884 = vadd.f32 %v883, %v821
  %v885 = vadd.f32 %v884, %v822
  %v886 = vadd.f32 %v885, %v823
  %v887 = vadd.f32 %v886, %v824
  %v888 = vadd.f32 %v887, %v825
  %v889 = vadd.f32 %v888, %v826
  %v890 = vadd.f32 %v889, %v827
  %v891 = vadd.f32 %v890, %v828
  %v892 = vadd.f32 %v891, %v829
  %v893 = vadd.f32 %v892, %v830
  %v894 = vadd.f32 %v893, %v831
  %v895 = vadd.f32 %v894, %v832
  %v896 = vadd.f32 %v895, %v833
  %v897 = vadd.f32 %v896, %v834
  %v898 = vadd.f32 %v897, %v835
  %v899 = vadd.f32 %v898, %v836
  %v900 = vadd.f32 %v899, %v837
  %v901 = vadd.f32 %v900, %v838
  %v902 = vadd.f32 %v901, %v839
  %v903 = vadd.f32 %v902, %v840
  %v904 = vadd.f32 %v903, %v841
  %v905 = vadd.f32 %v904, %v842
  %v906 = vadd.f32 %v905, %v843
  %v907 = vadd.f32 %v906, %v844
  %v908 = vadd.f32 %v907, %v845
  %v909 = vadd.f32 %v908, %v846
  %v910 = vadd.f32 %v909, %v847
  %v911 = vadd.f32 %v910, %v848
  %v912 = vadd.f32 %v911, %v849
  %v913 = vadd.f32 %v912, %v850
  %v914 = vadd.f32 %v913, %v851
  %v915 = vadd.f32 %v914, %v852
  %v916 = vadd.f32 %v915, %v853
  %v917 = vadd.f32 %v916, %v854
  %v918 = vadd.f32 %v917, %v855
  %v919 = vadd.f32 %v918, %v856
  %v920 = vadd.f32 %v919, %v857
  %v921 = vadd.f32 %v920, %v858
  %v922 = vadd.f32 %v921, %v859
  %v923 = vadd.f32 %v922, %v860
  %v924 = vadd.f32 %v923, %v861
  %v925 = vadd.f32 %v924, %v862
  %v926 = vadd.f32 %v925, %v863
  %v927 = vadd.f32 %v926, %v864
  %v928 = vadd.f32 %v927, %v865
  %v929 = vadd.f32 %v928, %v866
  %v930 = vadd.f32 %v929, %v867
  %v931 = vadd.f32 %v930, %v868
  %v932 = vadd.f32 %v931, %v869
  %v933 = vadd.f32 %v932, %v870
  %v934 = vadd.f32 %v933, %v871
  %v935 = vrot.slane %v934, 4
  %v936 = vadd.f32 %v934, %v935
  %v937 = vrot.slane %v936, 2
  %v938 = vadd.f32 %v936, %v937
  %v939 = vrot.slane %v938, 1
  %v940 = vadd.f32 %v938, %v939
  %941 = vst [vmem:[%s3 + $0x1] sm:$0x1] %v940
  // Predicated region
  $region14: #{cell_fcdag_forward.4} parent=0 // pred_check
    _
  $region15: #{cell_fcdag_forward.4} parent=0 // pred_check_branch
    %943 = sbr.rel (0) target = $region17
  $region16: #{cell_fcdag_forward.4} parent=0 // pred_region
    _
  $region17: #{cell_fcdag_forward.4} parent=0 // pred_fallthru
    _
  // Predicated region
  $region18: #{cell_fcdag_forward.4} parent=0 // pred_check
    _
  $region19: #{cell_fcdag_forward.4} parent=0 // pred_check_branch
    %945 = sbr.rel (0) target = $region21
  $region20: #{cell_fcdag_forward.4} parent=0 // pred_region
    _
  $region21: #{cell_fcdag_forward.4} parent=0 // pred_fallthru
    _

// kernel: cell_fcdag_forward.5
$region0: #{cell_fcdag_forward.5}
  #allocation0 [shape = 'u32[]', space=smem, size = 0x4, offset = 0x4, fixed_abs, tag = 'smem constant byte address 0x4 - core index']
  #allocation1 [shape = 'u32[144,128]{1,0:T(1,128)}', space=vmem, size = 0x12000, scoped, tag = 'internal scratch']
  %s0 = inlined_call_operand.vmem [shape: bf16[512,128], index: 0, kind: input, shape index: {}]
  %s1 = inlined_call_operand.vmem [shape: f32[2,128], index: 1, kind: input, shape index: {}]
  %s2 = inlined_call_operand.vmem [shape: f32[2,128], index: 2, kind: input, shape index: {}]
  %s3 = inlined_call_operand.vmem [shape: bf16[128,128], index: 3, kind: input, shape index: {}]
  %s4 = inlined_call_operand.vmem [shape: f32[512,128], index: 4, kind: output, shape index: {}]
  %s5 = sld [smem:[#allocation0]]
  $region26: #{cell_fcdag_forward.5} parent=0
    _
  %s7 = ssub.s32 1, %s5
  %s8 = scalar_select 0, %s7, %s5
  // Predicated region
  $region2: #{cell_fcdag_forward.5} parent=0 // pred_check
    _
  $region3: #{cell_fcdag_forward.5} parent=0 // pred_check_branch
    %10 = sbr.rel (0) target = $region5
  $region4: #{cell_fcdag_forward.5} parent=0 // pred_region
    _
  $region5: #{cell_fcdag_forward.5} parent=0 // pred_fallthru
    _
  // Predicated region
  $region6: #{cell_fcdag_forward.5} parent=0 // pred_check
    _
  $region7: #{cell_fcdag_forward.5} parent=0 // pred_check_branch
    %12 = sbr.rel (0) target = $region9
  $region8: #{cell_fcdag_forward.5} parent=0 // pred_region
    _
  $region9: #{cell_fcdag_forward.5} parent=0 // pred_fallthru
    _
  // Predicated region
  $region10: #{cell_fcdag_forward.5} parent=0 // pred_check
    _
  $region11: #{cell_fcdag_forward.5} parent=0 // pred_check_branch
    %14 = sbr.rel (0) target = $region13
  $region12: #{cell_fcdag_forward.5} parent=0 // pred_region
    _
  $region13: #{cell_fcdag_forward.5} parent=0 // pred_fallthru
    _
  // Predicated region
  $region14: #{cell_fcdag_forward.5} parent=0 // pred_check
    _
  $region15: #{cell_fcdag_forward.5} parent=0 // pred_check_branch
    %16 = sbr.rel (0) target = $region17
  $region16: #{cell_fcdag_forward.5} parent=0 // pred_region
    _
  $region17: #{cell_fcdag_forward.5} parent=0 // pred_fallthru
    _
  %v18 = vld [vmem:[%s1] sm:$0x3]
  %v19 = vmul.f32 %v18, 0.001953125
  %v20 = vmul.f32 %v19, %v19
  %v22 = vrot.slane %v20, 7
  %v24 = vsub.f32 %v19, %v22
  %v25 = vmax.f32 %v24, 0.0
  %v26 = vadd.f32 %v25, 1e-05
  %v27 = vrsqrt.pop %v26
  %v28 = vld [vmem:[%s2] sm:$0x3]
  %v29 = vmul.f32 %v28, 0.001953125
  %v30 = vmul.f32 %v29, %v29
  %v32 = vrot.slane %v30, 7
  %v34 = vsub.f32 %v29, %v32
  %v35 = vmax.f32 %v34, 0.0
  %v36 = vadd.f32 %v35, 1e-05
  %v37 = vrsqrt.pop %v36
  %v38 = vld [vmem:[%s0] sm:$0xf]
  %v39 = vld [vmem:[%s0 + $0x4] sm:$0xf]
  %v40 = vld [vmem:[%s0 + $0x8] sm:$0xf]
  %v41 = vld [vmem:[%s0 + $0xc] sm:$0xf]
  %v42 = vld [vmem:[%s0 + $0x10] sm:$0xf]
  %v43 = vld [vmem:[%s0 + $0x14] sm:$0xf]
  %v44 = vld [vmem:[%s0 + $0x18] sm:$0xf]
  %v45 = vld [vmem:[%s0 + $0x1c] sm:$0xf]
  %v46 = vld [vmem:[%s0 + $0x20] sm:$0xf]
  %v47 = vld [vmem:[%s0 + $0x24] sm:$0xf]
  %v48 = vld [vmem:[%s0 + $0x28] sm:$0xf]
  %v49 = vld [vmem:[%s0 + $0x2c] sm:$0xf]
  %v50 = vld [vmem:[%s0 + $0x30] sm:$0xf]
  %v51 = vld [vmem:[%s0 + $0x34] sm:$0xf]
  %v52 = vld [vmem:[%s0 + $0x38] sm:$0xf]
  %v53 = vld [vmem:[%s0 + $0x3c] sm:$0xf]
  %v54 = vld [vmem:[%s0 + $0x40] sm:$0xf]
  %v55 = vld [vmem:[%s0 + $0x44] sm:$0xf]
  %v56 = vld [vmem:[%s0 + $0x48] sm:$0xf]
  %v57 = vld [vmem:[%s0 + $0x4c] sm:$0xf]
  %v58 = vld [vmem:[%s0 + $0x50] sm:$0xf]
  %v59 = vld [vmem:[%s0 + $0x54] sm:$0xf]
  %v60 = vld [vmem:[%s0 + $0x58] sm:$0xf]
  %v61 = vld [vmem:[%s0 + $0x5c] sm:$0xf]
  %v62 = vld [vmem:[%s0 + $0x60] sm:$0xf]
  %v63 = vld [vmem:[%s0 + $0x64] sm:$0xf]
  %v64 = vld [vmem:[%s0 + $0x68] sm:$0xf]
  %v65 = vld [vmem:[%s0 + $0x6c] sm:$0xf]
  %v66 = vld [vmem:[%s0 + $0x70] sm:$0xf]
  %v67 = vld [vmem:[%s0 + $0x74] sm:$0xf]
  %v68 = vld [vmem:[%s0 + $0x78] sm:$0xf]
  %v69 = vld [vmem:[%s0 + $0x7c] sm:$0xf]
  %v70 = vld [vmem:[%s0 + $0x80] sm:$0xf]
  %v71 = vld [vmem:[%s0 + $0x84] sm:$0xf]
  %v72 = vld [vmem:[%s0 + $0x88] sm:$0xf]
  %v73 = vld [vmem:[%s0 + $0x8c] sm:$0xf]
  %v74 = vld [vmem:[%s0 + $0x90] sm:$0xf]
  %v75 = vld [vmem:[%s0 + $0x94] sm:$0xf]
  %v76 = vld [vmem:[%s0 + $0x98] sm:$0xf]
  %v77 = vld [vmem:[%s0 + $0x9c] sm:$0xf]
  %v78 = vld [vmem:[%s0 + $0xa0] sm:$0xf]
  %v79 = vld [vmem:[%s0 + $0xa4] sm:$0xf]
  %v80 = vld [vmem:[%s0 + $0xa8] sm:$0xf]
  %v81 = vld [vmem:[%s0 + $0xac] sm:$0xf]
  %v82 = vld [vmem:[%s0 + $0xb0] sm:$0xf]
  %v83 = vld [vmem:[%s0 + $0xb4] sm:$0xf]
  %v84 = vld [vmem:[%s0 + $0xb8] sm:$0xf]
  %v85 = vld [vmem:[%s0 + $0xbc] sm:$0xf]
  %v86 = vld [vmem:[%s0 + $0xc0] sm:$0xf]
  %v87 = vld [vmem:[%s0 + $0xc4] sm:$0xf]
  %v88 = vld [vmem:[%s0 + $0xc8] sm:$0xf]
  %v89 = vld [vmem:[%s0 + $0xcc] sm:$0xf]
  %v90 = vld [vmem:[%s0 + $0xd0] sm:$0xf]
  %v91 = vld [vmem:[%s0 + $0xd4] sm:$0xf]
  %v92 = vld [vmem:[%s0 + $0xd8] sm:$0xf]
  %v93 = vld [vmem:[%s0 + $0xdc] sm:$0xf]
  %v94 = vld [vmem:[%s0 + $0xe0] sm:$0xf]
  %v95 = vld [vmem:[%s0 + $0xe4] sm:$0xf]
  %v96 = vld [vmem:[%s0 + $0xe8] sm:$0xf]
  %v97 = vld [vmem:[%s0 + $0xec] sm:$0xf]
  %v98 = vld [vmem:[%s0 + $0xf0] sm:$0xf]
  %v99 = vld [vmem:[%s0 + $0xf4] sm:$0xf]
  %v100 = vld [vmem:[%s0 + $0xf8] sm:$0xf]
  %v101 = vld [vmem:[%s0 + $0xfc] sm:$0xf]
  %v102 = vunpack.c.l.bf16 %v38
  %v103 = vunpack.c.l.bf16 %v39
  %v104 = vunpack.c.l.bf16 %v40
  %v105 = vunpack.c.l.bf16 %v41
  %v106 = vunpack.c.l.bf16 %v42
  %v107 = vunpack.c.l.bf16 %v43
  %v108 = vunpack.c.l.bf16 %v44
  %v109 = vunpack.c.l.bf16 %v45
  %v110 = vunpack.c.l.bf16 %v46
  %v111 = vunpack.c.l.bf16 %v47
  %v112 = vunpack.c.l.bf16 %v48
  %v113 = vunpack.c.l.bf16 %v49
  %v114 = vunpack.c.l.bf16 %v50
  %v115 = vunpack.c.l.bf16 %v51
  %v116 = vunpack.c.l.bf16 %v52
  %v117 = vunpack.c.l.bf16 %v53
  %v118 = vunpack.c.l.bf16 %v54
  %v119 = vunpack.c.l.bf16 %v55
  %v120 = vunpack.c.l.bf16 %v56
  %v121 = vunpack.c.l.bf16 %v57
  %v122 = vunpack.c.l.bf16 %v58
  %v123 = vunpack.c.l.bf16 %v59
  %v124 = vunpack.c.l.bf16 %v60
  %v125 = vunpack.c.l.bf16 %v61
  %v126 = vunpack.c.l.bf16 %v62
  %v127 = vunpack.c.l.bf16 %v63
  %v128 = vunpack.c.l.bf16 %v64
  %v129 = vunpack.c.l.bf16 %v65
  %v130 = vunpack.c.l.bf16 %v66
  %v131 = vunpack.c.l.bf16 %v67
  %v132 = vunpack.c.l.bf16 %v68
  %v133 = vunpack.c.l.bf16 %v69
  %v134 = vunpack.c.l.bf16 %v70
  %v135 = vunpack.c.l.bf16 %v71
  %v136 = vunpack.c.l.bf16 %v72
  %v137 = vunpack.c.l.bf16 %v73
  %v138 = vunpack.c.l.bf16 %v74
  %v139 = vunpack.c.l.bf16 %v75
  %v140 = vunpack.c.l.bf16 %v76
  %v141 = vunpack.c.l.bf16 %v77
  %v142 = vunpack.c.l.bf16 %v78
  %v143 = vunpack.c.l.bf16 %v79
  %v144 = vunpack.c.l.bf16 %v80
  %v145 = vunpack.c.l.bf16 %v81
  %v146 = vunpack.c.l.bf16 %v82
  %v147 = vunpack.c.l.bf16 %v83
  %v148 = vunpack.c.l.bf16 %v84
  %v149 = vunpack.c.l.bf16 %v85
  %v150 = vunpack.c.l.bf16 %v86
  %v151 = vunpack.c.l.bf16 %v87
  %v152 = vunpack.c.l.bf16 %v88
  %v153 = vunpack.c.l.bf16 %v89
  %v154 = vunpack.c.l.bf16 %v90
  %v155 = vunpack.c.l.bf16 %v91
  %v156 = vunpack.c.l.bf16 %v92
  %v157 = vunpack.c.l.bf16 %v93
  %v158 = vunpack.c.l.bf16 %v94
  %v159 = vunpack.c.l.bf16 %v95
  %v160 = vunpack.c.l.bf16 %v96
  %v161 = vunpack.c.l.bf16 %v97
  %v162 = vunpack.c.l.bf16 %v98
  %v163 = vunpack.c.l.bf16 %v99
  %v164 = vunpack.c.l.bf16 %v100
  %v165 = vunpack.c.l.bf16 %v101
  %v166 = vlaneseq
  %v167 = vshrl.u32 %v166, 7
  %v168 = vsub.s32 0, %v167
  %v169 = vrot.slane %v19, %v168
  %v170 = vsub.f32 %v102, %v169
  %v171 = vsub.f32 %v103, %v169
  %v172 = vsub.f32 %v104, %v169
  %v173 = vsub.f32 %v105, %v169
  %v174 = vsub.f32 %v106, %v169
  %v175 = vsub.f32 %v107, %v169
  %v176 = vsub.f32 %v108, %v169
  %v177 = vsub.f32 %v109, %v169
  %v178 = vsub.f32 %v110, %v169
  %v179 = vsub.f32 %v111, %v169
  %v180 = vsub.f32 %v112, %v169
  %v181 = vsub.f32 %v113, %v169
  %v182 = vsub.f32 %v114, %v169
  %v183 = vsub.f32 %v115, %v169
  %v184 = vsub.f32 %v116, %v169
  %v185 = vsub.f32 %v117, %v169
  %v186 = vsub.f32 %v118, %v169
  %v187 = vsub.f32 %v119, %v169
  %v188 = vsub.f32 %v120, %v169
  %v189 = vsub.f32 %v121, %v169
  %v190 = vsub.f32 %v122, %v169
  %v191 = vsub.f32 %v123, %v169
  %v192 = vsub.f32 %v124, %v169
  %v193 = vsub.f32 %v125, %v169
  %v194 = vsub.f32 %v126, %v169
  %v195 = vsub.f32 %v127, %v169
  %v196 = vsub.f32 %v128, %v169
  %v197 = vsub.f32 %v129, %v169
  %v198 = vsub.f32 %v130, %v169
  %v199 = vsub.f32 %v131, %v169
  %v200 = vsub.f32 %v132, %v169
  %v201 = vsub.f32 %v133, %v169
  %v202 = vsub.f32 %v134, %v169
  %v203 = vsub.f32 %v135, %v169
  %v204 = vsub.f32 %v136, %v169
  %v205 = vsub.f32 %v137, %v169
  %v206 = vsub.f32 %v138, %v169
  %v207 = vsub.f32 %v139, %v169
  %v208 = vsub.f32 %v140, %v169
  %v209 = vsub.f32 %v141, %v169
  %v210 = vsub.f32 %v142, %v169
  %v211 = vsub.f32 %v143, %v169
  %v212 = vsub.f32 %v144, %v169
  %v213 = vsub.f32 %v145, %v169
  %v214 = vsub.f32 %v146, %v169
  %v215 = vsub.f32 %v147, %v169
  %v216 = vsub.f32 %v148, %v169
  %v217 = vsub.f32 %v149, %v169
  %v218 = vsub.f32 %v150, %v169
  %v219 = vsub.f32 %v151, %v169
  %v220 = vsub.f32 %v152, %v169
  %v221 = vsub.f32 %v153, %v169
  %v222 = vsub.f32 %v154, %v169
  %v223 = vsub.f32 %v155, %v169
  %v224 = vsub.f32 %v156, %v169
  %v225 = vsub.f32 %v157, %v169
  %v226 = vsub.f32 %v158, %v169
  %v227 = vsub.f32 %v159, %v169
  %v228 = vsub.f32 %v160, %v169
  %v229 = vsub.f32 %v161, %v169
  %v230 = vsub.f32 %v162, %v169
  %v231 = vsub.f32 %v163, %v169
  %v232 = vsub.f32 %v164, %v169
  %v233 = vsub.f32 %v165, %v169
  %v234 = vlaneseq
  %v235 = vshrl.u32 %v234, 7
  %v236 = vsub.s32 1, %v235
  %v237 = vrot.slane %v27, %v236
  %v238 = vmul.f32 %v170, %v237
  %v239 = vmul.f32 %v171, %v237
  %v240 = vmul.f32 %v172, %v237
  %v241 = vmul.f32 %v173, %v237
  %v242 = vmul.f32 %v174, %v237
  %v243 = vmul.f32 %v175, %v237
  %v244 = vmul.f32 %v176, %v237
  %v245 = vmul.f32 %v177, %v237
  %v246 = vmul.f32 %v178, %v237
  %v247 = vmul.f32 %v179, %v237
  %v248 = vmul.f32 %v180, %v237
  %v249 = vmul.f32 %v181, %v237
  %v250 = vmul.f32 %v182, %v237
  %v251 = vmul.f32 %v183, %v237
  %v252 = vmul.f32 %v184, %v237
  %v253 = vmul.f32 %v185, %v237
  %v254 = vmul.f32 %v186, %v237
  %v255 = vmul.f32 %v187, %v237
  %v256 = vmul.f32 %v188, %v237
  %v257 = vmul.f32 %v189, %v237
  %v258 = vmul.f32 %v190, %v237
  %v259 = vmul.f32 %v191, %v237
  %v260 = vmul.f32 %v192, %v237
  %v261 = vmul.f32 %v193, %v237
  %v262 = vmul.f32 %v194, %v237
  %v263 = vmul.f32 %v195, %v237
  %v264 = vmul.f32 %v196, %v237
  %v265 = vmul.f32 %v197, %v237
  %v266 = vmul.f32 %v198, %v237
  %v267 = vmul.f32 %v199, %v237
  %v268 = vmul.f32 %v200, %v237
  %v269 = vmul.f32 %v201, %v237
  %v270 = vmul.f32 %v202, %v237
  %v271 = vmul.f32 %v203, %v237
  %v272 = vmul.f32 %v204, %v237
  %v273 = vmul.f32 %v205, %v237
  %v274 = vmul.f32 %v206, %v237
  %v275 = vmul.f32 %v207, %v237
  %v276 = vmul.f32 %v208, %v237
  %v277 = vmul.f32 %v209, %v237
  %v278 = vmul.f32 %v210, %v237
  %v279 = vmul.f32 %v211, %v237
  %v280 = vmul.f32 %v212, %v237
  %v281 = vmul.f32 %v213, %v237
  %v282 = vmul.f32 %v214, %v237
  %v283 = vmul.f32 %v215, %v237
  %v284 = vmul.f32 %v216, %v237
  %v285 = vmul.f32 %v217, %v237
  %v286 = vmul.f32 %v218, %v237
  %v287 = vmul.f32 %v219, %v237
  %v288 = vmul.f32 %v220, %v237
  %v289 = vmul.f32 %v221, %v237
  %v290 = vmul.f32 %v222, %v237
  %v291 = vmul.f32 %v223, %v237
  %v292 = vmul.f32 %v224, %v237
  %v293 = vmul.f32 %v225, %v237
  %v294 = vmul.f32 %v226, %v237
  %v295 = vmul.f32 %v227, %v237
  %v296 = vmul.f32 %v228, %v237
  %v297 = vmul.f32 %v229, %v237
  %v298 = vmul.f32 %v230, %v237
  %v299 = vmul.f32 %v231, %v237
  %v300 = vmul.f32 %v232, %v237
  %v301 = vmul.f32 %v233, %v237
  %v302 = vmax.f32 %v238, 0.0
  %v303 = vmax.f32 %v239, 0.0
  %v304 = vmax.f32 %v240, 0.0
  %v305 = vmax.f32 %v241, 0.0
  %v306 = vmax.f32 %v242, 0.0
  %v307 = vmax.f32 %v243, 0.0
  %v308 = vmax.f32 %v244, 0.0
  %v309 = vmax.f32 %v245, 0.0
  %v310 = vmax.f32 %v246, 0.0
  %v311 = vmax.f32 %v247, 0.0
  %v312 = vmax.f32 %v248, 0.0
  %v313 = vmax.f32 %v249, 0.0
  %v314 = vmax.f32 %v250, 0.0
  %v315 = vmax.f32 %v251, 0.0
  %v316 = vmax.f32 %v252, 0.0
  %v317 = vmax.f32 %v253, 0.0
  %v318 = vmax.f32 %v254, 0.0
  %v319 = vmax.f32 %v255, 0.0
  %v320 = vmax.f32 %v256, 0.0
  %v321 = vmax.f32 %v257, 0.0
  %v322 = vmax.f32 %v258, 0.0
  %v323 = vmax.f32 %v259, 0.0
  %v324 = vmax.f32 %v260, 0.0
  %v325 = vmax.f32 %v261, 0.0
  %v326 = vmax.f32 %v262, 0.0
  %v327 = vmax.f32 %v263, 0.0
  %v328 = vmax.f32 %v264, 0.0
  %v329 = vmax.f32 %v265, 0.0
  %v330 = vmax.f32 %v266, 0.0
  %v331 = vmax.f32 %v267, 0.0
  %v332 = vmax.f32 %v268, 0.0
  %v333 = vmax.f32 %v269, 0.0
  %v334 = vmax.f32 %v270, 0.0
  %v335 = vmax.f32 %v271, 0.0
  %v336 = vmax.f32 %v272, 0.0
  %v337 = vmax.f32 %v273, 0.0
  %v338 = vmax.f32 %v274, 0.0
  %v339 = vmax.f32 %v275, 0.0
  %v340 = vmax.f32 %v276, 0.0
  %v341 = vmax.f32 %v277, 0.0
  %v342 = vmax.f32 %v278, 0.0
  %v343 = vmax.f32 %v279, 0.0
  %v344 = vmax.f32 %v280, 0.0
  %v345 = vmax.f32 %v281, 0.0
  %v346 = vmax.f32 %v282, 0.0
  %v347 = vmax.f32 %v283, 0.0
  %v348 = vmax.f32 %v284, 0.0
  %v349 = vmax.f32 %v285, 0.0
  %v350 = vmax.f32 %v286, 0.0
  %v351 = vmax.f32 %v287, 0.0
  %v352 = vmax.f32 %v288, 0.0
  %v353 = vmax.f32 %v289, 0.0
  %v354 = vmax.f32 %v290, 0.0
  %v355 = vmax.f32 %v291, 0.0
  %v356 = vmax.f32 %v292, 0.0
  %v357 = vmax.f32 %v293, 0.0
  %v358 = vmax.f32 %v294, 0.0
  %v359 = vmax.f32 %v295, 0.0
  %v360 = vmax.f32 %v296, 0.0
  %v361 = vmax.f32 %v297, 0.0
  %v362 = vmax.f32 %v298, 0.0
  %v363 = vmax.f32 %v299, 0.0
  %v364 = vmax.f32 %v300, 0.0
  %v365 = vmax.f32 %v301, 0.0
  %v366 = vpack.c.bf16 %v303, %v302
  %v367 = vpack.c.bf16 %v305, %v304
  %v368 = vpack.c.bf16 %v307, %v306
  %v369 = vpack.c.bf16 %v309, %v308
  %v370 = vpack.c.bf16 %v311, %v310
  %v371 = vpack.c.bf16 %v313, %v312
  %v372 = vpack.c.bf16 %v315, %v314
  %v373 = vpack.c.bf16 %v317, %v316
  %v374 = vpack.c.bf16 %v319, %v318
  %v375 = vpack.c.bf16 %v321, %v320
  %v376 = vpack.c.bf16 %v323, %v322
  %v377 = vpack.c.bf16 %v325, %v324
  %v378 = vpack.c.bf16 %v327, %v326
  %v379 = vpack.c.bf16 %v329, %v328
  %v380 = vpack.c.bf16 %v331, %v330
  %v381 = vpack.c.bf16 %v333, %v332
  %v382 = vpack.c.bf16 %v335, %v334
  %v383 = vpack.c.bf16 %v337, %v336
  %v384 = vpack.c.bf16 %v339, %v338
  %v385 = vpack.c.bf16 %v341, %v340
  %v386 = vpack.c.bf16 %v343, %v342
  %v387 = vpack.c.bf16 %v345, %v344
  %v388 = vpack.c.bf16 %v347, %v346
  %v389 = vpack.c.bf16 %v349, %v348
  %v390 = vpack.c.bf16 %v351, %v350
  %v391 = vpack.c.bf16 %v353, %v352
  %v392 = vpack.c.bf16 %v355, %v354
  %v393 = vpack.c.bf16 %v357, %v356
  %v394 = vpack.c.bf16 %v359, %v358
  %v395 = vpack.c.bf16 %v361, %v360
  %v396 = vpack.c.bf16 %v363, %v362
  %v397 = vpack.c.bf16 %v365, %v364
  %v398 = vld [vmem:[%s3] sm:$0xf]
  %v399 = vld [vmem:[%s3 + $0x4] sm:$0xf]
  %v400 = vld [vmem:[%s3 + $0x8] sm:$0xf]
  %v401 = vld [vmem:[%s3 + $0xc] sm:$0xf]
  %v402 = vld [vmem:[%s3 + $0x10] sm:$0xf]
  %v403 = vld [vmem:[%s3 + $0x14] sm:$0xf]
  %v404 = vld [vmem:[%s3 + $0x18] sm:$0xf]
  %v405 = vld [vmem:[%s3 + $0x1c] sm:$0xf]
  %v406 = vld [vmem:[%s3 + $0x20] sm:$0xf]
  %v407 = vld [vmem:[%s3 + $0x24] sm:$0xf]
  %v408 = vld [vmem:[%s3 + $0x28] sm:$0xf]
  %v409 = vld [vmem:[%s3 + $0x2c] sm:$0xf]
  %v410 = vld [vmem:[%s3 + $0x30] sm:$0xf]
  %v411 = vld [vmem:[%s3 + $0x34] sm:$0xf]
  %v412 = vld [vmem:[%s3 + $0x38] sm:$0xf]
  %v413 = vld [vmem:[%s3 + $0x3c] sm:$0xf]
  %v430 = vunpack.c.l.b16 %v398
  %v431 = vunpack.c.l.b16 %v399
  %v432 = vunpack.c.l.b16 %v400
  %v433 = vunpack.c.l.b16 %v401
  %v434 = vunpack.c.l.b16 %v402
  %v435 = vunpack.c.l.b16 %v403
  %v436 = vunpack.c.l.b16 %v404
  %v437 = vunpack.c.l.b16 %v405
  %v438 = vunpack.c.l.b16 %v406
  %v439 = vunpack.c.l.b16 %v407
  %v440 = vunpack.c.l.b16 %v408
  %v441 = vunpack.c.l.b16 %v409
  %v442 = vunpack.c.l.b16 %v410
  %v443 = vunpack.c.l.b16 %v411
  %v444 = vunpack.c.l.b16 %v412
  %v445 = vunpack.c.l.b16 %v413
  %v446 = vpack.c.b16 %v431, %v430
  %v447 = vpack.c.b16 %v433, %v432
  %v448 = vpack.c.b16 %v435, %v434
  %v449 = vpack.c.b16 %v437, %v436
  %v450 = vpack.c.b16 %v439, %v438
  %v451 = vpack.c.b16 %v441, %v440
  %v452 = vpack.c.b16 %v443, %v442
  %v453 = vpack.c.b16 %v445, %v444
  %462 = vmatprep.subr.bf16.mxu0 0
  %463 = vmatpush1.bf16.msra.mxu0 %v446
  %464 = vmatprep.subr.bf16.mxu0 0
  %465 = vmatpush1.bf16.msra.mxu0 %v447
  %466 = vmatprep.subr.bf16.mxu0 0
  %467 = vmatpush1.bf16.msra.mxu0 %v448
  %468 = vmatprep.subr.bf16.mxu0 0
  %469 = vmatpush1.bf16.msra.mxu0 %v449
  %470 = vmatprep.subr.bf16.mxu0 0
  %471 = vmatpush1.bf16.msra.mxu0 %v450
  %472 = vmatprep.subr.bf16.mxu0 0
  %473 = vmatpush1.bf16.msra.mxu0 %v451
  %474 = vmatprep.subr.bf16.mxu0 0
  %475 = vmatpush1.bf16.msra.mxu0 %v452
  %476 = vmatprep.subr.bf16.mxu0 0
  %477 = vmatpush1.bf16.msra.mxu0 %v453
  %478 = vmatprep.subr.bf16.mxu0 0
  %479 = vmatpush1.bf16.msra.mxu0 0
  %480 = vmatprep.subr.bf16.mxu0 0
  %481 = vmatpush1.bf16.msra.mxu0 0
  %482 = vmatprep.subr.bf16.mxu0 0
  %483 = vmatpush1.bf16.msra.mxu0 0
  %484 = vmatprep.subr.bf16.mxu0 0
  %485 = vmatpush1.bf16.msra.mxu0 0
  %486 = vmatprep.subr.bf16.mxu0 0
  %487 = vmatpush1.bf16.msra.mxu0 0
  %488 = vmatprep.subr.bf16.mxu0 0
  %489 = vmatpush1.bf16.msra.mxu0 0
  %490 = vmatprep.subr.bf16.mxu0 0
  %491 = vmatpush1.bf16.msra.mxu0 0
  %492 = vmatprep.subr.bf16.mxu0 0
  %493 = vmatpush1.bf16.msra.mxu0 0
  %494 = vmatprep.mubr.bf16.mxu0 0
  %495 = vmatmul.mubr.bf16.gmra.mrb[0].mxu0 %v366
  %v496 = vpop.f32.mrb[0].mxu0
  %v497 = vadd.f32 0.0, %v496
  %v498 = vpop.f32.mrb[0].mxu0
  %v499 = vpop.f32.mrb[0].mxu0
  %v500 = vadd.f32 0.0, %v499
  %v501 = vpop.f32.mrb[0].mxu0
  %502 = vmatprep.mubr.bf16.mxu0 0
  %503 = vmatmul.mubr.bf16.gmra.mrb[0].mxu0 %v367
  %v504 = vpop.f32.mrb[0].mxu0
  %v505 = vadd.f32 0.0, %v504
  %v506 = vpop.f32.mrb[0].mxu0
  %v507 = vpop.f32.mrb[0].mxu0
  %v508 = vadd.f32 0.0, %v507
  %v509 = vpop.f32.mrb[0].mxu0
  %510 = vmatprep.mubr.bf16.mxu0 0
  %511 = vmatmul.mubr.bf16.gmra.mrb[0].mxu0 %v368
  %v512 = vpop.f32.mrb[0].mxu0
  %v513 = vadd.f32 0.0, %v512
  %v514 = vpop.f32.mrb[0].mxu0
  %v515 = vpop.f32.mrb[0].mxu0
  %v516 = vadd.f32 0.0, %v515
  %v517 = vpop.f32.mrb[0].mxu0
  %518 = vmatprep.mubr.bf16.mxu0 0
  %519 = vmatmul.mubr.bf16.gmra.mrb[0].mxu0 %v369
  %v520 = vpop.f32.mrb[0].mxu0
  %v521 = vadd.f32 0.0, %v520
  %v522 = vpop.f32.mrb[0].mxu0
  %v523 = vpop.f32.mrb[0].mxu0
  %v524 = vadd.f32 0.0, %v523
  %v525 = vpop.f32.mrb[0].mxu0
  %526 = vmatprep.mubr.bf16.mxu0 0
  %527 = vmatmul.mubr.bf16.gmra.mrb[0].mxu0 %v370
  %v528 = vpop.f32.mrb[0].mxu0
  %v529 = vadd.f32 0.0, %v528
  %v530 = vpop.f32.mrb[0].mxu0
  %v531 = vpop.f32.mrb[0].mxu0
  %v532 = vadd.f32 0.0, %v531
  %v533 = vpop.f32.mrb[0].mxu0
  %534 = vmatprep.mubr.bf16.mxu0 0
  %535 = vmatmul.mubr.bf16.gmra.mrb[0].mxu0 %v371
  %v536 = vpop.f32.mrb[0].mxu0
  %v537 = vadd.f32 0.0, %v536
  %v538 = vpop.f32.mrb[0].mxu0
  %v539 = vpop.f32.mrb[0].mxu0
  %v540 = vadd.f32 0.0, %v539
  %v541 = vpop.f32.mrb[0].mxu0
  %542 = vmatprep.mubr.bf16.mxu0 0
  %543 = vmatmul.mubr.bf16.gmra.mrb[0].mxu0 %v372
  %v544 = vpop.f32.mrb[0].mxu0
  %v545 = vadd.f32 0.0, %v544
  %v546 = vpop.f32.mrb[0].mxu0
  %v547 = vpop.f32.mrb[0].mxu0
  %v548 = vadd.f32 0.0, %v547
  %v549 = vpop.f32.mrb[0].mxu0
  %550 = vmatprep.mubr.bf16.mxu0 0
  %551 = vmatmul.mubr.bf16.gmra.mrb[0].mxu0 %v373
  %v552 = vpop.f32.mrb[0].mxu0
  %v553 = vadd.f32 0.0, %v552
  %v554 = vpop.f32.mrb[0].mxu0
  %v555 = vpop.f32.mrb[0].mxu0
  %v556 = vadd.f32 0.0, %v555
  %v557 = vpop.f32.mrb[0].mxu0
  %558 = vmatprep.mubr.bf16.mxu0 0
  %559 = vmatmul.mubr.bf16.gmra.mrb[0].mxu0 %v374
  %v560 = vpop.f32.mrb[0].mxu0
  %v561 = vadd.f32 0.0, %v560
  %v562 = vpop.f32.mrb[0].mxu0
  %v563 = vpop.f32.mrb[0].mxu0
  %v564 = vadd.f32 0.0, %v563
  %v565 = vpop.f32.mrb[0].mxu0
  %566 = vmatprep.mubr.bf16.mxu0 0
  %567 = vmatmul.mubr.bf16.gmra.mrb[0].mxu0 %v375
  %v568 = vpop.f32.mrb[0].mxu0
  %v569 = vadd.f32 0.0, %v568
  %v570 = vpop.f32.mrb[0].mxu0
  %v571 = vpop.f32.mrb[0].mxu0
  %v572 = vadd.f32 0.0, %v571
  %v573 = vpop.f32.mrb[0].mxu0
  %574 = vmatprep.mubr.bf16.mxu0 0
  %575 = vmatmul.mubr.bf16.gmra.mrb[0].mxu0 %v376
  %v576 = vpop.f32.mrb[0].mxu0
  %v577 = vadd.f32 0.0, %v576
  %v578 = vpop.f32.mrb[0].mxu0
  %v579 = vpop.f32.mrb[0].mxu0
  %v580 = vadd.f32 0.0, %v579
  %v581 = vpop.f32.mrb[0].mxu0
  %582 = vmatprep.mubr.bf16.mxu0 0
  %583 = vmatmul.mubr.bf16.gmra.mrb[0].mxu0 %v377
  %v584 = vpop.f32.mrb[0].mxu0
  %v585 = vadd.f32 0.0, %v584
  %v586 = vpop.f32.mrb[0].mxu0
  %v587 = vpop.f32.mrb[0].mxu0
  %v588 = vadd.f32 0.0, %v587
  %v589 = vpop.f32.mrb[0].mxu0
  %590 = vmatprep.mubr.bf16.mxu0 0
  %591 = vmatmul.mubr.bf16.gmra.mrb[0].mxu0 %v378
  %v592 = vpop.f32.mrb[0].mxu0
  %v593 = vadd.f32 0.0, %v592
  %v594 = vpop.f32.mrb[0].mxu0
  %v595 = vpop.f32.mrb[0].mxu0
  %v596 = vadd.f32 0.0, %v595
  %v597 = vpop.f32.mrb[0].mxu0
  %598 = vmatprep.mubr.bf16.mxu0 0
  %599 = vmatmul.mubr.bf16.gmra.mrb[0].mxu0 %v379
  %v600 = vpop.f32.mrb[0].mxu0
  %v601 = vadd.f32 0.0, %v600
  %v602 = vpop.f32.mrb[0].mxu0
  %v603 = vpop.f32.mrb[0].mxu0
  %v604 = vadd.f32 0.0, %v603
  %v605 = vpop.f32.mrb[0].mxu0
  %606 = vmatprep.mubr.bf16.mxu0 0
  %607 = vmatmul.mubr.bf16.gmra.mrb[0].mxu0 %v380
  %v608 = vpop.f32.mrb[0].mxu0
  %v609 = vadd.f32 0.0, %v608
  %v610 = vpop.f32.mrb[0].mxu0
  %v611 = vpop.f32.mrb[0].mxu0
  %v612 = vadd.f32 0.0, %v611
  %v613 = vpop.f32.mrb[0].mxu0
  %614 = vmatprep.mubr.bf16.mxu0 0
  %615 = vmatmul.mubr.bf16.gmra.mrb[0].mxu0 %v381
  %v616 = vpop.f32.mrb[0].mxu0
  %v617 = vadd.f32 0.0, %v616
  %v618 = vpop.f32.mrb[0].mxu0
  %v619 = vpop.f32.mrb[0].mxu0
  %v620 = vadd.f32 0.0, %v619
  %v621 = vpop.f32.mrb[0].mxu0
  %622 = vmatprep.mubr.bf16.mxu0 0
  %623 = vmatmul.mubr.bf16.gmra.mrb[0].mxu0 %v382
  %v624 = vpop.f32.mrb[0].mxu0
  %v625 = vadd.f32 0.0, %v624
  %v626 = vpop.f32.mrb[0].mxu0
  %v627 = vpop.f32.mrb[0].mxu0
  %v628 = vadd.f32 0.0, %v627
  %v629 = vpop.f32.mrb[0].mxu0
  %630 = vmatprep.mubr.bf16.mxu0 0
  %631 = vmatmul.mubr.bf16.gmra.mrb[0].mxu0 %v383
  %v632 = vpop.f32.mrb[0].mxu0
  %v633 = vadd.f32 0.0, %v632
  %v634 = vpop.f32.mrb[0].mxu0
  %v635 = vpop.f32.mrb[0].mxu0
  %v636 = vadd.f32 0.0, %v635
  %v637 = vpop.f32.mrb[0].mxu0
  %638 = vmatprep.mubr.bf16.mxu0 0
  %639 = vmatmul.mubr.bf16.gmra.mrb[0].mxu0 %v384
  %v640 = vpop.f32.mrb[0].mxu0
  %v641 = vadd.f32 0.0, %v640
  %v642 = vpop.f32.mrb[0].mxu0
  %v643 = vpop.f32.mrb[0].mxu0
  %v644 = vadd.f32 0.0, %v643
  %v645 = vpop.f32.mrb[0].mxu0
  %646 = vmatprep.mubr.bf16.mxu0 0
  %647 = vmatmul.mubr.bf16.gmra.mrb[0].mxu0 %v385
  %v648 = vpop.f32.mrb[0].mxu0
  %v649 = vadd.f32 0.0, %v648
  %v650 = vpop.f32.mrb[0].mxu0
  %v651 = vpop.f32.mrb[0].mxu0
  %v652 = vadd.f32 0.0, %v651
  %v653 = vpop.f32.mrb[0].mxu0
  %654 = vmatprep.mubr.bf16.mxu0 0
  %655 = vmatmul.mubr.bf16.gmra.mrb[0].mxu0 %v386
  %v656 = vpop.f32.mrb[0].mxu0
  %v657 = vadd.f32 0.0, %v656
  %v658 = vpop.f32.mrb[0].mxu0
  %v659 = vpop.f32.mrb[0].mxu0
  %v660 = vadd.f32 0.0, %v659
  %v661 = vpop.f32.mrb[0].mxu0
  %662 = vmatprep.mubr.bf16.mxu0 0
  %663 = vmatmul.mubr.bf16.gmra.mrb[0].mxu0 %v387
  %v664 = vpop.f32.mrb[0].mxu0
  %v665 = vadd.f32 0.0, %v664
  %v666 = vpop.f32.mrb[0].mxu0
  %v667 = vpop.f32.mrb[0].mxu0
  %v668 = vadd.f32 0.0, %v667
  %v669 = vpop.f32.mrb[0].mxu0
  %670 = vmatprep.mubr.bf16.mxu0 0
  %671 = vmatmul.mubr.bf16.gmra.mrb[0].mxu0 %v388
  %v672 = vpop.f32.mrb[0].mxu0
  %v673 = vadd.f32 0.0, %v672
  %v674 = vpop.f32.mrb[0].mxu0
  %v675 = vpop.f32.mrb[0].mxu0
  %v676 = vadd.f32 0.0, %v675
  %v677 = vpop.f32.mrb[0].mxu0
  %678 = vmatprep.mubr.bf16.mxu0 0
  %679 = vmatmul.mubr.bf16.gmra.mrb[0].mxu0 %v389
  %v680 = vpop.f32.mrb[0].mxu0
  %v681 = vadd.f32 0.0, %v680
  %v682 = vpop.f32.mrb[0].mxu0
  %v683 = vpop.f32.mrb[0].mxu0
  %v684 = vadd.f32 0.0, %v683
  %v685 = vpop.f32.mrb[0].mxu0
  %686 = vmatprep.mubr.bf16.mxu0 0
  %687 = vmatmul.mubr.bf16.gmra.mrb[0].mxu0 %v390
  %v688 = vpop.f32.mrb[0].mxu0
  %v689 = vadd.f32 0.0, %v688
  %v690 = vpop.f32.mrb[0].mxu0
  %v691 = vpop.f32.mrb[0].mxu0
  %v692 = vadd.f32 0.0, %v691
  %v693 = vpop.f32.mrb[0].mxu0
  %694 = vmatprep.mubr.bf16.mxu0 0
  %695 = vmatmul.mubr.bf16.gmra.mrb[0].mxu0 %v391
  %v696 = vpop.f32.mrb[0].mxu0
  %v697 = vadd.f32 0.0, %v696
  %v698 = vpop.f32.mrb[0].mxu0
  %v699 = vpop.f32.mrb[0].mxu0
  %v700 = vadd.f32 0.0, %v699
  %v701 = vpop.f32.mrb[0].mxu0
  %702 = vmatprep.mubr.bf16.mxu0 0
  %703 = vmatmul.mubr.bf16.gmra.mrb[0].mxu0 %v392
  %v704 = vpop.f32.mrb[0].mxu0
  %v705 = vadd.f32 0.0, %v704
  %v706 = vpop.f32.mrb[0].mxu0
  %v707 = vpop.f32.mrb[0].mxu0
  %v708 = vadd.f32 0.0, %v707
  %v709 = vpop.f32.mrb[0].mxu0
  %710 = vmatprep.mubr.bf16.mxu0 0
  %711 = vmatmul.mubr.bf16.gmra.mrb[0].mxu0 %v393
  %v712 = vpop.f32.mrb[0].mxu0
  %v713 = vadd.f32 0.0, %v712
  %v714 = vpop.f32.mrb[0].mxu0
  %v715 = vpop.f32.mrb[0].mxu0
  %v716 = vadd.f32 0.0, %v715
  %v717 = vpop.f32.mrb[0].mxu0
  %718 = vmatprep.mubr.bf16.mxu0 0
  %719 = vmatmul.mubr.bf16.gmra.mrb[0].mxu0 %v394
  %v720 = vpop.f32.mrb[0].mxu0
  %v721 = vadd.f32 0.0, %v720
  %v722 = vpop.f32.mrb[0].mxu0
  %v723 = vpop.f32.mrb[0].mxu0
  %v724 = vadd.f32 0.0, %v723
  %v725 = vpop.f32.mrb[0].mxu0
  %726 = vmatprep.mubr.bf16.mxu0 0
  %727 = vmatmul.mubr.bf16.gmra.mrb[0].mxu0 %v395
  %v728 = vpop.f32.mrb[0].mxu0
  %v729 = vadd.f32 0.0, %v728
  %v730 = vpop.f32.mrb[0].mxu0
  %v731 = vpop.f32.mrb[0].mxu0
  %v732 = vadd.f32 0.0, %v731
  %v733 = vpop.f32.mrb[0].mxu0
  %734 = vmatprep.mubr.bf16.mxu0 0
  %735 = vmatmul.mubr.bf16.gmra.mrb[0].mxu0 %v396
  %v736 = vpop.f32.mrb[0].mxu0
  %v737 = vadd.f32 0.0, %v736
  %v738 = vpop.f32.mrb[0].mxu0
  %v739 = vpop.f32.mrb[0].mxu0
  %v740 = vadd.f32 0.0, %v739
  %v741 = vpop.f32.mrb[0].mxu0
  %742 = vmatprep.mubr.bf16.mxu0 0
  %743 = vmatmul.mubr.bf16.gmra.mrb[0].mxu0 %v397
  %v744 = vpop.f32.mrb[0].mxu0
  %v745 = vadd.f32 0.0, %v744
  %v746 = vpop.f32.mrb[0].mxu0
  %v747 = vpop.f32.mrb[0].mxu0
  %v748 = vadd.f32 0.0, %v747
  %v749 = vpop.f32.mrb[0].mxu0
  %750 = vdwg.mxu0
  %v751 = vlaneseq
  %v752 = vshrl.u32 %v751, 7
  %v753 = vsub.s32 0, %v752
  %v754 = vrot.slane %v29, %v753
  %v755 = vsub.f32 %v497, %v754
  %v756 = vsub.f32 %v500, %v754
  %v757 = vsub.f32 %v505, %v754
  %v758 = vsub.f32 %v508, %v754
  %v759 = vsub.f32 %v513, %v754
  %v760 = vsub.f32 %v516, %v754
  %v761 = vsub.f32 %v521, %v754
  %v762 = vsub.f32 %v524, %v754
  %v763 = vsub.f32 %v529, %v754
  %v764 = vsub.f32 %v532, %v754
  %v765 = vsub.f32 %v537, %v754
  %v766 = vsub.f32 %v540, %v754
  %v767 = vsub.f32 %v545, %v754
  %v768 = vsub.f32 %v548, %v754
  %v769 = vsub.f32 %v553, %v754
  %v770 = vsub.f32 %v556, %v754
  %v771 = vsub.f32 %v561, %v754
  %v772 = vsub.f32 %v564, %v754
  %v773 = vsub.f32 %v569, %v754
  %v774 = vsub.f32 %v572, %v754
  %v775 = vsub.f32 %v577, %v754
  %v776 = vsub.f32 %v580, %v754
  %v777 = vsub.f32 %v585, %v754
  %v778 = vsub.f32 %v588, %v754
  %v779 = vsub.f32 %v593, %v754
  %v780 = vsub.f32 %v596, %v754
  %v781 = vsub.f32 %v601, %v754
  %v782 = vsub.f32 %v604, %v754
  %v783 = vsub.f32 %v609, %v754
  %v784 = vsub.f32 %v612, %v754
  %v785 = vsub.f32 %v617, %v754
  %v786 = vsub.f32 %v620, %v754
  %v787 = vsub.f32 %v625, %v754
  %v788 = vsub.f32 %v628, %v754
  %v789 = vsub.f32 %v633, %v754
  %v790 = vsub.f32 %v636, %v754
  %v791 = vsub.f32 %v641, %v754
  %v792 = vsub.f32 %v644, %v754
  %v793 = vsub.f32 %v649, %v754
  %v794 = vsub.f32 %v652, %v754
  %v795 = vsub.f32 %v657, %v754
  %v796 = vsub.f32 %v660, %v754
  %v797 = vsub.f32 %v665, %v754
  %v798 = vsub.f32 %v668, %v754
  %v799 = vsub.f32 %v673, %v754
  %v800 = vsub.f32 %v676, %v754
  %v801 = vsub.f32 %v681, %v754
  %v802 = vsub.f32 %v684, %v754
  %v803 = vsub.f32 %v689, %v754
  %v804 = vsub.f32 %v692, %v754
  %v805 = vsub.f32 %v697, %v754
  %v806 = vsub.f32 %v700, %v754
  %v807 = vsub.f32 %v705, %v754
  %v808 = vsub.f32 %v708, %v754
  %v809 = vsub.f32 %v713, %v754
  %v810 = vsub.f32 %v716, %v754
  %v811 = vsub.f32 %v721, %v754
  %v812 = vsub.f32 %v724, %v754
  %v813 = vsub.f32 %v729, %v754
  %v814 = vsub.f32 %v732, %v754
  %v815 = vsub.f32 %v737, %v754
  %v816 = vsub.f32 %v740, %v754
  %v817 = vsub.f32 %v745, %v754
  %v818 = vsub.f32 %v748, %v754
  %v819 = vlaneseq
  %v820 = vshrl.u32 %v819, 7
  %v821 = vsub.s32 1, %v820
  %v822 = vrot.slane %v37, %v821
  %v823 = vmul.f32 %v755, %v822
  %v824 = vmul.f32 %v756, %v822
  %v825 = vmul.f32 %v757, %v822
  %v826 = vmul.f32 %v758, %v822
  %v827 = vmul.f32 %v759, %v822
  %v828 = vmul.f32 %v760, %v822
  %v829 = vmul.f32 %v761, %v822
  %v830 = vmul.f32 %v762, %v822
  %v831 = vmul.f32 %v763, %v822
  %v832 = vmul.f32 %v764, %v822
  %v833 = vmul.f32 %v765, %v822
  %v834 = vmul.f32 %v766, %v822
  %v835 = vmul.f32 %v767, %v822
  %v836 = vmul.f32 %v768, %v822
  %v837 = vmul.f32 %v769, %v822
  %v838 = vmul.f32 %v770, %v822
  %v839 = vmul.f32 %v771, %v822
  %v840 = vmul.f32 %v772, %v822
  %v841 = vmul.f32 %v773, %v822
  %v842 = vmul.f32 %v774, %v822
  %v843 = vmul.f32 %v775, %v822
  %v844 = vmul.f32 %v776, %v822
  %v845 = vmul.f32 %v777, %v822
  %v846 = vmul.f32 %v778, %v822
  %v847 = vmul.f32 %v779, %v822
  %v848 = vmul.f32 %v780, %v822
  %v849 = vmul.f32 %v781, %v822
  %v850 = vmul.f32 %v782, %v822
  %v851 = vmul.f32 %v783, %v822
  %v852 = vmul.f32 %v784, %v822
  %v853 = vmul.f32 %v785, %v822
  %v854 = vmul.f32 %v786, %v822
  %v855 = vmul.f32 %v787, %v822
  %v856 = vmul.f32 %v788, %v822
  %v857 = vmul.f32 %v789, %v822
  %v858 = vmul.f32 %v790, %v822
  %v859 = vmul.f32 %v791, %v822
  %v860 = vmul.f32 %v792, %v822
  %v861 = vmul.f32 %v793, %v822
  %v862 = vmul.f32 %v794, %v822
  %v863 = vmul.f32 %v795, %v822
  %v864 = vmul.f32 %v796, %v822
  %v865 = vmul.f32 %v797, %v822
  %v866 = vmul.f32 %v798, %v822
  %v867 = vmul.f32 %v799, %v822
  %v868 = vmul.f32 %v800, %v822
  %v869 = vmul.f32 %v801, %v822
  %v870 = vmul.f32 %v802, %v822
  %v871 = vmul.f32 %v803, %v822
  %v872 = vmul.f32 %v804, %v822
  %v873 = vmul.f32 %v805, %v822
  %v874 = vmul.f32 %v806, %v822
  %v875 = vmul.f32 %v807, %v822
  %v876 = vmul.f32 %v808, %v822
  %v877 = vmul.f32 %v809, %v822
  %v878 = vmul.f32 %v810, %v822
  %v879 = vmul.f32 %v811, %v822
  %v880 = vmul.f32 %v812, %v822
  %v881 = vmul.f32 %v813, %v822
  %v882 = vmul.f32 %v814, %v822
  %v883 = vmul.f32 %v815, %v822
  %v884 = vmul.f32 %v816, %v822
  %v885 = vmul.f32 %v817, %v822
  %v886 = vmul.f32 %v818, %v822
  %v887 = vadd.f32 %v238, %v823
  %v888 = vadd.f32 %v239, %v824
  %v889 = vadd.f32 %v240, %v825
  %v890 = vadd.f32 %v241, %v826
  %v891 = vadd.f32 %v242, %v827
  %v892 = vadd.f32 %v243, %v828
  %v893 = vadd.f32 %v244, %v829
  %v894 = vadd.f32 %v245, %v830
  %v895 = vadd.f32 %v246, %v831
  %v896 = vadd.f32 %v247, %v832
  %v897 = vadd.f32 %v248, %v833
  %v898 = vadd.f32 %v249, %v834
  %v899 = vadd.f32 %v250, %v835
  %v900 = vadd.f32 %v251, %v836
  %v901 = vadd.f32 %v252, %v837
  %v902 = vadd.f32 %v253, %v838
  %v903 = vadd.f32 %v254, %v839
  %v904 = vadd.f32 %v255, %v840
  %v905 = vadd.f32 %v256, %v841
  %v906 = vadd.f32 %v257, %v842
  %v907 = vadd.f32 %v258, %v843
  %v908 = vadd.f32 %v259, %v844
  %v909 = vadd.f32 %v260, %v845
  %v910 = vadd.f32 %v261, %v846
  %v911 = vadd.f32 %v262, %v847
  %v912 = vadd.f32 %v263, %v848
  %v913 = vadd.f32 %v264, %v849
  %v914 = vadd.f32 %v265, %v850
  %v915 = vadd.f32 %v266, %v851
  %v916 = vadd.f32 %v267, %v852
  %v917 = vadd.f32 %v268, %v853
  %v918 = vadd.f32 %v269, %v854
  %v919 = vadd.f32 %v270, %v855
  %v920 = vadd.f32 %v271, %v856
  %v921 = vadd.f32 %v272, %v857
  %v922 = vadd.f32 %v273, %v858
  %v923 = vadd.f32 %v274, %v859
  %v924 = vadd.f32 %v275, %v860
  %v925 = vadd.f32 %v276, %v861
  %v926 = vadd.f32 %v277, %v862
  %v927 = vadd.f32 %v278, %v863
  %v928 = vadd.f32 %v279, %v864
  %v929 = vadd.f32 %v280, %v865
  %v930 = vadd.f32 %v281, %v866
  %v931 = vadd.f32 %v282, %v867
  %v932 = vadd.f32 %v283, %v868
  %v933 = vadd.f32 %v284, %v869
  %v934 = vadd.f32 %v285, %v870
  %v935 = vadd.f32 %v286, %v871
  %v936 = vadd.f32 %v287, %v872
  %v937 = vadd.f32 %v288, %v873
  %v938 = vadd.f32 %v289, %v874
  %v939 = vadd.f32 %v290, %v875
  %v940 = vadd.f32 %v291, %v876
  %v941 = vadd.f32 %v292, %v877
  %v942 = vadd.f32 %v293, %v878
  %v943 = vadd.f32 %v294, %v879
  %v944 = vadd.f32 %v295, %v880
  %v945 = vadd.f32 %v296, %v881
  %v946 = vadd.f32 %v297, %v882
  %v947 = vadd.f32 %v298, %v883
  %v948 = vadd.f32 %v299, %v884
  %v949 = vadd.f32 %v300, %v885
  %v950 = vadd.f32 %v301, %v886
  %951 = vst [vmem:[%s4] sm:$0xff] %v887
  %952 = vst [vmem:[%s4 + $0x8] sm:$0xff] %v888
  %953 = vst [vmem:[%s4 + $0x10] sm:$0xff] %v889
  %954 = vst [vmem:[%s4 + $0x18] sm:$0xff] %v890
  %955 = vst [vmem:[%s4 + $0x20] sm:$0xff] %v891
  %956 = vst [vmem:[%s4 + $0x28] sm:$0xff] %v892
  %957 = vst [vmem:[%s4 + $0x30] sm:$0xff] %v893
  %958 = vst [vmem:[%s4 + $0x38] sm:$0xff] %v894
  %959 = vst [vmem:[%s4 + $0x40] sm:$0xff] %v895
  %960 = vst [vmem:[%s4 + $0x48] sm:$0xff] %v896
  %961 = vst [vmem:[%s4 + $0x50] sm:$0xff] %v897
  %962 = vst [vmem:[%s4 + $0x58] sm:$0xff] %v898
  %963 = vst [vmem:[%s4 + $0x60] sm:$0xff] %v899
  %964 = vst [vmem:[%s4 + $0x68] sm:$0xff] %v900
  %965 = vst [vmem:[%s4 + $0x70] sm:$0xff] %v901
  %966 = vst [vmem:[%s4 + $0x78] sm:$0xff] %v902
  %967 = vst [vmem:[%s4 + $0x80] sm:$0xff] %v903
  %968 = vst [vmem:[%s4 + $0x88] sm:$0xff] %v904
  %969 = vst [vmem:[%s4 + $0x90] sm:$0xff] %v905
  %970 = vst [vmem:[%s4 + $0x98] sm:$0xff] %v906
  %971 = vst [vmem:[%s4 + $0xa0] sm:$0xff] %v907
  %972 = vst [vmem:[%s4 + $0xa8] sm:$0xff] %v908
  %973 = vst [vmem:[%s4 + $0xb0] sm:$0xff] %v909
  %974 = vst [vmem:[%s4 + $0xb8] sm:$0xff] %v910
  %975 = vst [vmem:[%s4 + $0xc0] sm:$0xff] %v911
  %976 = vst [vmem:[%s4 + $0xc8] sm:$0xff] %v912
  %977 = vst [vmem:[%s4 + $0xd0] sm:$0xff] %v913
  %978 = vst [vmem:[%s4 + $0xd8] sm:$0xff] %v914
  %979 = vst [vmem:[%s4 + $0xe0] sm:$0xff] %v915
  %980 = vst [vmem:[%s4 + $0xe8] sm:$0xff] %v916
  %981 = vst [vmem:[%s4 + $0xf0] sm:$0xff] %v917
  %982 = vst [vmem:[%s4 + $0xf8] sm:$0xff] %v918
  %983 = vst [vmem:[%s4 + $0x100] sm:$0xff] %v919
  %984 = vst [vmem:[%s4 + $0x108] sm:$0xff] %v920
  %985 = vst [vmem:[%s4 + $0x110] sm:$0xff] %v921
  %986 = vst [vmem:[%s4 + $0x118] sm:$0xff] %v922
  %987 = vst [vmem:[%s4 + $0x120] sm:$0xff] %v923
  %988 = vst [vmem:[%s4 + $0x128] sm:$0xff] %v924
  %989 = vst [vmem:[%s4 + $0x130] sm:$0xff] %v925
  %990 = vst [vmem:[%s4 + $0x138] sm:$0xff] %v926
  %991 = vst [vmem:[%s4 + $0x140] sm:$0xff] %v927
  %992 = vst [vmem:[%s4 + $0x148] sm:$0xff] %v928
  %993 = vst [vmem:[%s4 + $0x150] sm:$0xff] %v929
  %994 = vst [vmem:[%s4 + $0x158] sm:$0xff] %v930
  %995 = vst [vmem:[%s4 + $0x160] sm:$0xff] %v931
  %996 = vst [vmem:[%s4 + $0x168] sm:$0xff] %v932
  %997 = vst [vmem:[%s4 + $0x170] sm:$0xff] %v933
  %998 = vst [vmem:[%s4 + $0x178] sm:$0xff] %v934
  %999 = vst [vmem:[%s4 + $0x180] sm:$0xff] %v935
  %1000 = vst [vmem:[%s4 + $0x188] sm:$0xff] %v936
  %1001 = vst [vmem:[%s4 + $0x190] sm:$0xff] %v937
  %1002 = vst [vmem:[%s4 + $0x198] sm:$0xff] %v938
  %1003 = vst [vmem:[%s4 + $0x1a0] sm:$0xff] %v939
  %1004 = vst [vmem:[%s4 + $0x1a8] sm:$0xff] %v940
  %1005 = vst [vmem:[%s4 + $0x1b0] sm:$0xff] %v941
  %1006 = vst [vmem:[%s4 + $0x1b8] sm:$0xff] %v942
  %1007 = vst [vmem:[%s4 + $0x1c0] sm:$0xff] %v943
  %1008 = vst [vmem:[%s4 + $0x1c8] sm:$0xff] %v944
  %1009 = vst [vmem:[%s4 + $0x1d0] sm:$0xff] %v945
  %1010 = vst [vmem:[%s4 + $0x1d8] sm:$0xff] %v946
  %1011 = vst [vmem:[%s4 + $0x1e0] sm:$0xff] %v947
  %1012 = vst [vmem:[%s4 + $0x1e8] sm:$0xff] %v948
  %1013 = vst [vmem:[%s4 + $0x1f0] sm:$0xff] %v949
  %1014 = vst [vmem:[%s4 + $0x1f8] sm:$0xff] %v950
  // Predicated region
  $region18: #{cell_fcdag_forward.5} parent=0 // pred_check
    _
  $region19: #{cell_fcdag_forward.5} parent=0 // pred_check_branch
    %1016 = sbr.rel (0) target = $region21
  $region20: #{cell_fcdag_forward.5} parent=0 // pred_region
    _
  $region21: #{cell_fcdag_forward.5} parent=0 // pred_fallthru
    _
  // Predicated region
  $region22: #{cell_fcdag_forward.5} parent=0 // pred_check
    _
  $region23: #{cell_fcdag_forward.5} parent=0 // pred_check_branch
    %1018 = sbr.rel (0) target = $region25
  $region24: #{cell_fcdag_forward.5} parent=0 // pred_region
    _
  $region25: #{cell_fcdag_forward.5} parent=0 // pred_fallthru
    _

// kernel: cell_fcdag_forward.3
$region0: #{cell_fcdag_forward.3}
  #allocation0 [shape = 'u32[]', space=smem, size = 0x4, offset = 0x4, fixed_abs, tag = 'smem constant byte address 0x4 - core index']
  #allocation1 [shape = 'u32[144,128]{1,0:T(1,128)}', space=vmem, size = 0x12000, scoped, tag = 'internal scratch']
  %s0 = inlined_call_operand.vmem [shape: bf16[512,128], index: 0, kind: input, shape index: {}]
  %s1 = inlined_call_operand.vmem [shape: bf16[128,128], index: 1, kind: input, shape index: {}]
  %s2 = inlined_call_operand.vmem [shape: bf16[512,128], index: 2, kind: output, shape index: {0}]
  %s3 = inlined_call_operand.vmem [shape: f32[1,2,128], index: 3, kind: output, shape index: {1}]
  %4 = xla_tuple %s2, %s3
  %s5 = sld [smem:[#allocation0]]
  $region26: #{cell_fcdag_forward.3} parent=0
    _
  %s7 = ssub.s32 1, %s5
  %s8 = scalar_select 0, %s7, %s5
  // Predicated region
  $region2: #{cell_fcdag_forward.3} parent=0 // pred_check
    _
  $region3: #{cell_fcdag_forward.3} parent=0 // pred_check_branch
    %10 = sbr.rel (0) target = $region5
  $region4: #{cell_fcdag_forward.3} parent=0 // pred_region
    _
  $region5: #{cell_fcdag_forward.3} parent=0 // pred_fallthru
    _
  // Predicated region
  $region6: #{cell_fcdag_forward.3} parent=0 // pred_check
    _
  $region7: #{cell_fcdag_forward.3} parent=0 // pred_check_branch
    %12 = sbr.rel (0) target = $region9
  $region8: #{cell_fcdag_forward.3} parent=0 // pred_region
    _
  $region9: #{cell_fcdag_forward.3} parent=0 // pred_fallthru
    _
  %v14 = vld [vmem:[%s0] sm:$0xf]
  %v15 = vld [vmem:[%s0 + $0x4] sm:$0xf]
  %v16 = vld [vmem:[%s0 + $0x8] sm:$0xf]
  %v17 = vld [vmem:[%s0 + $0xc] sm:$0xf]
  %v18 = vld [vmem:[%s0 + $0x10] sm:$0xf]
  %v19 = vld [vmem:[%s0 + $0x14] sm:$0xf]
  %v20 = vld [vmem:[%s0 + $0x18] sm:$0xf]
  %v21 = vld [vmem:[%s0 + $0x1c] sm:$0xf]
  %v22 = vld [vmem:[%s0 + $0x20] sm:$0xf]
  %v23 = vld [vmem:[%s0 + $0x24] sm:$0xf]
  %v24 = vld [vmem:[%s0 + $0x28] sm:$0xf]
  %v25 = vld [vmem:[%s0 + $0x2c] sm:$0xf]
  %v26 = vld [vmem:[%s0 + $0x30] sm:$0xf]
  %v27 = vld [vmem:[%s0 + $0x34] sm:$0xf]
  %v28 = vld [vmem:[%s0 + $0x38] sm:$0xf]
  %v29 = vld [vmem:[%s0 + $0x3c] sm:$0xf]
  %v30 = vld [vmem:[%s0 + $0x40] sm:$0xf]
  %v31 = vld [vmem:[%s0 + $0x44] sm:$0xf]
  %v32 = vld [vmem:[%s0 + $0x48] sm:$0xf]
  %v33 = vld [vmem:[%s0 + $0x4c] sm:$0xf]
  %v34 = vld [vmem:[%s0 + $0x50] sm:$0xf]
  %v35 = vld [vmem:[%s0 + $0x54] sm:$0xf]
  %v36 = vld [vmem:[%s0 + $0x58] sm:$0xf]
  %v37 = vld [vmem:[%s0 + $0x5c] sm:$0xf]
  %v38 = vld [vmem:[%s0 + $0x60] sm:$0xf]
  %v39 = vld [vmem:[%s0 + $0x64] sm:$0xf]
  %v40 = vld [vmem:[%s0 + $0x68] sm:$0xf]
  %v41 = vld [vmem:[%s0 + $0x6c] sm:$0xf]
  %v42 = vld [vmem:[%s0 + $0x70] sm:$0xf]
  %v43 = vld [vmem:[%s0 + $0x74] sm:$0xf]
  %v44 = vld [vmem:[%s0 + $0x78] sm:$0xf]
  %v45 = vld [vmem:[%s0 + $0x7c] sm:$0xf]
  %v46 = vld [vmem:[%s0 + $0x80] sm:$0xf]
  %v47 = vld [vmem:[%s0 + $0x84] sm:$0xf]
  %v48 = vld [vmem:[%s0 + $0x88] sm:$0xf]
  %v49 = vld [vmem:[%s0 + $0x8c] sm:$0xf]
  %v50 = vld [vmem:[%s0 + $0x90] sm:$0xf]
  %v51 = vld [vmem:[%s0 + $0x94] sm:$0xf]
  %v52 = vld [vmem:[%s0 + $0x98] sm:$0xf]
  %v53 = vld [vmem:[%s0 + $0x9c] sm:$0xf]
  %v54 = vld [vmem:[%s0 + $0xa0] sm:$0xf]
  %v55 = vld [vmem:[%s0 + $0xa4] sm:$0xf]
  %v56 = vld [vmem:[%s0 + $0xa8] sm:$0xf]
  %v57 = vld [vmem:[%s0 + $0xac] sm:$0xf]
  %v58 = vld [vmem:[%s0 + $0xb0] sm:$0xf]
  %v59 = vld [vmem:[%s0 + $0xb4] sm:$0xf]
  %v60 = vld [vmem:[%s0 + $0xb8] sm:$0xf]
  %v61 = vld [vmem:[%s0 + $0xbc] sm:$0xf]
  %v62 = vld [vmem:[%s0 + $0xc0] sm:$0xf]
  %v63 = vld [vmem:[%s0 + $0xc4] sm:$0xf]
  %v64 = vld [vmem:[%s0 + $0xc8] sm:$0xf]
  %v65 = vld [vmem:[%s0 + $0xcc] sm:$0xf]
  %v66 = vld [vmem:[%s0 + $0xd0] sm:$0xf]
  %v67 = vld [vmem:[%s0 + $0xd4] sm:$0xf]
  %v68 = vld [vmem:[%s0 + $0xd8] sm:$0xf]
  %v69 = vld [vmem:[%s0 + $0xdc] sm:$0xf]
  %v70 = vld [vmem:[%s0 + $0xe0] sm:$0xf]
  %v71 = vld [vmem:[%s0 + $0xe4] sm:$0xf]
  %v72 = vld [vmem:[%s0 + $0xe8] sm:$0xf]
  %v73 = vld [vmem:[%s0 + $0xec] sm:$0xf]
  %v74 = vld [vmem:[%s0 + $0xf0] sm:$0xf]
  %v75 = vld [vmem:[%s0 + $0xf4] sm:$0xf]
  %v76 = vld [vmem:[%s0 + $0xf8] sm:$0xf]
  %v77 = vld [vmem:[%s0 + $0xfc] sm:$0xf]
  %v78 = vmax.bf16 %v14, 0
  %v79 = vmax.bf16 %v15, 0
  %v80 = vmax.bf16 %v16, 0
  %v81 = vmax.bf16 %v17, 0
  %v82 = vmax.bf16 %v18, 0
  %v83 = vmax.bf16 %v19, 0
  %v84 = vmax.bf16 %v20, 0
  %v85 = vmax.bf16 %v21, 0
  %v86 = vmax.bf16 %v22, 0
  %v87 = vmax.bf16 %v23, 0
  %v88 = vmax.bf16 %v24, 0
  %v89 = vmax.bf16 %v25, 0
  %v90 = vmax.bf16 %v26, 0
  %v91 = vmax.bf16 %v27, 0
  %v92 = vmax.bf16 %v28, 0
  %v93 = vmax.bf16 %v29, 0
  %v94 = vmax.bf16 %v30, 0
  %v95 = vmax.bf16 %v31, 0
  %v96 = vmax.bf16 %v32, 0
  %v97 = vmax.bf16 %v33, 0
  %v98 = vmax.bf16 %v34, 0
  %v99 = vmax.bf16 %v35, 0
  %v100 = vmax.bf16 %v36, 0
  %v101 = vmax.bf16 %v37, 0
  %v102 = vmax.bf16 %v38, 0
  %v103 = vmax.bf16 %v39, 0
  %v104 = vmax.bf16 %v40, 0
  %v105 = vmax.bf16 %v41, 0
  %v106 = vmax.bf16 %v42, 0
  %v107 = vmax.bf16 %v43, 0
  %v108 = vmax.bf16 %v44, 0
  %v109 = vmax.bf16 %v45, 0
  %v110 = vmax.bf16 %v46, 0
  %v111 = vmax.bf16 %v47, 0
  %v112 = vmax.bf16 %v48, 0
  %v113 = vmax.bf16 %v49, 0
  %v114 = vmax.bf16 %v50, 0
  %v115 = vmax.bf16 %v51, 0
  %v116 = vmax.bf16 %v52, 0
  %v117 = vmax.bf16 %v53, 0
  %v118 = vmax.bf16 %v54, 0
  %v119 = vmax.bf16 %v55, 0
  %v120 = vmax.bf16 %v56, 0
  %v121 = vmax.bf16 %v57, 0
  %v122 = vmax.bf16 %v58, 0
  %v123 = vmax.bf16 %v59, 0
  %v124 = vmax.bf16 %v60, 0
  %v125 = vmax.bf16 %v61, 0
  %v126 = vmax.bf16 %v62, 0
  %v127 = vmax.bf16 %v63, 0
  %v128 = vmax.bf16 %v64, 0
  %v129 = vmax.bf16 %v65, 0
  %v130 = vmax.bf16 %v66, 0
  %v131 = vmax.bf16 %v67, 0
  %v132 = vmax.bf16 %v68, 0
  %v133 = vmax.bf16 %v69, 0
  %v134 = vmax.bf16 %v70, 0
  %v135 = vmax.bf16 %v71, 0
  %v136 = vmax.bf16 %v72, 0
  %v137 = vmax.bf16 %v73, 0
  %v138 = vmax.bf16 %v74, 0
  %v139 = vmax.bf16 %v75, 0
  %v140 = vmax.bf16 %v76, 0
  %v141 = vmax.bf16 %v77, 0
  %v142 = vld [vmem:[%s1] sm:$0xf]
  %v143 = vld [vmem:[%s1 + $0x4] sm:$0xf]
  %v144 = vld [vmem:[%s1 + $0x8] sm:$0xf]
  %v145 = vld [vmem:[%s1 + $0xc] sm:$0xf]
  %v146 = vld [vmem:[%s1 + $0x10] sm:$0xf]
  %v147 = vld [vmem:[%s1 + $0x14] sm:$0xf]
  %v148 = vld [vmem:[%s1 + $0x18] sm:$0xf]
  %v149 = vld [vmem:[%s1 + $0x1c] sm:$0xf]
  %v150 = vld [vmem:[%s1 + $0x20] sm:$0xf]
  %v151 = vld [vmem:[%s1 + $0x24] sm:$0xf]
  %v152 = vld [vmem:[%s1 + $0x28] sm:$0xf]
  %v153 = vld [vmem:[%s1 + $0x2c] sm:$0xf]
  %v154 = vld [vmem:[%s1 + $0x30] sm:$0xf]
  %v155 = vld [vmem:[%s1 + $0x34] sm:$0xf]
  %v156 = vld [vmem:[%s1 + $0x38] sm:$0xf]
  %v157 = vld [vmem:[%s1 + $0x3c] sm:$0xf]
  %v222 = vunpack.c.l.b16 %v78
  %v223 = vunpack.c.l.b16 %v79
  %v224 = vunpack.c.l.b16 %v80
  %v225 = vunpack.c.l.b16 %v81
  %v226 = vunpack.c.l.b16 %v82
  %v227 = vunpack.c.l.b16 %v83
  %v228 = vunpack.c.l.b16 %v84
  %v229 = vunpack.c.l.b16 %v85
  %v230 = vunpack.c.l.b16 %v86
  %v231 = vunpack.c.l.b16 %v87
  %v232 = vunpack.c.l.b16 %v88
  %v233 = vunpack.c.l.b16 %v89
  %v234 = vunpack.c.l.b16 %v90
  %v235 = vunpack.c.l.b16 %v91
  %v236 = vunpack.c.l.b16 %v92
  %v237 = vunpack.c.l.b16 %v93
  %v238 = vunpack.c.l.b16 %v94
  %v239 = vunpack.c.l.b16 %v95
  %v240 = vunpack.c.l.b16 %v96
  %v241 = vunpack.c.l.b16 %v97
  %v242 = vunpack.c.l.b16 %v98
  %v243 = vunpack.c.l.b16 %v99
  %v244 = vunpack.c.l.b16 %v100
  %v245 = vunpack.c.l.b16 %v101
  %v246 = vunpack.c.l.b16 %v102
  %v247 = vunpack.c.l.b16 %v103
  %v248 = vunpack.c.l.b16 %v104
  %v249 = vunpack.c.l.b16 %v105
  %v250 = vunpack.c.l.b16 %v106
  %v251 = vunpack.c.l.b16 %v107
  %v252 = vunpack.c.l.b16 %v108
  %v253 = vunpack.c.l.b16 %v109
  %v254 = vunpack.c.l.b16 %v110
  %v255 = vunpack.c.l.b16 %v111
  %v256 = vunpack.c.l.b16 %v112
  %v257 = vunpack.c.l.b16 %v113
  %v258 = vunpack.c.l.b16 %v114
  %v259 = vunpack.c.l.b16 %v115
  %v260 = vunpack.c.l.b16 %v116
  %v261 = vunpack.c.l.b16 %v117
  %v262 = vunpack.c.l.b16 %v118
  %v263 = vunpack.c.l.b16 %v119
  %v264 = vunpack.c.l.b16 %v120
  %v265 = vunpack.c.l.b16 %v121
  %v266 = vunpack.c.l.b16 %v122
  %v267 = vunpack.c.l.b16 %v123
  %v268 = vunpack.c.l.b16 %v124
  %v269 = vunpack.c.l.b16 %v125
  %v270 = vunpack.c.l.b16 %v126
  %v271 = vunpack.c.l.b16 %v127
  %v272 = vunpack.c.l.b16 %v128
  %v273 = vunpack.c.l.b16 %v129
  %v274 = vunpack.c.l.b16 %v130
  %v275 = vunpack.c.l.b16 %v131
  %v276 = vunpack.c.l.b16 %v132
  %v277 = vunpack.c.l.b16 %v133
  %v278 = vunpack.c.l.b16 %v134
  %v279 = vunpack.c.l.b16 %v135
  %v280 = vunpack.c.l.b16 %v136
  %v281 = vunpack.c.l.b16 %v137
  %v282 = vunpack.c.l.b16 %v138
  %v283 = vunpack.c.l.b16 %v139
  %v284 = vunpack.c.l.b16 %v140
  %v285 = vunpack.c.l.b16 %v141
  %v286 = vpack.c.b16 %v223, %v222
  %v287 = vpack.c.b16 %v225, %v224
  %v288 = vpack.c.b16 %v227, %v226
  %v289 = vpack.c.b16 %v229, %v228
  %v290 = vpack.c.b16 %v231, %v230
  %v291 = vpack.c.b16 %v233, %v232
  %v292 = vpack.c.b16 %v235, %v234
  %v293 = vpack.c.b16 %v237, %v236
  %v294 = vpack.c.b16 %v239, %v238
  %v295 = vpack.c.b16 %v241, %v240
  %v296 = vpack.c.b16 %v243, %v242
  %v297 = vpack.c.b16 %v245, %v244
  %v298 = vpack.c.b16 %v247, %v246
  %v299 = vpack.c.b16 %v249, %v248
  %v300 = vpack.c.b16 %v251, %v250
  %v301 = vpack.c.b16 %v253, %v252
  %v302 = vpack.c.b16 %v255, %v254
  %v303 = vpack.c.b16 %v257, %v256
  %v304 = vpack.c.b16 %v259, %v258
  %v305 = vpack.c.b16 %v261, %v260
  %v306 = vpack.c.b16 %v263, %v262
  %v307 = vpack.c.b16 %v265, %v264
  %v308 = vpack.c.b16 %v267, %v266
  %v309 = vpack.c.b16 %v269, %v268
  %v310 = vpack.c.b16 %v271, %v270
  %v311 = vpack.c.b16 %v273, %v272
  %v312 = vpack.c.b16 %v275, %v274
  %v313 = vpack.c.b16 %v277, %v276
  %v314 = vpack.c.b16 %v279, %v278
  %v315 = vpack.c.b16 %v281, %v280
  %v316 = vpack.c.b16 %v283, %v282
  %v317 = vpack.c.b16 %v285, %v284
  %v366 = vunpack.c.l.b16 %v142
  %v367 = vunpack.c.l.b16 %v143
  %v368 = vunpack.c.l.b16 %v144
  %v369 = vunpack.c.l.b16 %v145
  %v370 = vunpack.c.l.b16 %v146
  %v371 = vunpack.c.l.b16 %v147
  %v372 = vunpack.c.l.b16 %v148
  %v373 = vunpack.c.l.b16 %v149
  %v374 = vunpack.c.l.b16 %v150
  %v375 = vunpack.c.l.b16 %v151
  %v376 = vunpack.c.l.b16 %v152
  %v377 = vunpack.c.l.b16 %v153
  %v378 = vunpack.c.l.b16 %v154
  %v379 = vunpack.c.l.b16 %v155
  %v380 = vunpack.c.l.b16 %v156
  %v381 = vunpack.c.l.b16 %v157
  %v382 = vpack.c.b16 %v367, %v366
  %v383 = vpack.c.b16 %v369, %v368
  %v384 = vpack.c.b16 %v371, %v370
  %v385 = vpack.c.b16 %v373, %v372
  %v386 = vpack.c.b16 %v375, %v374
  %v387 = vpack.c.b16 %v377, %v376
  %v388 = vpack.c.b16 %v379, %v378
  %v389 = vpack.c.b16 %v381, %v380
  %398 = vmatprep.subr.bf16.mxu0 0
  %399 = vmatpush1.bf16.msra.mxu0 %v382
  %400 = vmatprep.subr.bf16.mxu0 0
  %401 = vmatpush1.bf16.msra.mxu0 %v383
  %402 = vmatprep.subr.bf16.mxu0 0
  %403 = vmatpush1.bf16.msra.mxu0 %v384
  %404 = vmatprep.subr.bf16.mxu0 0
  %405 = vmatpush1.bf16.msra.mxu0 %v385
  %406 = vmatprep.subr.bf16.mxu0 0
  %407 = vmatpush1.bf16.msra.mxu0 %v386
  %408 = vmatprep.subr.bf16.mxu0 0
  %409 = vmatpush1.bf16.msra.mxu0 %v387
  %410 = vmatprep.subr.bf16.mxu0 0
  %411 = vmatpush1.bf16.msra.mxu0 %v388
  %412 = vmatprep.subr.bf16.mxu0 0
  %413 = vmatpush1.bf16.msra.mxu0 %v389
  %414 = vmatprep.subr.bf16.mxu0 0
  %415 = vmatpush1.bf16.msra.mxu0 0
  %416 = vmatprep.subr.bf16.mxu0 0
  %417 = vmatpush1.bf16.msra.mxu0 0
  %418 = vmatprep.subr.bf16.mxu0 0
  %419 = vmatpush1.bf16.msra.mxu0 0
  %420 = vmatprep.subr.bf16.mxu0 0
  %421 = vmatpush1.bf16.msra.mxu0 0
  %422 = vmatprep.subr.bf16.mxu0 0
  %423 = vmatpush1.bf16.msra.mxu0 0
  %424 = vmatprep.subr.bf16.mxu0 0
  %425 = vmatpush1.bf16.msra.mxu0 0
  %426 = vmatprep.subr.bf16.mxu0 0
  %427 = vmatpush1.bf16.msra.mxu0 0
  %428 = vmatprep.subr.bf16.mxu0 0
  %429 = vmatpush1.bf16.msra.mxu0 0
  %430 = vmatprep.mubr.bf16.mxu0 0
  %431 = vmatmul.mubr.bf16.gmra.mrb[0].mxu0 %v286
  %v432 = vpop.f32.mrb[0].mxu0
  %v433 = vadd.f32 0.0, %v432
  %v434 = vpop.f32.mrb[0].mxu0
  %v435 = vpop.f32.mrb[0].mxu0
  %v436 = vadd.f32 0.0, %v435
  %v437 = vpop.f32.mrb[0].mxu0
  %438 = vmatprep.mubr.bf16.mxu0 0
  %439 = vmatmul.mubr.bf16.gmra.mrb[0].mxu0 %v287
  %v440 = vpop.f32.mrb[0].mxu0
  %v441 = vadd.f32 0.0, %v440
  %v442 = vpop.f32.mrb[0].mxu0
  %v443 = vpop.f32.mrb[0].mxu0
  %v444 = vadd.f32 0.0, %v443
  %v445 = vpop.f32.mrb[0].mxu0
  %446 = vmatprep.mubr.bf16.mxu0 0
  %447 = vmatmul.mubr.bf16.gmra.mrb[0].mxu0 %v288
  %v448 = vpop.f32.mrb[0].mxu0
  %v449 = vadd.f32 0.0, %v448
  %v450 = vpop.f32.mrb[0].mxu0
  %v451 = vpop.f32.mrb[0].mxu0
  %v452 = vadd.f32 0.0, %v451
  %v453 = vpop.f32.mrb[0].mxu0
  %454 = vmatprep.mubr.bf16.mxu0 0
  %455 = vmatmul.mubr.bf16.gmra.mrb[0].mxu0 %v289
  %v456 = vpop.f32.mrb[0].mxu0
  %v457 = vadd.f32 0.0, %v456
  %v458 = vpop.f32.mrb[0].mxu0
  %v459 = vpop.f32.mrb[0].mxu0
  %v460 = vadd.f32 0.0, %v459
  %v461 = vpop.f32.mrb[0].mxu0
  %462 = vmatprep.mubr.bf16.mxu0 0
  %463 = vmatmul.mubr.bf16.gmra.mrb[0].mxu0 %v290
  %v464 = vpop.f32.mrb[0].mxu0
  %v465 = vadd.f32 0.0, %v464
  %v466 = vpop.f32.mrb[0].mxu0
  %v467 = vpop.f32.mrb[0].mxu0
  %v468 = vadd.f32 0.0, %v467
  %v469 = vpop.f32.mrb[0].mxu0
  %470 = vmatprep.mubr.bf16.mxu0 0
  %471 = vmatmul.mubr.bf16.gmra.mrb[0].mxu0 %v291
  %v472 = vpop.f32.mrb[0].mxu0
  %v473 = vadd.f32 0.0, %v472
  %v474 = vpop.f32.mrb[0].mxu0
  %v475 = vpop.f32.mrb[0].mxu0
  %v476 = vadd.f32 0.0, %v475
  %v477 = vpop.f32.mrb[0].mxu0
  %478 = vmatprep.mubr.bf16.mxu0 0
  %479 = vmatmul.mubr.bf16.gmra.mrb[0].mxu0 %v292
  %v480 = vpop.f32.mrb[0].mxu0
  %v481 = vadd.f32 0.0, %v480
  %v482 = vpop.f32.mrb[0].mxu0
  %v483 = vpop.f32.mrb[0].mxu0
  %v484 = vadd.f32 0.0, %v483
  %v485 = vpop.f32.mrb[0].mxu0
  %486 = vmatprep.mubr.bf16.mxu0 0
  %487 = vmatmul.mubr.bf16.gmra.mrb[0].mxu0 %v293
  %v488 = vpop.f32.mrb[0].mxu0
  %v489 = vadd.f32 0.0, %v488
  %v490 = vpop.f32.mrb[0].mxu0
  %v491 = vpop.f32.mrb[0].mxu0
  %v492 = vadd.f32 0.0, %v491
  %v493 = vpop.f32.mrb[0].mxu0
  %494 = vmatprep.mubr.bf16.mxu0 0
  %495 = vmatmul.mubr.bf16.gmra.mrb[0].mxu0 %v294
  %v496 = vpop.f32.mrb[0].mxu0
  %v497 = vadd.f32 0.0, %v496
  %v498 = vpop.f32.mrb[0].mxu0
  %v499 = vpop.f32.mrb[0].mxu0
  %v500 = vadd.f32 0.0, %v499
  %v501 = vpop.f32.mrb[0].mxu0
  %502 = vmatprep.mubr.bf16.mxu0 0
  %503 = vmatmul.mubr.bf16.gmra.mrb[0].mxu0 %v295
  %v504 = vpop.f32.mrb[0].mxu0
  %v505 = vadd.f32 0.0, %v504
  %v506 = vpop.f32.mrb[0].mxu0
  %v507 = vpop.f32.mrb[0].mxu0
  %v508 = vadd.f32 0.0, %v507
  %v509 = vpop.f32.mrb[0].mxu0
  %510 = vmatprep.mubr.bf16.mxu0 0
  %511 = vmatmul.mubr.bf16.gmra.mrb[0].mxu0 %v296
  %v512 = vpop.f32.mrb[0].mxu0
  %v513 = vadd.f32 0.0, %v512
  %v514 = vpop.f32.mrb[0].mxu0
  %v515 = vpop.f32.mrb[0].mxu0
  %v516 = vadd.f32 0.0, %v515
  %v517 = vpop.f32.mrb[0].mxu0
  %518 = vmatprep.mubr.bf16.mxu0 0
  %519 = vmatmul.mubr.bf16.gmra.mrb[0].mxu0 %v297
  %v520 = vpop.f32.mrb[0].mxu0
  %v521 = vadd.f32 0.0, %v520
  %v522 = vpop.f32.mrb[0].mxu0
  %v523 = vpop.f32.mrb[0].mxu0
  %v524 = vadd.f32 0.0, %v523
  %v525 = vpop.f32.mrb[0].mxu0
  %526 = vmatprep.mubr.bf16.mxu0 0
  %527 = vmatmul.mubr.bf16.gmra.mrb[0].mxu0 %v298
  %v528 = vpop.f32.mrb[0].mxu0
  %v529 = vadd.f32 0.0, %v528
  %v530 = vpop.f32.mrb[0].mxu0
  %v531 = vpop.f32.mrb[0].mxu0
  %v532 = vadd.f32 0.0, %v531
  %v533 = vpop.f32.mrb[0].mxu0
  %534 = vmatprep.mubr.bf16.mxu0 0
  %535 = vmatmul.mubr.bf16.gmra.mrb[0].mxu0 %v299
  %v536 = vpop.f32.mrb[0].mxu0
  %v537 = vadd.f32 0.0, %v536
  %v538 = vpop.f32.mrb[0].mxu0
  %v539 = vpop.f32.mrb[0].mxu0
  %v540 = vadd.f32 0.0, %v539
  %v541 = vpop.f32.mrb[0].mxu0
  %542 = vmatprep.mubr.bf16.mxu0 0
  %543 = vmatmul.mubr.bf16.gmra.mrb[0].mxu0 %v300
  %v544 = vpop.f32.mrb[0].mxu0
  %v545 = vadd.f32 0.0, %v544
  %v546 = vpop.f32.mrb[0].mxu0
  %v547 = vpop.f32.mrb[0].mxu0
  %v548 = vadd.f32 0.0, %v547
  %v549 = vpop.f32.mrb[0].mxu0
  %550 = vmatprep.mubr.bf16.mxu0 0
  %551 = vmatmul.mubr.bf16.gmra.mrb[0].mxu0 %v301
  %v552 = vpop.f32.mrb[0].mxu0
  %v553 = vadd.f32 0.0, %v552
  %v554 = vpop.f32.mrb[0].mxu0
  %v555 = vpop.f32.mrb[0].mxu0
  %v556 = vadd.f32 0.0, %v555
  %v557 = vpop.f32.mrb[0].mxu0
  %558 = vmatprep.mubr.bf16.mxu0 0
  %559 = vmatmul.mubr.bf16.gmra.mrb[0].mxu0 %v302
  %v560 = vpop.f32.mrb[0].mxu0
  %v561 = vadd.f32 0.0, %v560
  %v562 = vpop.f32.mrb[0].mxu0
  %v563 = vpop.f32.mrb[0].mxu0
  %v564 = vadd.f32 0.0, %v563
  %v565 = vpop.f32.mrb[0].mxu0
  %566 = vmatprep.mubr.bf16.mxu0 0
  %567 = vmatmul.mubr.bf16.gmra.mrb[0].mxu0 %v303
  %v568 = vpop.f32.mrb[0].mxu0
  %v569 = vadd.f32 0.0, %v568
  %v570 = vpop.f32.mrb[0].mxu0
  %v571 = vpop.f32.mrb[0].mxu0
  %v572 = vadd.f32 0.0, %v571
  %v573 = vpop.f32.mrb[0].mxu0
  %574 = vmatprep.mubr.bf16.mxu0 0
  %575 = vmatmul.mubr.bf16.gmra.mrb[0].mxu0 %v304
  %v576 = vpop.f32.mrb[0].mxu0
  %v577 = vadd.f32 0.0, %v576
  %v578 = vpop.f32.mrb[0].mxu0
  %v579 = vpop.f32.mrb[0].mxu0
  %v580 = vadd.f32 0.0, %v579
  %v581 = vpop.f32.mrb[0].mxu0
  %582 = vmatprep.mubr.bf16.mxu0 0
  %583 = vmatmul.mubr.bf16.gmra.mrb[0].mxu0 %v305
  %v584 = vpop.f32.mrb[0].mxu0
  %v585 = vadd.f32 0.0, %v584
  %v586 = vpop.f32.mrb[0].mxu0
  %v587 = vpop.f32.mrb[0].mxu0
  %v588 = vadd.f32 0.0, %v587
  %v589 = vpop.f32.mrb[0].mxu0
  %590 = vmatprep.mubr.bf16.mxu0 0
  %591 = vmatmul.mubr.bf16.gmra.mrb[0].mxu0 %v306
  %v592 = vpop.f32.mrb[0].mxu0
  %v593 = vadd.f32 0.0, %v592
  %v594 = vpop.f32.mrb[0].mxu0
  %v595 = vpop.f32.mrb[0].mxu0
  %v596 = vadd.f32 0.0, %v595
  %v597 = vpop.f32.mrb[0].mxu0
  %598 = vmatprep.mubr.bf16.mxu0 0
  %599 = vmatmul.mubr.bf16.gmra.mrb[0].mxu0 %v307
  %v600 = vpop.f32.mrb[0].mxu0
  %v601 = vadd.f32 0.0, %v600
  %v602 = vpop.f32.mrb[0].mxu0
  %v603 = vpop.f32.mrb[0].mxu0
  %v604 = vadd.f32 0.0, %v603
  %v605 = vpop.f32.mrb[0].mxu0
  %606 = vmatprep.mubr.bf16.mxu0 0
  %607 = vmatmul.mubr.bf16.gmra.mrb[0].mxu0 %v308
  %v608 = vpop.f32.mrb[0].mxu0
  %v609 = vadd.f32 0.0, %v608
  %v610 = vpop.f32.mrb[0].mxu0
  %v611 = vpop.f32.mrb[0].mxu0
  %v612 = vadd.f32 0.0, %v611
  %v613 = vpop.f32.mrb[0].mxu0
  %614 = vmatprep.mubr.bf16.mxu0 0
  %615 = vmatmul.mubr.bf16.gmra.mrb[0].mxu0 %v309
  %v616 = vpop.f32.mrb[0].mxu0
  %v617 = vadd.f32 0.0, %v616
  %v618 = vpop.f32.mrb[0].mxu0
  %v619 = vpop.f32.mrb[0].mxu0
  %v620 = vadd.f32 0.0, %v619
  %v621 = vpop.f32.mrb[0].mxu0
  %622 = vmatprep.mubr.bf16.mxu0 0
  %623 = vmatmul.mubr.bf16.gmra.mrb[0].mxu0 %v310
  %v624 = vpop.f32.mrb[0].mxu0
  %v625 = vadd.f32 0.0, %v624
  %v626 = vpop.f32.mrb[0].mxu0
  %v627 = vpop.f32.mrb[0].mxu0
  %v628 = vadd.f32 0.0, %v627
  %v629 = vpop.f32.mrb[0].mxu0
  %630 = vmatprep.mubr.bf16.mxu0 0
  %631 = vmatmul.mubr.bf16.gmra.mrb[0].mxu0 %v311
  %v632 = vpop.f32.mrb[0].mxu0
  %v633 = vadd.f32 0.0, %v632
  %v634 = vpop.f32.mrb[0].mxu0
  %v635 = vpop.f32.mrb[0].mxu0
  %v636 = vadd.f32 0.0, %v635
  %v637 = vpop.f32.mrb[0].mxu0
  %638 = vmatprep.mubr.bf16.mxu0 0
  %639 = vmatmul.mubr.bf16.gmra.mrb[0].mxu0 %v312
  %v640 = vpop.f32.mrb[0].mxu0
  %v641 = vadd.f32 0.0, %v640
  %v642 = vpop.f32.mrb[0].mxu0
  %v643 = vpop.f32.mrb[0].mxu0
  %v644 = vadd.f32 0.0, %v643
  %v645 = vpop.f32.mrb[0].mxu0
  %646 = vmatprep.mubr.bf16.mxu0 0
  %647 = vmatmul.mubr.bf16.gmra.mrb[0].mxu0 %v313
  %v648 = vpop.f32.mrb[0].mxu0
  %v649 = vadd.f32 0.0, %v648
  %v650 = vpop.f32.mrb[0].mxu0
  %v651 = vpop.f32.mrb[0].mxu0
  %v652 = vadd.f32 0.0, %v651
  %v653 = vpop.f32.mrb[0].mxu0
  %654 = vmatprep.mubr.bf16.mxu0 0
  %655 = vmatmul.mubr.bf16.gmra.mrb[0].mxu0 %v314
  %v656 = vpop.f32.mrb[0].mxu0
  %v657 = vadd.f32 0.0, %v656
  %v658 = vpop.f32.mrb[0].mxu0
  %v659 = vpop.f32.mrb[0].mxu0
  %v660 = vadd.f32 0.0, %v659
  %v661 = vpop.f32.mrb[0].mxu0
  %662 = vmatprep.mubr.bf16.mxu0 0
  %663 = vmatmul.mubr.bf16.gmra.mrb[0].mxu0 %v315
  %v664 = vpop.f32.mrb[0].mxu0
  %v665 = vadd.f32 0.0, %v664
  %v666 = vpop.f32.mrb[0].mxu0
  %v667 = vpop.f32.mrb[0].mxu0
  %v668 = vadd.f32 0.0, %v667
  %v669 = vpop.f32.mrb[0].mxu0
  %670 = vmatprep.mubr.bf16.mxu0 0
  %671 = vmatmul.mubr.bf16.gmra.mrb[0].mxu0 %v316
  %v672 = vpop.f32.mrb[0].mxu0
  %v673 = vadd.f32 0.0, %v672
  %v674 = vpop.f32.mrb[0].mxu0
  %v675 = vpop.f32.mrb[0].mxu0
  %v676 = vadd.f32 0.0, %v675
  %v677 = vpop.f32.mrb[0].mxu0
  %678 = vmatprep.mubr.bf16.mxu0 0
  %679 = vmatmul.mubr.bf16.gmra.mrb[0].mxu0 %v317
  %v680 = vpop.f32.mrb[0].mxu0
  %v681 = vadd.f32 0.0, %v680
  %v682 = vpop.f32.mrb[0].mxu0
  %v683 = vpop.f32.mrb[0].mxu0
  %v684 = vadd.f32 0.0, %v683
  %v685 = vpop.f32.mrb[0].mxu0
  %686 = vdwg.mxu0
  %v687 = vpack.c.bf16 %v436, %v433
  %v688 = vpack.c.bf16 %v444, %v441
  %v689 = vpack.c.bf16 %v452, %v449
  %v690 = vpack.c.bf16 %v460, %v457
  %v691 = vpack.c.bf16 %v468, %v465
  %v692 = vpack.c.bf16 %v476, %v473
  %v693 = vpack.c.bf16 %v484, %v481
  %v694 = vpack.c.bf16 %v492, %v489
  %v695 = vpack.c.bf16 %v500, %v497
  %v696 = vpack.c.bf16 %v508, %v505
  %v697 = vpack.c.bf16 %v516, %v513
  %v698 = vpack.c.bf16 %v524, %v521
  %v699 = vpack.c.bf16 %v532, %v529
  %v700 = vpack.c.bf16 %v540, %v537
  %v701 = vpack.c.bf16 %v548, %v545
  %v702 = vpack.c.bf16 %v556, %v553
  %v703 = vpack.c.bf16 %v564, %v561
  %v704 = vpack.c.bf16 %v572, %v569
  %v705 = vpack.c.bf16 %v580, %v577
  %v706 = vpack.c.bf16 %v588, %v585
  %v707 = vpack.c.bf16 %v596, %v593
  %v708 = vpack.c.bf16 %v604, %v601
  %v709 = vpack.c.bf16 %v612, %v609
  %v710 = vpack.c.bf16 %v620, %v617
  %v711 = vpack.c.bf16 %v628, %v625
  %v712 = vpack.c.bf16 %v636, %v633
  %v713 = vpack.c.bf16 %v644, %v641
  %v714 = vpack.c.bf16 %v652, %v649
  %v715 = vpack.c.bf16 %v660, %v657
  %v716 = vpack.c.bf16 %v668, %v665
  %v717 = vpack.c.bf16 %v676, %v673
  %v718 = vpack.c.bf16 %v684, %v681
  %v751 = vunpack.c.l.b16 %v687
  %v752 = vunpack.c.h.b16 %v687
  %v753 = vunpack.c.l.b16 %v688
  %v754 = vunpack.c.h.b16 %v688
  %v755 = vunpack.c.l.b16 %v689
  %v756 = vunpack.c.h.b16 %v689
  %v757 = vunpack.c.l.b16 %v690
  %v758 = vunpack.c.h.b16 %v690
  %v759 = vunpack.c.l.b16 %v691
  %v760 = vunpack.c.h.b16 %v691
  %v761 = vunpack.c.l.b16 %v692
  %v762 = vunpack.c.h.b16 %v692
  %v763 = vunpack.c.l.b16 %v693
  %v764 = vunpack.c.h.b16 %v693
  %v765 = vunpack.c.l.b16 %v694
  %v766 = vunpack.c.h.b16 %v694
  %v767 = vunpack.c.l.b16 %v695
  %v768 = vunpack.c.h.b16 %v695
  %v769 = vunpack.c.l.b16 %v696
  %v770 = vunpack.c.h.b16 %v696
  %v771 = vunpack.c.l.b16 %v697
  %v772 = vunpack.c.h.b16 %v697
  %v773 = vunpack.c.l.b16 %v698
  %v774 = vunpack.c.h.b16 %v698
  %v775 = vunpack.c.l.b16 %v699
  %v776 = vunpack.c.h.b16 %v699
  %v777 = vunpack.c.l.b16 %v700
  %v778 = vunpack.c.h.b16 %v700
  %v779 = vunpack.c.l.b16 %v701
  %v780 = vunpack.c.h.b16 %v701
  %v781 = vunpack.c.l.b16 %v702
  %v782 = vunpack.c.h.b16 %v702
  %v783 = vunpack.c.l.b16 %v703
  %v784 = vunpack.c.h.b16 %v703
  %v785 = vunpack.c.l.b16 %v704
  %v786 = vunpack.c.h.b16 %v704
  %v787 = vunpack.c.l.b16 %v705
  %v788 = vunpack.c.h.b16 %v705
  %v789 = vunpack.c.l.b16 %v706
  %v790 = vunpack.c.h.b16 %v706
  %v791 = vunpack.c.l.b16 %v707
  %v792 = vunpack.c.h.b16 %v707
  %v793 = vunpack.c.l.b16 %v708
  %v794 = vunpack.c.h.b16 %v708
  %v795 = vunpack.c.l.b16 %v709
  %v796 = vunpack.c.h.b16 %v709
  %v797 = vunpack.c.l.b16 %v710
  %v798 = vunpack.c.h.b16 %v710
  %v799 = vunpack.c.l.b16 %v711
  %v800 = vunpack.c.h.b16 %v711
  %v801 = vunpack.c.l.b16 %v712
  %v802 = vunpack.c.h.b16 %v712
  %v803 = vunpack.c.l.b16 %v713
  %v804 = vunpack.c.h.b16 %v713
  %v805 = vunpack.c.l.b16 %v714
  %v806 = vunpack.c.h.b16 %v714
  %v807 = vunpack.c.l.b16 %v715
  %v808 = vunpack.c.h.b16 %v715
  %v809 = vunpack.c.l.b16 %v716
  %v810 = vunpack.c.h.b16 %v716
  %v811 = vunpack.c.l.b16 %v717
  %v812 = vunpack.c.h.b16 %v717
  %v813 = vunpack.c.l.b16 %v718
  %v814 = vunpack.c.h.b16 %v718
  %v815 = vpack.c.b16 %v751, %v751
  %v816 = vpack.c.b16 %v752, %v752
  %v817 = vpack.c.b16 %v753, %v753
  %v818 = vpack.c.b16 %v754, %v754
  %v819 = vpack.c.b16 %v755, %v755
  %v820 = vpack.c.b16 %v756, %v756
  %v821 = vpack.c.b16 %v757, %v757
  %v822 = vpack.c.b16 %v758, %v758
  %v823 = vpack.c.b16 %v759, %v759
  %v824 = vpack.c.b16 %v760, %v760
  %v825 = vpack.c.b16 %v761, %v761
  %v826 = vpack.c.b16 %v762, %v762
  %v827 = vpack.c.b16 %v763, %v763
  %v828 = vpack.c.b16 %v764, %v764
  %v829 = vpack.c.b16 %v765, %v765
  %v830 = vpack.c.b16 %v766, %v766
  %v831 = vpack.c.b16 %v767, %v767
  %v832 = vpack.c.b16 %v768, %v768
  %v833 = vpack.c.b16 %v769, %v769
  %v834 = vpack.c.b16 %v770, %v770
  %v835 = vpack.c.b16 %v771, %v771
  %v836 = vpack.c.b16 %v772, %v772
  %v837 = vpack.c.b16 %v773, %v773
  %v838 = vpack.c.b16 %v774, %v774
  %v839 = vpack.c.b16 %v775, %v775
  %v840 = vpack.c.b16 %v776, %v776
  %v841 = vpack.c.b16 %v777, %v777
  %v842 = vpack.c.b16 %v778, %v778
  %v843 = vpack.c.b16 %v779, %v779
  %v844 = vpack.c.b16 %v780, %v780
  %v845 = vpack.c.b16 %v781, %v781
  %v846 = vpack.c.b16 %v782, %v782
  %v847 = vpack.c.b16 %v783, %v783
  %v848 = vpack.c.b16 %v784, %v784
  %v849 = vpack.c.b16 %v785, %v785
  %v850 = vpack.c.b16 %v786, %v786
  %v851 = vpack.c.b16 %v787, %v787
  %v852 = vpack.c.b16 %v788, %v788
  %v853 = vpack.c.b16 %v789, %v789
  %v854 = vpack.c.b16 %v790, %v790
  %v855 = vpack.c.b16 %v791, %v791
  %v856 = vpack.c.b16 %v792, %v792
  %v857 = vpack.c.b16 %v793, %v793
  %v858 = vpack.c.b16 %v794, %v794
  %v859 = vpack.c.b16 %v795, %v795
  %v860 = vpack.c.b16 %v796, %v796
  %v861 = vpack.c.b16 %v797, %v797
  %v862 = vpack.c.b16 %v798, %v798
  %v863 = vpack.c.b16 %v799, %v799
  %v864 = vpack.c.b16 %v800, %v800
  %v865 = vpack.c.b16 %v801, %v801
  %v866 = vpack.c.b16 %v802, %v802
  %v867 = vpack.c.b16 %v803, %v803
  %v868 = vpack.c.b16 %v804, %v804
  %v869 = vpack.c.b16 %v805, %v805
  %v870 = vpack.c.b16 %v806, %v806
  %v871 = vpack.c.b16 %v807, %v807
  %v872 = vpack.c.b16 %v808, %v808
  %v873 = vpack.c.b16 %v809, %v809
  %v874 = vpack.c.b16 %v810, %v810
  %v875 = vpack.c.b16 %v811, %v811
  %v876 = vpack.c.b16 %v812, %v812
  %v877 = vpack.c.b16 %v813, %v813
  %v878 = vpack.c.b16 %v814, %v814
  %943 = vst [vmem:[%s2] sm:$0xf] %v815
  %944 = vst [vmem:[%s2 + $0x4] sm:$0xf] %v816
  %945 = vst [vmem:[%s2 + $0x8] sm:$0xf] %v817
  %946 = vst [vmem:[%s2 + $0xc] sm:$0xf] %v818
  %947 = vst [vmem:[%s2 + $0x10] sm:$0xf] %v819
  %948 = vst [vmem:[%s2 + $0x14] sm:$0xf] %v820
  %949 = vst [vmem:[%s2 + $0x18] sm:$0xf] %v821
  %950 = vst [vmem:[%s2 + $0x1c] sm:$0xf] %v822
  %951 = vst [vmem:[%s2 + $0x20] sm:$0xf] %v823
  %952 = vst [vmem:[%s2 + $0x24] sm:$0xf] %v824
  %953 = vst [vmem:[%s2 + $0x28] sm:$0xf] %v825
  %954 = vst [vmem:[%s2 + $0x2c] sm:$0xf] %v826
  %955 = vst [vmem:[%s2 + $0x30] sm:$0xf] %v827
  %956 = vst [vmem:[%s2 + $0x34] sm:$0xf] %v828
  %957 = vst [vmem:[%s2 + $0x38] sm:$0xf] %v829
  %958 = vst [vmem:[%s2 + $0x3c] sm:$0xf] %v830
  %959 = vst [vmem:[%s2 + $0x40] sm:$0xf] %v831
  %960 = vst [vmem:[%s2 + $0x44] sm:$0xf] %v832
  %961 = vst [vmem:[%s2 + $0x48] sm:$0xf] %v833
  %962 = vst [vmem:[%s2 + $0x4c] sm:$0xf] %v834
  %963 = vst [vmem:[%s2 + $0x50] sm:$0xf] %v835
  %964 = vst [vmem:[%s2 + $0x54] sm:$0xf] %v836
  %965 = vst [vmem:[%s2 + $0x58] sm:$0xf] %v837
  %966 = vst [vmem:[%s2 + $0x5c] sm:$0xf] %v838
  %967 = vst [vmem:[%s2 + $0x60] sm:$0xf] %v839
  %968 = vst [vmem:[%s2 + $0x64] sm:$0xf] %v840
  %969 = vst [vmem:[%s2 + $0x68] sm:$0xf] %v841
  %970 = vst [vmem:[%s2 + $0x6c] sm:$0xf] %v842
  %971 = vst [vmem:[%s2 + $0x70] sm:$0xf] %v843
  %972 = vst [vmem:[%s2 + $0x74] sm:$0xf] %v844
  %973 = vst [vmem:[%s2 + $0x78] sm:$0xf] %v845
  %974 = vst [vmem:[%s2 + $0x7c] sm:$0xf] %v846
  %975 = vst [vmem:[%s2 + $0x80] sm:$0xf] %v847
  %976 = vst [vmem:[%s2 + $0x84] sm:$0xf] %v848
  %977 = vst [vmem:[%s2 + $0x88] sm:$0xf] %v849
  %978 = vst [vmem:[%s2 + $0x8c] sm:$0xf] %v850
  %979 = vst [vmem:[%s2 + $0x90] sm:$0xf] %v851
  %980 = vst [vmem:[%s2 + $0x94] sm:$0xf] %v852
  %981 = vst [vmem:[%s2 + $0x98] sm:$0xf] %v853
  %982 = vst [vmem:[%s2 + $0x9c] sm:$0xf] %v854
  %983 = vst [vmem:[%s2 + $0xa0] sm:$0xf] %v855
  %984 = vst [vmem:[%s2 + $0xa4] sm:$0xf] %v856
  %985 = vst [vmem:[%s2 + $0xa8] sm:$0xf] %v857
  %986 = vst [vmem:[%s2 + $0xac] sm:$0xf] %v858
  %987 = vst [vmem:[%s2 + $0xb0] sm:$0xf] %v859
  %988 = vst [vmem:[%s2 + $0xb4] sm:$0xf] %v860
  %989 = vst [vmem:[%s2 + $0xb8] sm:$0xf] %v861
  %990 = vst [vmem:[%s2 + $0xbc] sm:$0xf] %v862
  %991 = vst [vmem:[%s2 + $0xc0] sm:$0xf] %v863
  %992 = vst [vmem:[%s2 + $0xc4] sm:$0xf] %v864
  %993 = vst [vmem:[%s2 + $0xc8] sm:$0xf] %v865
  %994 = vst [vmem:[%s2 + $0xcc] sm:$0xf] %v866
  %995 = vst [vmem:[%s2 + $0xd0] sm:$0xf] %v867
  %996 = vst [vmem:[%s2 + $0xd4] sm:$0xf] %v868
  %997 = vst [vmem:[%s2 + $0xd8] sm:$0xf] %v869
  %998 = vst [vmem:[%s2 + $0xdc] sm:$0xf] %v870
  %999 = vst [vmem:[%s2 + $0xe0] sm:$0xf] %v871
  %1000 = vst [vmem:[%s2 + $0xe4] sm:$0xf] %v872
  %1001 = vst [vmem:[%s2 + $0xe8] sm:$0xf] %v873
  %1002 = vst [vmem:[%s2 + $0xec] sm:$0xf] %v874
  %1003 = vst [vmem:[%s2 + $0xf0] sm:$0xf] %v875
  %1004 = vst [vmem:[%s2 + $0xf4] sm:$0xf] %v876
  %1005 = vst [vmem:[%s2 + $0xf8] sm:$0xf] %v877
  %1006 = vst [vmem:[%s2 + $0xfc] sm:$0xf] %v878
  %v1007 = vadd.f32 %v433, %v436
  %v1008 = vadd.f32 %v1007, %v441
  %v1009 = vadd.f32 %v1008, %v444
  %v1010 = vadd.f32 %v1009, %v449
  %v1011 = vadd.f32 %v1010, %v452
  %v1012 = vadd.f32 %v1011, %v457
  %v1013 = vadd.f32 %v1012, %v460
  %v1014 = vadd.f32 %v1013, %v465
  %v1015 = vadd.f32 %v1014, %v468
  %v1016 = vadd.f32 %v1015, %v473
  %v1017 = vadd.f32 %v1016, %v476
  %v1018 = vadd.f32 %v1017, %v481
  %v1019 = vadd.f32 %v1018, %v484
  %v1020 = vadd.f32 %v1019, %v489
  %v1021 = vadd.f32 %v1020, %v492
  %v1022 = vadd.f32 %v1021, %v497
  %v1023 = vadd.f32 %v1022, %v500
  %v1024 = vadd.f32 %v1023, %v505
  %v1025 = vadd.f32 %v1024, %v508
  %v1026 = vadd.f32 %v1025, %v513
  %v1027 = vadd.f32 %v1026, %v516
  %v1028 = vadd.f32 %v1027, %v521
  %v1029 = vadd.f32 %v1028, %v524
  %v1030 = vadd.f32 %v1029, %v529
  %v1031 = vadd.f32 %v1030, %v532
  %v1032 = vadd.f32 %v1031, %v537
  %v1033 = vadd.f32 %v1032, %v540
  %v1034 = vadd.f32 %v1033, %v545
  %v1035 = vadd.f32 %v1034, %v548
  %v1036 = vadd.f32 %v1035, %v553
  %v1037 = vadd.f32 %v1036, %v556
  %v1038 = vadd.f32 %v1037, %v561
  %v1039 = vadd.f32 %v1038, %v564
  %v1040 = vadd.f32 %v1039, %v569
  %v1041 = vadd.f32 %v1040, %v572
  %v1042 = vadd.f32 %v1041, %v577
  %v1043 = vadd.f32 %v1042, %v580
  %v1044 = vadd.f32 %v1043, %v585
  %v1045 = vadd.f32 %v1044, %v588
  %v1046 = vadd.f32 %v1045, %v593
  %v1047 = vadd.f32 %v1046, %v596
  %v1048 = vadd.f32 %v1047, %v601
  %v1049 = vadd.f32 %v1048, %v604
  %v1050 = vadd.f32 %v1049, %v609
  %v1051 = vadd.f32 %v1050, %v612
  %v1052 = vadd.f32 %v1051, %v617
  %v1053 = vadd.f32 %v1052, %v620
  %v1054 = vadd.f32 %v1053, %v625
  %v1055 = vadd.f32 %v1054, %v628
  %v1056 = vadd.f32 %v1055, %v633
  %v1057 = vadd.f32 %v1056, %v636
  %v1058 = vadd.f32 %v1057, %v641
  %v1059 = vadd.f32 %v1058, %v644
  %v1060 = vadd.f32 %v1059, %v649
  %v1061 = vadd.f32 %v1060, %v652
  %v1062 = vadd.f32 %v1061, %v657
  %v1063 = vadd.f32 %v1062, %v660
  %v1064 = vadd.f32 %v1063, %v665
  %v1065 = vadd.f32 %v1064, %v668
  %v1066 = vadd.f32 %v1065, %v673
  %v1067 = vadd.f32 %v1066, %v676
  %v1068 = vadd.f32 %v1067, %v681
  %v1069 = vadd.f32 %v1068, %v684
  %v1070 = vrot.slane %v1069, 4
  %v1071 = vadd.f32 %v1069, %v1070
  %v1072 = vrot.slane %v1071, 2
  %v1073 = vadd.f32 %v1071, %v1072
  %v1074 = vrot.slane %v1073, 1
  %v1075 = vadd.f32 %v1073, %v1074
  %1076 = vst [vmem:[%s3] sm:$0x1] %v1075
  %v1077 = vmul.f32 %v433, %v433
  %v1078 = vmul.f32 %v436, %v436
  %v1079 = vmul.f32 %v441, %v441
  %v1080 = vmul.f32 %v444, %v444
  %v1081 = vmul.f32 %v449, %v449
  %v1082 = vmul.f32 %v452, %v452
  %v1083 = vmul.f32 %v457, %v457
  %v1084 = vmul.f32 %v460, %v460
  %v1085 = vmul.f32 %v465, %v465
  %v1086 = vmul.f32 %v468, %v468
  %v1087 = vmul.f32 %v473, %v473
  %v1088 = vmul.f32 %v476, %v476
  %v1089 = vmul.f32 %v481, %v481
  %v1090 = vmul.f32 %v484, %v484
  %v1091 = vmul.f32 %v489, %v489
  %v1092 = vmul.f32 %v492, %v492
  %v1093 = vmul.f32 %v497, %v497
  %v1094 = vmul.f32 %v500, %v500
  %v1095 = vmul.f32 %v505, %v505
  %v1096 = vmul.f32 %v508, %v508
  %v1097 = vmul.f32 %v513, %v513
  %v1098 = vmul.f32 %v516, %v516
  %v1099 = vmul.f32 %v521, %v521
  %v1100 = vmul.f32 %v524, %v524
  %v1101 = vmul.f32 %v529, %v529
  %v1102 = vmul.f32 %v532, %v532
  %v1103 = vmul.f32 %v537, %v537
  %v1104 = vmul.f32 %v540, %v540
  %v1105 = vmul.f32 %v545, %v545
  %v1106 = vmul.f32 %v548, %v548
  %v1107 = vmul.f32 %v553, %v553
  %v1108 = vmul.f32 %v556, %v556
  %v1109 = vmul.f32 %v561, %v561
  %v1110 = vmul.f32 %v564, %v564
  %v1111 = vmul.f32 %v569, %v569
  %v1112 = vmul.f32 %v572, %v572
  %v1113 = vmul.f32 %v577, %v577
  %v1114 = vmul.f32 %v580, %v580
  %v1115 = vmul.f32 %v585, %v585
  %v1116 = vmul.f32 %v588, %v588
  %v1117 = vmul.f32 %v593, %v593
  %v1118 = vmul.f32 %v596, %v596
  %v1119 = vmul.f32 %v601, %v601
  %v1120 = vmul.f32 %v604, %v604
  %v1121 = vmul.f32 %v609, %v609
  %v1122 = vmul.f32 %v612, %v612
  %v1123 = vmul.f32 %v617, %v617
  %v1124 = vmul.f32 %v620, %v620
  %v1125 = vmul.f32 %v625, %v625
  %v1126 = vmul.f32 %v628, %v628
  %v1127 = vmul.f32 %v633, %v633
  %v1128 = vmul.f32 %v636, %v636
  %v1129 = vmul.f32 %v641, %v641
  %v1130 = vmul.f32 %v644, %v644
  %v1131 = vmul.f32 %v649, %v649
  %v1132 = vmul.f32 %v652, %v652
  %v1133 = vmul.f32 %v657, %v657
  %v1134 = vmul.f32 %v660, %v660
  %v1135 = vmul.f32 %v665, %v665
  %v1136 = vmul.f32 %v668, %v668
  %v1137 = vmul.f32 %v673, %v673
  %v1138 = vmul.f32 %v676, %v676
  %v1139 = vmul.f32 %v681, %v681
  %v1140 = vmul.f32 %v684, %v684
  %v1141 = vadd.f32 %v1077, %v1078
  %v1142 = vadd.f32 %v1141, %v1079
  %v1143 = vadd.f32 %v1142, %v1080
  %v1144 = vadd.f32 %v1143, %v1081
  %v1145 = vadd.f32 %v1144, %v1082
  %v1146 = vadd.f32 %v1145, %v1083
  %v1147 = vadd.f32 %v1146, %v1084
  %v1148 = vadd.f32 %v1147, %v1085
  %v1149 = vadd.f32 %v1148, %v1086
  %v1150 = vadd.f32 %v1149, %v1087
  %v1151 = vadd.f32 %v1150, %v1088
  %v1152 = vadd.f32 %v1151, %v1089
  %v1153 = vadd.f32 %v1152, %v1090
  %v1154 = vadd.f32 %v1153, %v1091
  %v1155 = vadd.f32 %v1154, %v1092
  %v1156 = vadd.f32 %v1155, %v1093
  %v1157 = vadd.f32 %v1156, %v1094
  %v1158 = vadd.f32 %v1157, %v1095
  %v1159 = vadd.f32 %v1158, %v1096
  %v1160 = vadd.f32 %v1159, %v1097
  %v1161 = vadd.f32 %v1160, %v1098
  %v1162 = vadd.f32 %v1161, %v1099
  %v1163 = vadd.f32 %v1162, %v1100
  %v1164 = vadd.f32 %v1163, %v1101
  %v1165 = vadd.f32 %v1164, %v1102
  %v1166 = vadd.f32 %v1165, %v1103
  %v1167 = vadd.f32 %v1166, %v1104
  %v1168 = vadd.f32 %v1167, %v1105
  %v1169 = vadd.f32 %v1168, %v1106
  %v1170 = vadd.f32 %v1169, %v1107
  %v1171 = vadd.f32 %v1170, %v1108
  %v1172 = vadd.f32 %v1171, %v1109
  %v1173 = vadd.f32 %v1172, %v1110
  %v1174 = vadd.f32 %v1173, %v1111
  %v1175 = vadd.f32 %v1174, %v1112
  %v1176 = vadd.f32 %v1175, %v1113
  %v1177 = vadd.f32 %v1176, %v1114
  %v1178 = vadd.f32 %v1177, %v1115
  %v1179 = vadd.f32 %v1178, %v1116
  %v1180 = vadd.f32 %v1179, %v1117
  %v1181 = vadd.f32 %v1180, %v1118
  %v1182 = vadd.f32 %v1181, %v1119
  %v1183 = vadd.f32 %v1182, %v1120
  %v1184 = vadd.f32 %v1183, %v1121
  %v1185 = vadd.f32 %v1184, %v1122
  %v1186 = vadd.f32 %v1185, %v1123
  %v1187 = vadd.f32 %v1186, %v1124
  %v1188 = vadd.f32 %v1187, %v1125
  %v1189 = vadd.f32 %v1188, %v1126
  %v1190 = vadd.f32 %v1189, %v1127
  %v1191 = vadd.f32 %v1190, %v1128
  %v1192 = vadd.f32 %v1191, %v1129
  %v1193 = vadd.f32 %v1192, %v1130
  %v1194 = vadd.f32 %v1193, %v1131
  %v1195 = vadd.f32 %v1194, %v1132
  %v1196 = vadd.f32 %v1195, %v1133
  %v1197 = vadd.f32 %v1196, %v1134
  %v1198 = vadd.f32 %v1197, %v1135
  %v1199 = vadd.f32 %v1198, %v1136
  %v1200 = vadd.f32 %v1199, %v1137
  %v1201 = vadd.f32 %v1200, %v1138
  %v1202 = vadd.f32 %v1201, %v1139
  %v1203 = vadd.f32 %v1202, %v1140
  %v1204 = vrot.slane %v1203, 4
  %v1205 = vadd.f32 %v1203, %v1204
  %v1206 = vrot.slane %v1205, 2
  %v1207 = vadd.f32 %v1205, %v1206
  %v1208 = vrot.slane %v1207, 1
  %v1209 = vadd.f32 %v1207, %v1208
  %1210 = vst [vmem:[%s3 + $0x1] sm:$0x1] %v1209
  // Predicated region
  $region10: #{cell_fcdag_forward.3} parent=0 // pred_check
    _
  $region11: #{cell_fcdag_forward.3} parent=0 // pred_check_branch
    %1212 = sbr.rel (0) target = $region13
  $region12: #{cell_fcdag_forward.3} parent=0 // pred_region
    _
  $region13: #{cell_fcdag_forward.3} parent=0 // pred_fallthru
    _
  // Predicated region
  $region14: #{cell_fcdag_forward.3} parent=0 // pred_check
    _
  $region15: #{cell_fcdag_forward.3} parent=0 // pred_check_branch
    %1214 = sbr.rel (0) target = $region17
  $region16: #{cell_fcdag_forward.3} parent=0 // pred_region
    _
  $region17: #{cell_fcdag_forward.3} parent=0 // pred_fallthru
    _
  // Predicated region
  $region18: #{cell_fcdag_forward.3} parent=0 // pred_check
    _
  $region19: #{cell_fcdag_forward.3} parent=0 // pred_check_branch
    %1216 = sbr.rel (0) target = $region21
  $region20: #{cell_fcdag_forward.3} parent=0 // pred_region
    _
  $region21: #{cell_fcdag_forward.3} parent=0 // pred_fallthru
    _
  // Predicated region
  $region22: #{cell_fcdag_forward.3} parent=0 // pred_check
    _
  $region23: #{cell_fcdag_forward.3} parent=0 // pred_check_branch
    %1218 = sbr.rel (0) target = $region25
  $region24: #{cell_fcdag_forward.3} parent=0 // pred_region
    _
  $region25: #{cell_fcdag_forward.3} parent=0 // pred_fallthru
    _

</llo_original>
